<compile_context>
chip_gen: v5e
topology: v5e:2x2
jax: 0.10.0
libtpu: 0.0.40
codegen_flags: <defaults>
</compile_context>

<pallas_src>
import jax
import jax.numpy as jnp
from jax.experimental import pallas as pl
from jax.experimental.pallas import tpu as pltpu

D_IN, D_IN_PAD = 1000, 1024
H1, H2, H3, H4 = 512, 512, 256, 128
N_OUT, N_OUT_PAD = 7, 128
NEG_INF = -1e30  # finite "minus infinity" for padded logit columns


def _cdiv(a, b):
    return -(-a // b)


def _round_up(n, m):
    return _cdiv(n, m) * m


def mlp_kernel(x_ref,
               w1_ref, b1_ref,
               w2_ref, b2_ref,
               w3_ref, b3_ref,
               w4_ref, b4_ref,
               w5_ref, b5_ref,
               out_ref):
    # 5 MXU matmuls (bf16 operands, f32 accumulation). Inter-layer epilogue:
    # f32 bias add on the accumulator, cast to bf16, ReLU in bf16 (v6e/v7x VPU
    # handles bf16 packed; on v5e Mosaic emulates it -- correctness unchanged).
    def layer(h_bf16, w_ref, b_ref):
        acc = jnp.dot(h_bf16, w_ref[...],
                      preferred_element_type=jnp.float32) + b_ref[...]
        return jnp.maximum(acc.astype(jnp.bfloat16), 0.0)

    h = layer(x_ref[...], w1_ref, b1_ref)
    h = layer(h, w2_ref, b2_ref)
    h = layer(h, w3_ref, b3_ref)
    h = layer(h, w4_ref, b4_ref)

    logits = jnp.dot(h, w5_ref[...],
                     preferred_element_type=jnp.float32) + b5_ref[...]

    # Numerically stable softmax over the (padded) last axis. Padded columns
    # carry a -1e30 bias -> exp underflows to exactly 0, so they contribute
    # nothing to max or denominator.
    m = jnp.max(logits, axis=-1, keepdims=True)
    e = jnp.exp(logits - m)
    denom = jnp.sum(e, axis=-1, keepdims=True)
    probs = e * pl.reciprocal(denom, approx=True)   # EUP, off the VALU path
    out_ref[...] = probs.astype(out_ref.dtype)      # lane-dense bf16 store


def prepare_params(params):
    """Pad to MXU-friendly shapes and cast weights to bf16.

    params: list of (w, b), w in (in, out) layout, f32.
    Returns flat [w1, b1, ..., w5, b5] with:
      * w1 zero-padded on the input dim 1000 -> 1024,
      * layer 5 padded 7 -> 128 output cols (zero weights, bias = -1e30),
      * weights in bf16, biases in f32 with shape (1, out).
    """
    (w1, b1), (w2, b2), (w3, b3), (w4, b4), (w5, b5) = params

    def as_row(b):
        return jnp.reshape(b, (1, -1)).astype(jnp.float32)

    w1p = jnp.zeros((D_IN_PAD, H1), jnp.float32).at[:D_IN, :].set(w1)
    w5p = jnp.zeros((H4, N_OUT_PAD), jnp.float32).at[:, :N_OUT].set(w5)
    b5p = jnp.full((1, N_OUT_PAD), NEG_INF, jnp.float32)
    b5p = b5p.at[:, :N_OUT].set(jnp.reshape(b5, (1, -1)))

    weights = [w1p, w2, w3, w4, w5p]
    biases = [as_row(b1), as_row(b2), as_row(b3), as_row(b4), b5p]

    flat = []
    for w, b in zip(weights, biases):
        flat.append(w.astype(jnp.bfloat16))
        flat.append(b)
    return flat


def _choose_tb(B, tb_max):
    """Pick a batch tile (multiple of 16 for bf16 sublane packing).

    * Minimizes tail padding (no more rounding B up to a full tb_max tile).
    * Mid-size batches (128 < B <= tb_max) get >= 2 grid steps so the
      "parallel" grid axis can shard across both v7x TensorCores.
    """
    n_tiles = _cdiv(B, tb_max)
    if n_tiles == 1 and B > 128:
        n_tiles = 2
    tb = _round_up(_cdiv(B, n_tiles), 16)
    return tb, n_tiles * tb


def mlp_forward(x, params, *, tb=1024):
    """x: (B, 1000) float32 -> (B, 7) float32 softmax probabilities."""
    B = x.shape[0]
    assert x.shape[1] == D_IN

    flat = prepare_params(params)

    TB, B_pad = _choose_tb(B, tb)

    # Cast to bf16 FIRST, then pad 1000 -> 1024 features and batch -> B_pad:
    # halves the wrapper-side HBM pass compared to padding in f32.
    xp = jnp.pad(x.astype(jnp.bfloat16),
                 ((0, B_pad - B), (0, D_IN_PAD - D_IN)))

    grid = (B_pad // TB,)
    x_spec = pl.BlockSpec((TB, D_IN_PAD), lambda i: (i, 0))
    out_spec = pl.BlockSpec((TB, N_OUT_PAD), lambda i: (i, 0))
    # Constant index_map => weights/biases loaded once, resident across tiles.
    param_specs = [pl.BlockSpec(p.shape, lambda i: (0, 0)) for p in flat]

    out = pl.pallas_call(
        mlp_kernel,
        out_shape=jax.ShapeDtypeStruct((B_pad, N_OUT_PAD), jnp.bfloat16),
        grid=grid,
        in_specs=[x_spec] + param_specs,
        out_specs=out_spec,
        compiler_params=pltpu.CompilerParams(
            dimension_semantics=("parallel",),
            vmem_limit_bytes=32 * 1024 * 1024),
    )(xp, *flat)

    # Tiny (B, 7) slice of the bf16 output; cast back to f32 to match the
    # module's output dtype (negligible cost).
    return out[:B, :N_OUT].astype(jnp.float32)


def init_params(key):
    """Deterministic parameter init (same shapes as the PyTorch module).

    PyTorch nn.Linear stores weight as (out, in); weights here are kept in
    (in, out) layout so the kernel computes x @ W + b directly.
    """
    dims = [(D_IN, H1), (H1, H2), (H2, H3), (H3, H4), (H4, N_OUT)]
    params = []
    for (d_in, d_out) in dims:
        kw, kb, key = jax.random.split(key, 3)
        bound = 1.0 / jnp.sqrt(jnp.float32(d_in))
        w = jax.random.uniform(kw, (d_in, d_out), jnp.float32, -bound, bound)
        b = jax.random.uniform(kb, (1, d_out), jnp.float32, -bound, bound)
        params.append((w, b))
    return params


def reference_forward(x, params):
    """Pure-f32 JAX reference of the original PyTorch forward pass."""
    h = x
    for i, (w, b) in enumerate(params):
        h = jnp.dot(h, w) + jnp.reshape(b, (1, -1))
        if i < len(params) - 1:
            h = jnp.maximum(h, 0.0)
    return jax.nn.softmax(h, axis=-1)


if __name__ == "__main__":
    key = jax.random.PRNGKey(0)
    kx, kp = jax.random.split(key)

    B = 8
    x = jax.random.normal(kx, (B, D_IN), jnp.float32)
    params = init_params(kp)

    out = jax.block_until_ready(mlp_forward(x, params))
    ref = reference_forward(x, params)

    assert out.shape == (B, N_OUT), out.shape
    # Tolerances cover bf16 weights/activations/output + approx EUP reciprocal
    # vs. the exact f32 reference of the original model.
    assert jnp.allclose(out, ref, atol=2e-2, rtol=5e-2), "mismatch vs f32 reference"
    assert jnp.allclose(jnp.sum(out, axis=1), 1.0, atol=2e-2), \
        "softmax rows must sum to 1"

    print("KERNEL_OK")
</pallas_src>

<mosaic_0001>
module attributes {stable_mosaic.version = 11 : i64} {
  func.func @mlp_kernel(%arg0: i32, %arg1: memref<16x1024xbf16, #tpu.memory_space<vmem>>, %arg2: memref<1024x512xbf16, #tpu.memory_space<vmem>>, %arg3: memref<1x512xf32, #tpu.memory_space<vmem>>, %arg4: memref<512x512xbf16, #tpu.memory_space<vmem>>, %arg5: memref<1x512xf32, #tpu.memory_space<vmem>>, %arg6: memref<512x256xbf16, #tpu.memory_space<vmem>>, %arg7: memref<1x256xf32, #tpu.memory_space<vmem>>, %arg8: memref<256x128xbf16, #tpu.memory_space<vmem>>, %arg9: memref<1x128xf32, #tpu.memory_space<vmem>>, %arg10: memref<128x128xbf16, #tpu.memory_space<vmem>>, %arg11: memref<1x128xf32, #tpu.memory_space<vmem>>, %arg12: memref<16x128xbf16, #tpu.memory_space<vmem>>) attributes {dimension_semantics = [#tpu.dimension_semantics<parallel>], iteration_bounds = array<i64: 1>, scalar_prefetch = 0 : i64, scratch_operands = 0 : i64, tpu.core_type = #tpu.core_type<tc>, window_params = [{transform_indices = @transform_0, window_bounds = array<i64: 16, 1024>}, {pipeline_mode = #tpu.pipeline_mode<synchronous>, transform_indices = @transform_1, window_bounds = array<i64: 1024, 512>}, {pipeline_mode = #tpu.pipeline_mode<synchronous>, transform_indices = @transform_2, window_bounds = array<i64: 1, 512>}, {pipeline_mode = #tpu.pipeline_mode<synchronous>, transform_indices = @transform_3, window_bounds = array<i64: 512, 512>}, {pipeline_mode = #tpu.pipeline_mode<synchronous>, transform_indices = @transform_4, window_bounds = array<i64: 1, 512>}, {pipeline_mode = #tpu.pipeline_mode<synchronous>, transform_indices = @transform_5, window_bounds = array<i64: 512, 256>}, {pipeline_mode = #tpu.pipeline_mode<synchronous>, transform_indices = @transform_6, window_bounds = array<i64: 1, 256>}, {pipeline_mode = #tpu.pipeline_mode<synchronous>, transform_indices = @transform_7, window_bounds = array<i64: 256, 128>}, {pipeline_mode = #tpu.pipeline_mode<synchronous>, transform_indices = @transform_8, window_bounds = array<i64: 1, 128>}, {pipeline_mode = #tpu.pipeline_mode<synchronous>, transform_indices = @transform_9, window_bounds = array<i64: 128, 128>}, {pipeline_mode = #tpu.pipeline_mode<synchronous>, transform_indices = @transform_10, window_bounds = array<i64: 1, 128>}, {transform_indices = @transform_11, window_bounds = array<i64: 16, 128>}]} {
    %c0 = arith.constant 0 : index
    %c0_0 = arith.constant 0 : index
    %0 = vector.load %arg1[%c0, %c0_0] : memref<16x1024xbf16, #tpu.memory_space<vmem>>, vector<16x1024xbf16>
    %c0_1 = arith.constant 0 : index
    %c0_2 = arith.constant 0 : index
    %1 = vector.load %arg2[%c0_1, %c0_2] : memref<1024x512xbf16, #tpu.memory_space<vmem>>, vector<1024x512xbf16>
    %cst = arith.constant dense<0.000000e+00> : vector<16x512xf32>
    %2 = tpu.matmul %0, %1, %cst {dimension_numbers = #tpu.dot_dimension_numbers<[1], [0], [0], [1], [0, 0, 1, 1], [], []>} : vector<16x1024xbf16>, vector<1024x512xbf16>, vector<16x512xf32> -> vector<16x512xf32>
    %c0_3 = arith.constant 0 : index
    %c0_4 = arith.constant 0 : index
    %3 = vector.load %arg3[%c0_3, %c0_4] : memref<1x512xf32, #tpu.memory_space<vmem>>, vector<1x512xf32>
    %4 = vector.broadcast %3 : vector<1x512xf32> to vector<16x512xf32>
    %5 = arith.addf %2, %4 : vector<16x512xf32>
    %6 = arith.truncf %5 : vector<16x512xf32> to vector<16x512xbf16>
    %cst_5 = arith.constant 0.000000e+00 : bf16
    %7 = vector.broadcast %cst_5 : bf16 to vector<16x512xbf16>
    %8 = arith.maximumf %6, %7 : vector<16x512xbf16>
    %c0_6 = arith.constant 0 : index
    %c0_7 = arith.constant 0 : index
    %9 = vector.load %arg4[%c0_6, %c0_7] : memref<512x512xbf16, #tpu.memory_space<vmem>>, vector<512x512xbf16>
    %cst_8 = arith.constant dense<0.000000e+00> : vector<16x512xf32>
    %10 = tpu.matmul %8, %9, %cst_8 {dimension_numbers = #tpu.dot_dimension_numbers<[1], [0], [0], [1], [0, 0, 1, 1], [], []>} : vector<16x512xbf16>, vector<512x512xbf16>, vector<16x512xf32> -> vector<16x512xf32>
    %c0_9 = arith.constant 0 : index
    %c0_10 = arith.constant 0 : index
    %11 = vector.load %arg5[%c0_9, %c0_10] : memref<1x512xf32, #tpu.memory_space<vmem>>, vector<1x512xf32>
    %12 = vector.broadcast %11 : vector<1x512xf32> to vector<16x512xf32>
    %13 = arith.addf %10, %12 : vector<16x512xf32>
    %14 = arith.truncf %13 : vector<16x512xf32> to vector<16x512xbf16>
    %cst_11 = arith.constant 0.000000e+00 : bf16
    %15 = vector.broadcast %cst_11 : bf16 to vector<16x512xbf16>
    %16 = arith.maximumf %14, %15 : vector<16x512xbf16>
    %c0_12 = arith.constant 0 : index
    %c0_13 = arith.constant 0 : index
    %17 = vector.load %arg6[%c0_12, %c0_13] : memref<512x256xbf16, #tpu.memory_space<vmem>>, vector<512x256xbf16>
    %cst_14 = arith.constant dense<0.000000e+00> : vector<16x256xf32>
    %18 = tpu.matmul %16, %17, %cst_14 {dimension_numbers = #tpu.dot_dimension_numbers<[1], [0], [0], [1], [0, 0, 1, 1], [], []>} : vector<16x512xbf16>, vector<512x256xbf16>, vector<16x256xf32> -> vector<16x256xf32>
    %c0_15 = arith.constant 0 : index
    %c0_16 = arith.constant 0 : index
    %19 = vector.load %arg7[%c0_15, %c0_16] : memref<1x256xf32, #tpu.memory_space<vmem>>, vector<1x256xf32>
    %20 = vector.broadcast %19 : vector<1x256xf32> to vector<16x256xf32>
    %21 = arith.addf %18, %20 : vector<16x256xf32>
    %22 = arith.truncf %21 : vector<16x256xf32> to vector<16x256xbf16>
    %cst_17 = arith.constant 0.000000e+00 : bf16
    %23 = vector.broadcast %cst_17 : bf16 to vector<16x256xbf16>
    %24 = arith.maximumf %22, %23 : vector<16x256xbf16>
    %c0_18 = arith.constant 0 : index
    %c0_19 = arith.constant 0 : index
    %25 = vector.load %arg8[%c0_18, %c0_19] : memref<256x128xbf16, #tpu.memory_space<vmem>>, vector<256x128xbf16>
    %cst_20 = arith.constant dense<0.000000e+00> : vector<16x128xf32>
    %26 = tpu.matmul %24, %25, %cst_20 {dimension_numbers = #tpu.dot_dimension_numbers<[1], [0], [0], [1], [0, 0, 1, 1], [], []>} : vector<16x256xbf16>, vector<256x128xbf16>, vector<16x128xf32> -> vector<16x128xf32>
    %c0_21 = arith.constant 0 : index
    %c0_22 = arith.constant 0 : index
    %27 = vector.load %arg9[%c0_21, %c0_22] : memref<1x128xf32, #tpu.memory_space<vmem>>, vector<1x128xf32>
    %28 = vector.broadcast %27 : vector<1x128xf32> to vector<16x128xf32>
    %29 = arith.addf %26, %28 : vector<16x128xf32>
    %30 = arith.truncf %29 : vector<16x128xf32> to vector<16x128xbf16>
    %cst_23 = arith.constant 0.000000e+00 : bf16
    %31 = vector.broadcast %cst_23 : bf16 to vector<16x128xbf16>
    %32 = arith.maximumf %30, %31 : vector<16x128xbf16>
    %c0_24 = arith.constant 0 : index
    %c0_25 = arith.constant 0 : index
    %33 = vector.load %arg10[%c0_24, %c0_25] : memref<128x128xbf16, #tpu.memory_space<vmem>>, vector<128x128xbf16>
    %cst_26 = arith.constant dense<0.000000e+00> : vector<16x128xf32>
    %34 = tpu.matmul %32, %33, %cst_26 {dimension_numbers = #tpu.dot_dimension_numbers<[1], [0], [0], [1], [0, 0, 1, 1], [], []>} : vector<16x128xbf16>, vector<128x128xbf16>, vector<16x128xf32> -> vector<16x128xf32>
    %c0_27 = arith.constant 0 : index
    %c0_28 = arith.constant 0 : index
    %35 = vector.load %arg11[%c0_27, %c0_28] : memref<1x128xf32, #tpu.memory_space<vmem>>, vector<1x128xf32>
    %36 = vector.broadcast %35 : vector<1x128xf32> to vector<16x128xf32>
    %37 = arith.addf %34, %36 : vector<16x128xf32>
    %cst_29 = arith.constant dense<0xFF800000> : vector<16xf32>
    %38 = vector.multi_reduction <maximumf>, %37, %cst_29 [1] : vector<16x128xf32> to vector<16xf32>
    %39 = vector.shape_cast %38 : vector<16xf32> to vector<16x1xf32>
    %40 = vector.broadcast %39 : vector<16x1xf32> to vector<16x128xf32>
    %41 = arith.subf %37, %40 : vector<16x128xf32>
    %42 = math.exp %41 : vector<16x128xf32>
    %cst_30 = arith.constant dense<0.000000e+00> : vector<16xf32>
    %43 = vector.multi_reduction <add>, %42, %cst_30 [1] : vector<16x128xf32> to vector<16xf32>
    %44 = vector.shape_cast %43 : vector<16xf32> to vector<16x1xf32>
    %45 = tpu.reciprocal %44 {approx = true} : vector<16x1xf32> -> vector<16x1xf32>
    %46 = vector.broadcast %45 : vector<16x1xf32> to vector<16x128xf32>
    %47 = arith.mulf %42, %46 : vector<16x128xf32>
    %48 = arith.truncf %47 : vector<16x128xf32> to vector<16x128xbf16>
    %c0_31 = arith.constant 0 : index
    %c0_32 = arith.constant 0 : index
    %49 = vector.load %arg12[%c0_31, %c0_32] : memref<16x128xbf16, #tpu.memory_space<vmem>>, vector<16x128xbf16>
    tpu.vector_store %arg12[%c0_31, %c0_32], %48 {strides = array<i32>} : memref<16x128xbf16, #tpu.memory_space<vmem>>, vector<16x128xbf16>,
    return
  }
  func.func @transform_0(%arg0: i32) -> (i32, i32) {
    %c0_i32 = arith.constant 0 : i32
    %c0_i32_0 = arith.constant 0 : i32
    return %arg0, %c0_i32 : i32, i32
  }
  func.func @transform_1(%arg0: i32) -> (i32, i32) {
    %c0_i32 = arith.constant 0 : i32
    %c0_i32_0 = arith.constant 0 : i32
    %c0_i32_1 = arith.constant 0 : i32
    return %c0_i32, %c0_i32_0 : i32, i32
  }
  func.func @transform_2(%arg0: i32) -> (i32, i32) {
    %c0_i32 = arith.constant 0 : i32
    %c0_i32_0 = arith.constant 0 : i32
    %c0_i32_1 = arith.constant 0 : i32
    return %c0_i32, %c0_i32_0 : i32, i32
  }
  func.func @transform_3(%arg0: i32) -> (i32, i32) {
    %c0_i32 = arith.constant 0 : i32
    %c0_i32_0 = arith.constant 0 : i32
    %c0_i32_1 = arith.constant 0 : i32
    return %c0_i32, %c0_i32_0 : i32, i32
  }
  func.func @transform_4(%arg0: i32) -> (i32, i32) {
    %c0_i32 = arith.constant 0 : i32
    %c0_i32_0 = arith.constant 0 : i32
    %c0_i32_1 = arith.constant 0 : i32
    return %c0_i32, %c0_i32_0 : i32, i32
  }
  func.func @transform_5(%arg0: i32) -> (i32, i32) {
    %c0_i32 = arith.constant 0 : i32
    %c0_i32_0 = arith.constant 0 : i32
    %c0_i32_1 = arith.constant 0 : i32
    return %c0_i32, %c0_i32_0 : i32, i32
  }
  func.func @transform_6(%arg0: i32) -> (i32, i32) {
    %c0_i32 = arith.constant 0 : i32
    %c0_i32_0 = arith.constant 0 : i32
    %c0_i32_1 = arith.constant 0 : i32
    return %c0_i32, %c0_i32_0 : i32, i32
  }
  func.func @transform_7(%arg0: i32) -> (i32, i32) {
    %c0_i32 = arith.constant 0 : i32
    %c0_i32_0 = arith.constant 0 : i32
    %c0_i32_1 = arith.constant 0 : i32
    return %c0_i32, %c0_i32_0 : i32, i32
  }
  func.func @transform_8(%arg0: i32) -> (i32, i32) {
    %c0_i32 = arith.constant 0 : i32
    %c0_i32_0 = arith.constant 0 : i32
    %c0_i32_1 = arith.constant 0 : i32
    return %c0_i32, %c0_i32_0 : i32, i32
  }
  func.func @transform_9(%arg0: i32) -> (i32, i32) {
    %c0_i32 = arith.constant 0 : i32
    %c0_i32_0 = arith.constant 0 : i32
    %c0_i32_1 = arith.constant 0 : i32
    return %c0_i32, %c0_i32_0 : i32, i32
  }
  func.func @transform_10(%arg0: i32) -> (i32, i32) {
    %c0_i32 = arith.constant 0 : i32
    %c0_i32_0 = arith.constant 0 : i32
    %c0_i32_1 = arith.constant 0 : i32
    return %c0_i32, %c0_i32_0 : i32, i32
  }
  func.func @transform_11(%arg0: i32) -> (i32, i32) {
    %c0_i32 = arith.constant 0 : i32
    %c0_i32_0 = arith.constant 0 : i32
    return %arg0, %c0_i32 : i32, i32
  }
}

</mosaic_0001>

<llo_original>
// kernel: tpu_custom_call.1
$region0: #{tpu_custom_call.1}
  #allocation0 [shape = 'u32[]', space=smem, size = 0x4, offset = 0x4, fixed_abs, tag = 'smem constant byte address 0x4 - core index']
  #allocation1 [shape = 'u32[72,128]{1,0:T(1,128)}', space=vmem, size = 0x9000, scoped, tag = 'internal scratch']
  %s0 = inlined_call_operand.hbm [shape: bf16[16,1024], index: 0, kind: input, shape index: {}]
  %s1 = inlined_call_operand.hbm [shape: bf16[1024,512], index: 1, kind: input, shape index: {}]
  %s2 = inlined_call_operand.hbm [shape: f32[1,512], index: 2, kind: input, shape index: {}]
  %s3 = inlined_call_operand.hbm [shape: bf16[512,512], index: 3, kind: input, shape index: {}]
  %s4 = inlined_call_operand.hbm [shape: f32[1,512], index: 4, kind: input, shape index: {}]
  %s5 = inlined_call_operand.hbm [shape: bf16[512,256], index: 5, kind: input, shape index: {}]
  %s6 = inlined_call_operand.vmem [shape: f32[1,256], index: 6, kind: input, shape index: {}]
  %s7 = inlined_call_operand.hbm [shape: bf16[256,128], index: 7, kind: input, shape index: {}]
  %s8 = inlined_call_operand.vmem [shape: f32[1,128], index: 8, kind: input, shape index: {}]
  %s9 = inlined_call_operand.hbm [shape: bf16[128,128], index: 9, kind: input, shape index: {}]
  %s10 = inlined_call_operand.vmem [shape: f32[1,128], index: 10, kind: input, shape index: {}]
  %s11 = inlined_call_operand.hbm [shape: bf16[16,128], index: 11, kind: output, shape index: {}]
  %s12 = sld [smem:[#allocation0]]
  $region86: #{tpu_custom_call.1} parent=0
    _
  %s14 = ssub.s32 1, %s12
  %s15 = scalar_select 0, %s14, %s12
  $region1: #{tpu_custom_call.1} parent=0
    #allocation2 [shape = 'u8[32768]{0}', space=vmem, size = 0x8000, scoped, tag = 'input window, operand 0, single buffered']
    #allocation3 [shape = 's32[1]{0}', space=sflag, size = 0x4, scoped, tag = 'scoped memory for tpu_custom_call.1']
    #allocation4 [shape = 's32[1]{0}', space=sflag, size = 0x4, scoped, tag = 'scoped memory for tpu_custom_call.1']
    #allocation5 [shape = 'u8[1048576]{0}', space=vmem, size = 0x100000, scoped, tag = 'input window, operand 1, single buffered']
    #allocation6 [shape = 's32[1]{0}', space=sflag, size = 0x4, scoped, tag = 'scoped memory for tpu_custom_call.1']
    #allocation7 [shape = 'u8[2048]{0}', space=vmem, size = 0x800, scoped, tag = 'input window, operand 2, single buffered']
    #allocation8 [shape = 'u8[524288]{0}', space=vmem, size = 0x80000, scoped, tag = 'input window, operand 3, single buffered']
    #allocation9 [shape = 's32[1]{0}', space=sflag, size = 0x4, scoped, tag = 'scoped memory for tpu_custom_call.1']
    #allocation10 [shape = 'u8[2048]{0}', space=vmem, size = 0x800, scoped, tag = 'input window, operand 4, single buffered']
    #allocation11 [shape = 'u8[262144]{0}', space=vmem, size = 0x40000, scoped, tag = 'input window, operand 5, single buffered']
    #allocation12 [shape = 's32[1]{0}', space=sflag, size = 0x4, scoped, tag = 'scoped memory for tpu_custom_call.1']
    #allocation13 [shape = 'u8[65536]{0}', space=vmem, size = 0x10000, scoped, tag = 'input window, operand 7, single buffered']
    #allocation14 [shape = 'u8[32768]{0}', space=vmem, size = 0x8000, scoped, tag = 'input window, operand 9, single buffered']
    #allocation15 [shape = 's32[1]{0}', space=sflag, size = 0x4, scoped, tag = 'scoped memory for tpu_custom_call.1']
    #allocation16 [shape = 'u8[4096]{0}', space=vmem, size = 0x1000, scoped, tag = 'output window, operand 0, single buffered']
    %16 = vsyncpa [#allocation3], 0
    %17 = vsyncpa [#allocation6], 0
    %18 = vsyncpa [#allocation9], 0
    %19 = vsyncpa [#allocation12], 0
    %20 = vsyncpa [#allocation15], 0
    %21 = vsyncpa [#allocation4], 0
    // Predicated region
    $region2: #{tpu_custom_call.1} parent=1 // pred_check
      _
    $region3: #{tpu_custom_call.1} parent=1 // pred_check_branch
      %23 = sbr.rel (0) target = $region5
    $region4: #{tpu_custom_call.1} parent=1 // pred_region
      %25 = vsyncadd [#allocation3], 0
      %s26 = sshll.u32 %s0, 4
      %s27 = int_to_ptr.hbm [resolvable:$true] %s26
      %s28 = sshll.u32 [#allocation2], 4
      %s29 = int_to_ptr.vmem [resolvable:$true] %s28
      %34 = dma.hbm_to_vmem [thread:$0]  %s27, 1024, %s29, [#allocation3], 512, 512, 32
    $region5: #{tpu_custom_call.1} parent=1 // pred_fallthru
      _
    // Predicated region
    $region6: #{tpu_custom_call.1} parent=1 // pred_check
      _
    $region7: #{tpu_custom_call.1} parent=1 // pred_check_branch
      %36 = sbr.rel (0) target = $region9
    $region8: #{tpu_custom_call.1} parent=1 // pred_region
      %38 = vsyncadd [#allocation6], 0
      %s39 = sshll.u32 %s1, 4
      %s40 = int_to_ptr.hbm [resolvable:$true] %s39
      %s41 = sshll.u32 [#allocation5], 4
      %s42 = int_to_ptr.vmem [resolvable:$true] %s41
      %47 = dma.hbm_to_vmem [thread:$0]  %s40, 32768, %s42, [#allocation6], 256, 256, 16
    $region9: #{tpu_custom_call.1} parent=1 // pred_fallthru
      _
    // Predicated region
    $region10: #{tpu_custom_call.1} parent=1 // pred_check
      _
    $region11: #{tpu_custom_call.1} parent=1 // pred_check_branch
      %49 = sbr.rel (0) target = $region13
    $region12: #{tpu_custom_call.1} parent=1 // pred_region
      %51 = vsyncadd [#allocation6], 0
      %s53 = sshll.u32 %s2, 4
      %s54 = int_to_ptr.hbm [resolvable:$true] %s53
      %s55 = sshll.u32 [#allocation7], 4
      %s56 = int_to_ptr.vmem [resolvable:$true] %s55
      %58 = dma.hbm_to_vmem [thread:$0]  %s54, 64, %s56, [#allocation6]
    $region13: #{tpu_custom_call.1} parent=1 // pred_fallthru
      _
    // Predicated region
    $region14: #{tpu_custom_call.1} parent=1 // pred_check
      _
    $region15: #{tpu_custom_call.1} parent=1 // pred_check_branch
      %60 = sbr.rel (0) target = $region17
    $region16: #{tpu_custom_call.1} parent=1 // pred_region
      %62 = vsyncadd [#allocation9], 0
      %s63 = sshll.u32 %s3, 4
      %s64 = int_to_ptr.hbm [resolvable:$true] %s63
      %s65 = sshll.u32 [#allocation8], 4
      %s66 = int_to_ptr.vmem [resolvable:$true] %s65
      %71 = dma.hbm_to_vmem [thread:$0]  %s64, 16384, %s66, [#allocation9], 256, 256, 16
    $region17: #{tpu_custom_call.1} parent=1 // pred_fallthru
      _
    // Predicated region
    $region18: #{tpu_custom_call.1} parent=1 // pred_check
      _
    $region19: #{tpu_custom_call.1} parent=1 // pred_check_branch
      %73 = sbr.rel (0) target = $region21
    $region20: #{tpu_custom_call.1} parent=1 // pred_region
      %75 = vsyncadd [#allocation9], 0
      %s77 = sshll.u32 %s4, 4
      %s78 = int_to_ptr.hbm [resolvable:$true] %s77
      %s79 = sshll.u32 [#allocation10], 4
      %s80 = int_to_ptr.vmem [resolvable:$true] %s79
      %82 = dma.hbm_to_vmem [thread:$0]  %s78, 64, %s80, [#allocation9]
    $region21: #{tpu_custom_call.1} parent=1 // pred_fallthru
      _
    // Predicated region
    $region22: #{tpu_custom_call.1} parent=1 // pred_check
      _
    $region23: #{tpu_custom_call.1} parent=1 // pred_check_branch
      %84 = sbr.rel (0) target = $region25
    $region24: #{tpu_custom_call.1} parent=1 // pred_region
      %86 = vsyncadd [#allocation12], 0
      %s87 = sshll.u32 %s5, 4
      %s88 = int_to_ptr.hbm [resolvable:$true] %s87
      %s89 = sshll.u32 [#allocation11], 4
      %s90 = int_to_ptr.vmem [resolvable:$true] %s89
      %95 = dma.hbm_to_vmem [thread:$0]  %s88, 8192, %s90, [#allocation12], 128, 128, 8
    $region25: #{tpu_custom_call.1} parent=1 // pred_fallthru
      _
    // Predicated region
    $region26: #{tpu_custom_call.1} parent=1 // pred_check
      _
    $region27: #{tpu_custom_call.1} parent=1 // pred_check_branch
      %97 = sbr.rel (0) target = $region29
    $region28: #{tpu_custom_call.1} parent=1 // pred_region
      _
    $region29: #{tpu_custom_call.1} parent=1 // pred_fallthru
      _
    // Predicated region
    $region30: #{tpu_custom_call.1} parent=1 // pred_check
      _
    $region31: #{tpu_custom_call.1} parent=1 // pred_check_branch
      %99 = sbr.rel (0) target = $region33
    $region32: #{tpu_custom_call.1} parent=1 // pred_region
      %101 = vsyncadd [#allocation12], 0
      %s102 = sshll.u32 %s7, 4
      %s103 = int_to_ptr.hbm [resolvable:$true] %s102
      %s104 = sshll.u32 [#allocation13], 4
      %s105 = int_to_ptr.vmem [resolvable:$true] %s104
      %110 = dma.hbm_to_vmem [thread:$0]  %s103, 2048, %s105, [#allocation12], 64, 64, 4
    $region33: #{tpu_custom_call.1} parent=1 // pred_fallthru
      _
    // Predicated region
    $region34: #{tpu_custom_call.1} parent=1 // pred_check
      _
    $region35: #{tpu_custom_call.1} parent=1 // pred_check_branch
      %112 = sbr.rel (0) target = $region37
    $region36: #{tpu_custom_call.1} parent=1 // pred_region
      _
    $region37: #{tpu_custom_call.1} parent=1 // pred_fallthru
      _
    // Predicated region
    $region38: #{tpu_custom_call.1} parent=1 // pred_check
      _
    $region39: #{tpu_custom_call.1} parent=1 // pred_check_branch
      %114 = sbr.rel (0) target = $region41
    $region40: #{tpu_custom_call.1} parent=1 // pred_region
      %116 = vsyncadd [#allocation15], 0
      %s117 = sshll.u32 %s9, 4
      %s118 = int_to_ptr.hbm [resolvable:$true] %s117
      %s119 = sshll.u32 [#allocation14], 4
      %s120 = int_to_ptr.vmem [resolvable:$true] %s119
      %125 = dma.hbm_to_vmem [thread:$0]  %s118, 1024, %s120, [#allocation15], 64, 64, 4
    $region41: #{tpu_custom_call.1} parent=1 // pred_fallthru
      _
    // Predicated region
    $region42: #{tpu_custom_call.1} parent=1 // pred_check
      _
    $region43: #{tpu_custom_call.1} parent=1 // pred_check_branch
      %127 = sbr.rel (0) target = $region45
    $region44: #{tpu_custom_call.1} parent=1 // pred_region
      _
    $region45: #{tpu_custom_call.1} parent=1 // pred_fallthru
      _
    // Predicated region
    $region46: #{tpu_custom_call.1} parent=1 // pred_check
      _
    $region47: #{tpu_custom_call.1} parent=1 // pred_check_branch
      %129 = sbr.rel (0) target = $region49
    $region48: #{tpu_custom_call.1} parent=1 // pred_region
      %131 = dma.done [#allocation3], 1024
    $region49: #{tpu_custom_call.1} parent=1 // pred_fallthru
      _
    // Predicated region
    $region50: #{tpu_custom_call.1} parent=1 // pred_check
      _
    $region51: #{tpu_custom_call.1} parent=1 // pred_check_branch
      %133 = sbr.rel (0) target = $region53
    $region52: #{tpu_custom_call.1} parent=1 // pred_region
      %135 = dma.done [#allocation6], 32768
    $region53: #{tpu_custom_call.1} parent=1 // pred_fallthru
      _
    // Predicated region
    $region54: #{tpu_custom_call.1} parent=1 // pred_check
      _
    $region55: #{tpu_custom_call.1} parent=1 // pred_check_branch
      %137 = sbr.rel (0) target = $region57
    $region56: #{tpu_custom_call.1} parent=1 // pred_region
      %139 = dma.done [#allocation6], 64
    $region57: #{tpu_custom_call.1} parent=1 // pred_fallthru
      _
    // Predicated region
    $region58: #{tpu_custom_call.1} parent=1 // pred_check
      _
    $region59: #{tpu_custom_call.1} parent=1 // pred_check_branch
      %141 = sbr.rel (0) target = $region61
    $region60: #{tpu_custom_call.1} parent=1 // pred_region
      %143 = dma.done [#allocation9], 16384
    $region61: #{tpu_custom_call.1} parent=1 // pred_fallthru
      _
    // Predicated region
    $region62: #{tpu_custom_call.1} parent=1 // pred_check
      _
    $region63: #{tpu_custom_call.1} parent=1 // pred_check_branch
      %145 = sbr.rel (0) target = $region65
    $region64: #{tpu_custom_call.1} parent=1 // pred_region
      %147 = dma.done [#allocation9], 64
    $region65: #{tpu_custom_call.1} parent=1 // pred_fallthru
      _
    // Predicated region
    $region66: #{tpu_custom_call.1} parent=1 // pred_check
      _
    $region67: #{tpu_custom_call.1} parent=1 // pred_check_branch
      %149 = sbr.rel (0) target = $region69
    $region68: #{tpu_custom_call.1} parent=1 // pred_region
      %151 = dma.done [#allocation12], 8192
    $region69: #{tpu_custom_call.1} parent=1 // pred_fallthru
      _
    // Predicated region
    $region70: #{tpu_custom_call.1} parent=1 // pred_check
      _
    $region71: #{tpu_custom_call.1} parent=1 // pred_check_branch
      %153 = sbr.rel (0) target = $region73
    $region72: #{tpu_custom_call.1} parent=1 // pred_region
      %155 = dma.done [#allocation12], 2048
    $region73: #{tpu_custom_call.1} parent=1 // pred_fallthru
      _
    // Predicated region
    $region74: #{tpu_custom_call.1} parent=1 // pred_check
      _
    $region75: #{tpu_custom_call.1} parent=1 // pred_check_branch
      %157 = sbr.rel (0) target = $region77
    $region76: #{tpu_custom_call.1} parent=1 // pred_region
      %159 = dma.done [#allocation15], 1024
    $region77: #{tpu_custom_call.1} parent=1 // pred_fallthru
      _
    %v160 = vld [vmem:[#allocation2] sm:$0xff]
    %v161 = vld [vmem:[#allocation2 + $0x8] sm:$0xff]
    %v162 = vld [vmem:[#allocation2 + $0x10] sm:$0xff]
    %v163 = vld [vmem:[#allocation2 + $0x18] sm:$0xff]
    %v164 = vld [vmem:[#allocation2 + $0x20] sm:$0xff]
    %v165 = vld [vmem:[#allocation2 + $0x28] sm:$0xff]
    %v166 = vld [vmem:[#allocation2 + $0x30] sm:$0xff]
    %v167 = vld [vmem:[#allocation2 + $0x38] sm:$0xff]
    %v168 = vld [vmem:[#allocation5] sm:$0xff]
    %v169 = vld [vmem:[#allocation5 + $0x8] sm:$0xff]
    %v170 = vld [vmem:[#allocation5 + $0x10] sm:$0xff]
    %v171 = vld [vmem:[#allocation5 + $0x18] sm:$0xff]
    %v172 = vld [vmem:[#allocation5 + $0x20] sm:$0xff]
    %v173 = vld [vmem:[#allocation5 + $0x28] sm:$0xff]
    %v174 = vld [vmem:[#allocation5 + $0x30] sm:$0xff]
    %v175 = vld [vmem:[#allocation5 + $0x38] sm:$0xff]
    %v176 = vld [vmem:[#allocation5 + $0x40] sm:$0xff]
    %v177 = vld [vmem:[#allocation5 + $0x48] sm:$0xff]
    %v178 = vld [vmem:[#allocation5 + $0x50] sm:$0xff]
    %v179 = vld [vmem:[#allocation5 + $0x58] sm:$0xff]
    %v180 = vld [vmem:[#allocation5 + $0x60] sm:$0xff]
    %v181 = vld [vmem:[#allocation5 + $0x68] sm:$0xff]
    %v182 = vld [vmem:[#allocation5 + $0x70] sm:$0xff]
    %v183 = vld [vmem:[#allocation5 + $0x78] sm:$0xff]
    %v184 = vld [vmem:[#allocation5 + $0x80] sm:$0xff]
    %v185 = vld [vmem:[#allocation5 + $0x88] sm:$0xff]
    %v186 = vld [vmem:[#allocation5 + $0x90] sm:$0xff]
    %v187 = vld [vmem:[#allocation5 + $0x98] sm:$0xff]
    %v188 = vld [vmem:[#allocation5 + $0xa0] sm:$0xff]
    %v189 = vld [vmem:[#allocation5 + $0xa8] sm:$0xff]
    %v190 = vld [vmem:[#allocation5 + $0xb0] sm:$0xff]
    %v191 = vld [vmem:[#allocation5 + $0xb8] sm:$0xff]
    %v192 = vld [vmem:[#allocation5 + $0xc0] sm:$0xff]
    %v193 = vld [vmem:[#allocation5 + $0xc8] sm:$0xff]
    %v194 = vld [vmem:[#allocation5 + $0xd0] sm:$0xff]
    %v195 = vld [vmem:[#allocation5 + $0xd8] sm:$0xff]
    %v196 = vld [vmem:[#allocation5 + $0xe0] sm:$0xff]
    %v197 = vld [vmem:[#allocation5 + $0xe8] sm:$0xff]
    %v198 = vld [vmem:[#allocation5 + $0xf0] sm:$0xff]
    %v199 = vld [vmem:[#allocation5 + $0xf8] sm:$0xff]
    %v200 = vld [vmem:[#allocation5 + $0x100] sm:$0xff]
    %v201 = vld [vmem:[#allocation5 + $0x108] sm:$0xff]
    %v202 = vld [vmem:[#allocation5 + $0x110] sm:$0xff]
    %v203 = vld [vmem:[#allocation5 + $0x118] sm:$0xff]
    %v204 = vld [vmem:[#allocation5 + $0x120] sm:$0xff]
    %v205 = vld [vmem:[#allocation5 + $0x128] sm:$0xff]
    %v206 = vld [vmem:[#allocation5 + $0x130] sm:$0xff]
    %v207 = vld [vmem:[#allocation5 + $0x138] sm:$0xff]
    %v208 = vld [vmem:[#allocation5 + $0x140] sm:$0xff]
    %v209 = vld [vmem:[#allocation5 + $0x148] sm:$0xff]
    %v210 = vld [vmem:[#allocation5 + $0x150] sm:$0xff]
    %v211 = vld [vmem:[#allocation5 + $0x158] sm:$0xff]
    %v212 = vld [vmem:[#allocation5 + $0x160] sm:$0xff]
    %v213 = vld [vmem:[#allocation5 + $0x168] sm:$0xff]
    %v214 = vld [vmem:[#allocation5 + $0x170] sm:$0xff]
    %v215 = vld [vmem:[#allocation5 + $0x178] sm:$0xff]
    %v216 = vld [vmem:[#allocation5 + $0x180] sm:$0xff]
    %v217 = vld [vmem:[#allocation5 + $0x188] sm:$0xff]
    %v218 = vld [vmem:[#allocation5 + $0x190] sm:$0xff]
    %v219 = vld [vmem:[#allocation5 + $0x198] sm:$0xff]
    %v220 = vld [vmem:[#allocation5 + $0x1a0] sm:$0xff]
    %v221 = vld [vmem:[#allocation5 + $0x1a8] sm:$0xff]
    %v222 = vld [vmem:[#allocation5 + $0x1b0] sm:$0xff]
    %v223 = vld [vmem:[#allocation5 + $0x1b8] sm:$0xff]
    %v224 = vld [vmem:[#allocation5 + $0x1c0] sm:$0xff]
    %v225 = vld [vmem:[#allocation5 + $0x1c8] sm:$0xff]
    %v226 = vld [vmem:[#allocation5 + $0x1d0] sm:$0xff]
    %v227 = vld [vmem:[#allocation5 + $0x1d8] sm:$0xff]
    %v228 = vld [vmem:[#allocation5 + $0x1e0] sm:$0xff]
    %v229 = vld [vmem:[#allocation5 + $0x1e8] sm:$0xff]
    %v230 = vld [vmem:[#allocation5 + $0x1f0] sm:$0xff]
    %v231 = vld [vmem:[#allocation5 + $0x1f8] sm:$0xff]
    %v232 = vld [vmem:[#allocation5 + $0x200] sm:$0xff]
    %v233 = vld [vmem:[#allocation5 + $0x208] sm:$0xff]
    %v234 = vld [vmem:[#allocation5 + $0x210] sm:$0xff]
    %v235 = vld [vmem:[#allocation5 + $0x218] sm:$0xff]
    %v236 = vld [vmem:[#allocation5 + $0x220] sm:$0xff]
    %v237 = vld [vmem:[#allocation5 + $0x228] sm:$0xff]
    %v238 = vld [vmem:[#allocation5 + $0x230] sm:$0xff]
    %v239 = vld [vmem:[#allocation5 + $0x238] sm:$0xff]
    %v240 = vld [vmem:[#allocation5 + $0x240] sm:$0xff]
    %v241 = vld [vmem:[#allocation5 + $0x248] sm:$0xff]
    %v242 = vld [vmem:[#allocation5 + $0x250] sm:$0xff]
    %v243 = vld [vmem:[#allocation5 + $0x258] sm:$0xff]
    %v244 = vld [vmem:[#allocation5 + $0x260] sm:$0xff]
    %v245 = vld [vmem:[#allocation5 + $0x268] sm:$0xff]
    %v246 = vld [vmem:[#allocation5 + $0x270] sm:$0xff]
    %v247 = vld [vmem:[#allocation5 + $0x278] sm:$0xff]
    %v248 = vld [vmem:[#allocation5 + $0x280] sm:$0xff]
    %v249 = vld [vmem:[#allocation5 + $0x288] sm:$0xff]
    %v250 = vld [vmem:[#allocation5 + $0x290] sm:$0xff]
    %v251 = vld [vmem:[#allocation5 + $0x298] sm:$0xff]
    %v252 = vld [vmem:[#allocation5 + $0x2a0] sm:$0xff]
    %v253 = vld [vmem:[#allocation5 + $0x2a8] sm:$0xff]
    %v254 = vld [vmem:[#allocation5 + $0x2b0] sm:$0xff]
    %v255 = vld [vmem:[#allocation5 + $0x2b8] sm:$0xff]
    %v256 = vld [vmem:[#allocation5 + $0x2c0] sm:$0xff]
    %v257 = vld [vmem:[#allocation5 + $0x2c8] sm:$0xff]
    %v258 = vld [vmem:[#allocation5 + $0x2d0] sm:$0xff]
    %v259 = vld [vmem:[#allocation5 + $0x2d8] sm:$0xff]
    %v260 = vld [vmem:[#allocation5 + $0x2e0] sm:$0xff]
    %v261 = vld [vmem:[#allocation5 + $0x2e8] sm:$0xff]
    %v262 = vld [vmem:[#allocation5 + $0x2f0] sm:$0xff]
    %v263 = vld [vmem:[#allocation5 + $0x2f8] sm:$0xff]
    %v264 = vld [vmem:[#allocation5 + $0x300] sm:$0xff]
    %v265 = vld [vmem:[#allocation5 + $0x308] sm:$0xff]
    %v266 = vld [vmem:[#allocation5 + $0x310] sm:$0xff]
    %v267 = vld [vmem:[#allocation5 + $0x318] sm:$0xff]
    %v268 = vld [vmem:[#allocation5 + $0x320] sm:$0xff]
    %v269 = vld [vmem:[#allocation5 + $0x328] sm:$0xff]
    %v270 = vld [vmem:[#allocation5 + $0x330] sm:$0xff]
    %v271 = vld [vmem:[#allocation5 + $0x338] sm:$0xff]
    %v272 = vld [vmem:[#allocation5 + $0x340] sm:$0xff]
    %v273 = vld [vmem:[#allocation5 + $0x348] sm:$0xff]
    %v274 = vld [vmem:[#allocation5 + $0x350] sm:$0xff]
    %v275 = vld [vmem:[#allocation5 + $0x358] sm:$0xff]
    %v276 = vld [vmem:[#allocation5 + $0x360] sm:$0xff]
    %v277 = vld [vmem:[#allocation5 + $0x368] sm:$0xff]
    %v278 = vld [vmem:[#allocation5 + $0x370] sm:$0xff]
    %v279 = vld [vmem:[#allocation5 + $0x378] sm:$0xff]
    %v280 = vld [vmem:[#allocation5 + $0x380] sm:$0xff]
    %v281 = vld [vmem:[#allocation5 + $0x388] sm:$0xff]
    %v282 = vld [vmem:[#allocation5 + $0x390] sm:$0xff]
    %v283 = vld [vmem:[#allocation5 + $0x398] sm:$0xff]
    %v284 = vld [vmem:[#allocation5 + $0x3a0] sm:$0xff]
    %v285 = vld [vmem:[#allocation5 + $0x3a8] sm:$0xff]
    %v286 = vld [vmem:[#allocation5 + $0x3b0] sm:$0xff]
    %v287 = vld [vmem:[#allocation5 + $0x3b8] sm:$0xff]
    %v288 = vld [vmem:[#allocation5 + $0x3c0] sm:$0xff]
    %v289 = vld [vmem:[#allocation5 + $0x3c8] sm:$0xff]
    %v290 = vld [vmem:[#allocation5 + $0x3d0] sm:$0xff]
    %v291 = vld [vmem:[#allocation5 + $0x3d8] sm:$0xff]
    %v292 = vld [vmem:[#allocation5 + $0x3e0] sm:$0xff]
    %v293 = vld [vmem:[#allocation5 + $0x3e8] sm:$0xff]
    %v294 = vld [vmem:[#allocation5 + $0x3f0] sm:$0xff]
    %v295 = vld [vmem:[#allocation5 + $0x3f8] sm:$0xff]
    %v296 = vld [vmem:[#allocation5 + $0x400] sm:$0xff]
    %v297 = vld [vmem:[#allocation5 + $0x408] sm:$0xff]
    %v298 = vld [vmem:[#allocation5 + $0x410] sm:$0xff]
    %v299 = vld [vmem:[#allocation5 + $0x418] sm:$0xff]
    %v300 = vld [vmem:[#allocation5 + $0x420] sm:$0xff]
    %v301 = vld [vmem:[#allocation5 + $0x428] sm:$0xff]
    %v302 = vld [vmem:[#allocation5 + $0x430] sm:$0xff]
    %v303 = vld [vmem:[#allocation5 + $0x438] sm:$0xff]
    %v304 = vld [vmem:[#allocation5 + $0x440] sm:$0xff]
    %v305 = vld [vmem:[#allocation5 + $0x448] sm:$0xff]
    %v306 = vld [vmem:[#allocation5 + $0x450] sm:$0xff]
    %v307 = vld [vmem:[#allocation5 + $0x458] sm:$0xff]
    %v308 = vld [vmem:[#allocation5 + $0x460] sm:$0xff]
    %v309 = vld [vmem:[#allocation5 + $0x468] sm:$0xff]
    %v310 = vld [vmem:[#allocation5 + $0x470] sm:$0xff]
    %v311 = vld [vmem:[#allocation5 + $0x478] sm:$0xff]
    %v312 = vld [vmem:[#allocation5 + $0x480] sm:$0xff]
    %v313 = vld [vmem:[#allocation5 + $0x488] sm:$0xff]
    %v314 = vld [vmem:[#allocation5 + $0x490] sm:$0xff]
    %v315 = vld [vmem:[#allocation5 + $0x498] sm:$0xff]
    %v316 = vld [vmem:[#allocation5 + $0x4a0] sm:$0xff]
    %v317 = vld [vmem:[#allocation5 + $0x4a8] sm:$0xff]
    %v318 = vld [vmem:[#allocation5 + $0x4b0] sm:$0xff]
    %v319 = vld [vmem:[#allocation5 + $0x4b8] sm:$0xff]
    %v320 = vld [vmem:[#allocation5 + $0x4c0] sm:$0xff]
    %v321 = vld [vmem:[#allocation5 + $0x4c8] sm:$0xff]
    %v322 = vld [vmem:[#allocation5 + $0x4d0] sm:$0xff]
    %v323 = vld [vmem:[#allocation5 + $0x4d8] sm:$0xff]
    %v324 = vld [vmem:[#allocation5 + $0x4e0] sm:$0xff]
    %v325 = vld [vmem:[#allocation5 + $0x4e8] sm:$0xff]
    %v326 = vld [vmem:[#allocation5 + $0x4f0] sm:$0xff]
    %v327 = vld [vmem:[#allocation5 + $0x4f8] sm:$0xff]
    %v328 = vld [vmem:[#allocation5 + $0x500] sm:$0xff]
    %v329 = vld [vmem:[#allocation5 + $0x508] sm:$0xff]
    %v330 = vld [vmem:[#allocation5 + $0x510] sm:$0xff]
    %v331 = vld [vmem:[#allocation5 + $0x518] sm:$0xff]
    %v332 = vld [vmem:[#allocation5 + $0x520] sm:$0xff]
    %v333 = vld [vmem:[#allocation5 + $0x528] sm:$0xff]
    %v334 = vld [vmem:[#allocation5 + $0x530] sm:$0xff]
    %v335 = vld [vmem:[#allocation5 + $0x538] sm:$0xff]
    %v336 = vld [vmem:[#allocation5 + $0x540] sm:$0xff]
    %v337 = vld [vmem:[#allocation5 + $0x548] sm:$0xff]
    %v338 = vld [vmem:[#allocation5 + $0x550] sm:$0xff]
    %v339 = vld [vmem:[#allocation5 + $0x558] sm:$0xff]
    %v340 = vld [vmem:[#allocation5 + $0x560] sm:$0xff]
    %v341 = vld [vmem:[#allocation5 + $0x568] sm:$0xff]
    %v342 = vld [vmem:[#allocation5 + $0x570] sm:$0xff]
    %v343 = vld [vmem:[#allocation5 + $0x578] sm:$0xff]
    %v344 = vld [vmem:[#allocation5 + $0x580] sm:$0xff]
    %v345 = vld [vmem:[#allocation5 + $0x588] sm:$0xff]
    %v346 = vld [vmem:[#allocation5 + $0x590] sm:$0xff]
    %v347 = vld [vmem:[#allocation5 + $0x598] sm:$0xff]
    %v348 = vld [vmem:[#allocation5 + $0x5a0] sm:$0xff]
    %v349 = vld [vmem:[#allocation5 + $0x5a8] sm:$0xff]
    %v350 = vld [vmem:[#allocation5 + $0x5b0] sm:$0xff]
    %v351 = vld [vmem:[#allocation5 + $0x5b8] sm:$0xff]
    %v352 = vld [vmem:[#allocation5 + $0x5c0] sm:$0xff]
    %v353 = vld [vmem:[#allocation5 + $0x5c8] sm:$0xff]
    %v354 = vld [vmem:[#allocation5 + $0x5d0] sm:$0xff]
    %v355 = vld [vmem:[#allocation5 + $0x5d8] sm:$0xff]
    %v356 = vld [vmem:[#allocation5 + $0x5e0] sm:$0xff]
    %v357 = vld [vmem:[#allocation5 + $0x5e8] sm:$0xff]
    %v358 = vld [vmem:[#allocation5 + $0x5f0] sm:$0xff]
    %v359 = vld [vmem:[#allocation5 + $0x5f8] sm:$0xff]
    %v360 = vld [vmem:[#allocation5 + $0x600] sm:$0xff]
    %v361 = vld [vmem:[#allocation5 + $0x608] sm:$0xff]
    %v362 = vld [vmem:[#allocation5 + $0x610] sm:$0xff]
    %v363 = vld [vmem:[#allocation5 + $0x618] sm:$0xff]
    %v364 = vld [vmem:[#allocation5 + $0x620] sm:$0xff]
    %v365 = vld [vmem:[#allocation5 + $0x628] sm:$0xff]
    %v366 = vld [vmem:[#allocation5 + $0x630] sm:$0xff]
    %v367 = vld [vmem:[#allocation5 + $0x638] sm:$0xff]
    %v368 = vld [vmem:[#allocation5 + $0x640] sm:$0xff]
    %v369 = vld [vmem:[#allocation5 + $0x648] sm:$0xff]
    %v370 = vld [vmem:[#allocation5 + $0x650] sm:$0xff]
    %v371 = vld [vmem:[#allocation5 + $0x658] sm:$0xff]
    %v372 = vld [vmem:[#allocation5 + $0x660] sm:$0xff]
    %v373 = vld [vmem:[#allocation5 + $0x668] sm:$0xff]
    %v374 = vld [vmem:[#allocation5 + $0x670] sm:$0xff]
    %v375 = vld [vmem:[#allocation5 + $0x678] sm:$0xff]
    %v376 = vld [vmem:[#allocation5 + $0x680] sm:$0xff]
    %v377 = vld [vmem:[#allocation5 + $0x688] sm:$0xff]
    %v378 = vld [vmem:[#allocation5 + $0x690] sm:$0xff]
    %v379 = vld [vmem:[#allocation5 + $0x698] sm:$0xff]
    %v380 = vld [vmem:[#allocation5 + $0x6a0] sm:$0xff]
    %v381 = vld [vmem:[#allocation5 + $0x6a8] sm:$0xff]
    %v382 = vld [vmem:[#allocation5 + $0x6b0] sm:$0xff]
    %v383 = vld [vmem:[#allocation5 + $0x6b8] sm:$0xff]
    %v384 = vld [vmem:[#allocation5 + $0x6c0] sm:$0xff]
    %v385 = vld [vmem:[#allocation5 + $0x6c8] sm:$0xff]
    %v386 = vld [vmem:[#allocation5 + $0x6d0] sm:$0xff]
    %v387 = vld [vmem:[#allocation5 + $0x6d8] sm:$0xff]
    %v388 = vld [vmem:[#allocation5 + $0x6e0] sm:$0xff]
    %v389 = vld [vmem:[#allocation5 + $0x6e8] sm:$0xff]
    %v390 = vld [vmem:[#allocation5 + $0x6f0] sm:$0xff]
    %v391 = vld [vmem:[#allocation5 + $0x6f8] sm:$0xff]
    %v392 = vld [vmem:[#allocation5 + $0x700] sm:$0xff]
    %v393 = vld [vmem:[#allocation5 + $0x708] sm:$0xff]
    %v394 = vld [vmem:[#allocation5 + $0x710] sm:$0xff]
    %v395 = vld [vmem:[#allocation5 + $0x718] sm:$0xff]
    %v396 = vld [vmem:[#allocation5 + $0x720] sm:$0xff]
    %v397 = vld [vmem:[#allocation5 + $0x728] sm:$0xff]
    %v398 = vld [vmem:[#allocation5 + $0x730] sm:$0xff]
    %v399 = vld [vmem:[#allocation5 + $0x738] sm:$0xff]
    %v400 = vld [vmem:[#allocation5 + $0x740] sm:$0xff]
    %v401 = vld [vmem:[#allocation5 + $0x748] sm:$0xff]
    %v402 = vld [vmem:[#allocation5 + $0x750] sm:$0xff]
    %v403 = vld [vmem:[#allocation5 + $0x758] sm:$0xff]
    %v404 = vld [vmem:[#allocation5 + $0x760] sm:$0xff]
    %v405 = vld [vmem:[#allocation5 + $0x768] sm:$0xff]
    %v406 = vld [vmem:[#allocation5 + $0x770] sm:$0xff]
    %v407 = vld [vmem:[#allocation5 + $0x778] sm:$0xff]
    %v408 = vld [vmem:[#allocation5 + $0x780] sm:$0xff]
    %v409 = vld [vmem:[#allocation5 + $0x788] sm:$0xff]
    %v410 = vld [vmem:[#allocation5 + $0x790] sm:$0xff]
    %v411 = vld [vmem:[#allocation5 + $0x798] sm:$0xff]
    %v412 = vld [vmem:[#allocation5 + $0x7a0] sm:$0xff]
    %v413 = vld [vmem:[#allocation5 + $0x7a8] sm:$0xff]
    %v414 = vld [vmem:[#allocation5 + $0x7b0] sm:$0xff]
    %v415 = vld [vmem:[#allocation5 + $0x7b8] sm:$0xff]
    %v416 = vld [vmem:[#allocation5 + $0x7c0] sm:$0xff]
    %v417 = vld [vmem:[#allocation5 + $0x7c8] sm:$0xff]
    %v418 = vld [vmem:[#allocation5 + $0x7d0] sm:$0xff]
    %v419 = vld [vmem:[#allocation5 + $0x7d8] sm:$0xff]
    %v420 = vld [vmem:[#allocation5 + $0x7e0] sm:$0xff]
    %v421 = vld [vmem:[#allocation5 + $0x7e8] sm:$0xff]
    %v422 = vld [vmem:[#allocation5 + $0x7f0] sm:$0xff]
    %v423 = vld [vmem:[#allocation5 + $0x7f8] sm:$0xff]
    %v424 = vld [vmem:[#allocation7] sm:$0xf]
    %v426 = vperm.slane %v424, 0
    %v427 = vperm.slane %v424, 1
    %v428 = vperm.slane %v424, 2
    %v429 = vperm.slane %v424, 3
    %v442 = vunpack.c.l.b16 %v160
    %v443 = vunpack.c.h.b16 %v160
    %v444 = vunpack.c.l.b16 %v161
    %v445 = vunpack.c.h.b16 %v161
    %v446 = vunpack.c.l.b16 %v162
    %v447 = vunpack.c.h.b16 %v162
    %v448 = vunpack.c.l.b16 %v163
    %v449 = vunpack.c.h.b16 %v163
    %v450 = vunpack.c.l.b16 %v164
    %v451 = vunpack.c.h.b16 %v164
    %v452 = vunpack.c.l.b16 %v165
    %v453 = vunpack.c.h.b16 %v165
    %v454 = vunpack.c.l.b16 %v166
    %v455 = vunpack.c.h.b16 %v166
    %v456 = vunpack.c.l.b16 %v167
    %v457 = vunpack.c.h.b16 %v167
    %v458 = vpack.c.b16 %v450, %v442
    %v459 = vpack.c.b16 %v451, %v443
    %v460 = vpack.c.b16 %v452, %v444
    %v461 = vpack.c.b16 %v453, %v445
    %v462 = vpack.c.b16 %v454, %v446
    %v463 = vpack.c.b16 %v455, %v447
    %v464 = vpack.c.b16 %v456, %v448
    %v465 = vpack.c.b16 %v457, %v449
    %v730 = vunpack.c.l.b16 %v168
    %v731 = vunpack.c.h.b16 %v168
    %v732 = vunpack.c.l.b16 %v169
    %v733 = vunpack.c.h.b16 %v169
    %v734 = vunpack.c.l.b16 %v170
    %v735 = vunpack.c.h.b16 %v170
    %v736 = vunpack.c.l.b16 %v171
    %v737 = vunpack.c.h.b16 %v171
    %v738 = vunpack.c.l.b16 %v172
    %v739 = vunpack.c.h.b16 %v172
    %v740 = vunpack.c.l.b16 %v173
    %v741 = vunpack.c.h.b16 %v173
    %v742 = vunpack.c.l.b16 %v174
    %v743 = vunpack.c.h.b16 %v174
    %v744 = vunpack.c.l.b16 %v175
    %v745 = vunpack.c.h.b16 %v175
    %v746 = vunpack.c.l.b16 %v176
    %v747 = vunpack.c.h.b16 %v176
    %v748 = vunpack.c.l.b16 %v177
    %v749 = vunpack.c.h.b16 %v177
    %v750 = vunpack.c.l.b16 %v178
    %v751 = vunpack.c.h.b16 %v178
    %v752 = vunpack.c.l.b16 %v179
    %v753 = vunpack.c.h.b16 %v179
    %v754 = vunpack.c.l.b16 %v180
    %v755 = vunpack.c.h.b16 %v180
    %v756 = vunpack.c.l.b16 %v181
    %v757 = vunpack.c.h.b16 %v181
    %v758 = vunpack.c.l.b16 %v182
    %v759 = vunpack.c.h.b16 %v182
    %v760 = vunpack.c.l.b16 %v183
    %v761 = vunpack.c.h.b16 %v183
    %v762 = vunpack.c.l.b16 %v184
    %v763 = vunpack.c.h.b16 %v184
    %v764 = vunpack.c.l.b16 %v185
    %v765 = vunpack.c.h.b16 %v185
    %v766 = vunpack.c.l.b16 %v186
    %v767 = vunpack.c.h.b16 %v186
    %v768 = vunpack.c.l.b16 %v187
    %v769 = vunpack.c.h.b16 %v187
    %v770 = vunpack.c.l.b16 %v188
    %v771 = vunpack.c.h.b16 %v188
    %v772 = vunpack.c.l.b16 %v189
    %v773 = vunpack.c.h.b16 %v189
    %v774 = vunpack.c.l.b16 %v190
    %v775 = vunpack.c.h.b16 %v190
    %v776 = vunpack.c.l.b16 %v191
    %v777 = vunpack.c.h.b16 %v191
    %v778 = vunpack.c.l.b16 %v192
    %v779 = vunpack.c.h.b16 %v192
    %v780 = vunpack.c.l.b16 %v193
    %v781 = vunpack.c.h.b16 %v193
    %v782 = vunpack.c.l.b16 %v194
    %v783 = vunpack.c.h.b16 %v194
    %v784 = vunpack.c.l.b16 %v195
    %v785 = vunpack.c.h.b16 %v195
    %v786 = vunpack.c.l.b16 %v196
    %v787 = vunpack.c.h.b16 %v196
    %v788 = vunpack.c.l.b16 %v197
    %v789 = vunpack.c.h.b16 %v197
    %v790 = vunpack.c.l.b16 %v198
    %v791 = vunpack.c.h.b16 %v198
    %v792 = vunpack.c.l.b16 %v199
    %v793 = vunpack.c.h.b16 %v199
    %v794 = vunpack.c.l.b16 %v200
    %v795 = vunpack.c.h.b16 %v200
    %v796 = vunpack.c.l.b16 %v201
    %v797 = vunpack.c.h.b16 %v201
    %v798 = vunpack.c.l.b16 %v202
    %v799 = vunpack.c.h.b16 %v202
    %v800 = vunpack.c.l.b16 %v203
    %v801 = vunpack.c.h.b16 %v203
    %v802 = vunpack.c.l.b16 %v204
    %v803 = vunpack.c.h.b16 %v204
    %v804 = vunpack.c.l.b16 %v205
    %v805 = vunpack.c.h.b16 %v205
    %v806 = vunpack.c.l.b16 %v206
    %v807 = vunpack.c.h.b16 %v206
    %v808 = vunpack.c.l.b16 %v207
    %v809 = vunpack.c.h.b16 %v207
    %v810 = vunpack.c.l.b16 %v208
    %v811 = vunpack.c.h.b16 %v208
    %v812 = vunpack.c.l.b16 %v209
    %v813 = vunpack.c.h.b16 %v209
    %v814 = vunpack.c.l.b16 %v210
    %v815 = vunpack.c.h.b16 %v210
    %v816 = vunpack.c.l.b16 %v211
    %v817 = vunpack.c.h.b16 %v211
    %v818 = vunpack.c.l.b16 %v212
    %v819 = vunpack.c.h.b16 %v212
    %v820 = vunpack.c.l.b16 %v213
    %v821 = vunpack.c.h.b16 %v213
    %v822 = vunpack.c.l.b16 %v214
    %v823 = vunpack.c.h.b16 %v214
    %v824 = vunpack.c.l.b16 %v215
    %v825 = vunpack.c.h.b16 %v215
    %v826 = vunpack.c.l.b16 %v216
    %v827 = vunpack.c.h.b16 %v216
    %v828 = vunpack.c.l.b16 %v217
    %v829 = vunpack.c.h.b16 %v217
    %v830 = vunpack.c.l.b16 %v218
    %v831 = vunpack.c.h.b16 %v218
    %v832 = vunpack.c.l.b16 %v219
    %v833 = vunpack.c.h.b16 %v219
    %v834 = vunpack.c.l.b16 %v220
    %v835 = vunpack.c.h.b16 %v220
    %v836 = vunpack.c.l.b16 %v221
    %v837 = vunpack.c.h.b16 %v221
    %v838 = vunpack.c.l.b16 %v222
    %v839 = vunpack.c.h.b16 %v222
    %v840 = vunpack.c.l.b16 %v223
    %v841 = vunpack.c.h.b16 %v223
    %v842 = vunpack.c.l.b16 %v224
    %v843 = vunpack.c.h.b16 %v224
    %v844 = vunpack.c.l.b16 %v225
    %v845 = vunpack.c.h.b16 %v225
    %v846 = vunpack.c.l.b16 %v226
    %v847 = vunpack.c.h.b16 %v226
    %v848 = vunpack.c.l.b16 %v227
    %v849 = vunpack.c.h.b16 %v227
    %v850 = vunpack.c.l.b16 %v228
    %v851 = vunpack.c.h.b16 %v228
    %v852 = vunpack.c.l.b16 %v229
    %v853 = vunpack.c.h.b16 %v229
    %v854 = vunpack.c.l.b16 %v230
    %v855 = vunpack.c.h.b16 %v230
    %v856 = vunpack.c.l.b16 %v231
    %v857 = vunpack.c.h.b16 %v231
    %v858 = vunpack.c.l.b16 %v232
    %v859 = vunpack.c.h.b16 %v232
    %v860 = vunpack.c.l.b16 %v233
    %v861 = vunpack.c.h.b16 %v233
    %v862 = vunpack.c.l.b16 %v234
    %v863 = vunpack.c.h.b16 %v234
    %v864 = vunpack.c.l.b16 %v235
    %v865 = vunpack.c.h.b16 %v235
    %v866 = vunpack.c.l.b16 %v236
    %v867 = vunpack.c.h.b16 %v236
    %v868 = vunpack.c.l.b16 %v237
    %v869 = vunpack.c.h.b16 %v237
    %v870 = vunpack.c.l.b16 %v238
    %v871 = vunpack.c.h.b16 %v238
    %v872 = vunpack.c.l.b16 %v239
    %v873 = vunpack.c.h.b16 %v239
    %v874 = vunpack.c.l.b16 %v240
    %v875 = vunpack.c.h.b16 %v240
    %v876 = vunpack.c.l.b16 %v241
    %v877 = vunpack.c.h.b16 %v241
    %v878 = vunpack.c.l.b16 %v242
    %v879 = vunpack.c.h.b16 %v242
    %v880 = vunpack.c.l.b16 %v243
    %v881 = vunpack.c.h.b16 %v243
    %v882 = vunpack.c.l.b16 %v244
    %v883 = vunpack.c.h.b16 %v244
    %v884 = vunpack.c.l.b16 %v245
    %v885 = vunpack.c.h.b16 %v245
    %v886 = vunpack.c.l.b16 %v246
    %v887 = vunpack.c.h.b16 %v246
    %v888 = vunpack.c.l.b16 %v247
    %v889 = vunpack.c.h.b16 %v247
    %v890 = vunpack.c.l.b16 %v248
    %v891 = vunpack.c.h.b16 %v248
    %v892 = vunpack.c.l.b16 %v249
    %v893 = vunpack.c.h.b16 %v249
    %v894 = vunpack.c.l.b16 %v250
    %v895 = vunpack.c.h.b16 %v250
    %v896 = vunpack.c.l.b16 %v251
    %v897 = vunpack.c.h.b16 %v251
    %v898 = vunpack.c.l.b16 %v252
    %v899 = vunpack.c.h.b16 %v252
    %v900 = vunpack.c.l.b16 %v253
    %v901 = vunpack.c.h.b16 %v253
    %v902 = vunpack.c.l.b16 %v254
    %v903 = vunpack.c.h.b16 %v254
    %v904 = vunpack.c.l.b16 %v255
    %v905 = vunpack.c.h.b16 %v255
    %v906 = vunpack.c.l.b16 %v256
    %v907 = vunpack.c.h.b16 %v256
    %v908 = vunpack.c.l.b16 %v257
    %v909 = vunpack.c.h.b16 %v257
    %v910 = vunpack.c.l.b16 %v258
    %v911 = vunpack.c.h.b16 %v258
    %v912 = vunpack.c.l.b16 %v259
    %v913 = vunpack.c.h.b16 %v259
    %v914 = vunpack.c.l.b16 %v260
    %v915 = vunpack.c.h.b16 %v260
    %v916 = vunpack.c.l.b16 %v261
    %v917 = vunpack.c.h.b16 %v261
    %v918 = vunpack.c.l.b16 %v262
    %v919 = vunpack.c.h.b16 %v262
    %v920 = vunpack.c.l.b16 %v263
    %v921 = vunpack.c.h.b16 %v263
    %v922 = vunpack.c.l.b16 %v264
    %v923 = vunpack.c.h.b16 %v264
    %v924 = vunpack.c.l.b16 %v265
    %v925 = vunpack.c.h.b16 %v265
    %v926 = vunpack.c.l.b16 %v266
    %v927 = vunpack.c.h.b16 %v266
    %v928 = vunpack.c.l.b16 %v267
    %v929 = vunpack.c.h.b16 %v267
    %v930 = vunpack.c.l.b16 %v268
    %v931 = vunpack.c.h.b16 %v268
    %v932 = vunpack.c.l.b16 %v269
    %v933 = vunpack.c.h.b16 %v269
    %v934 = vunpack.c.l.b16 %v270
    %v935 = vunpack.c.h.b16 %v270
    %v936 = vunpack.c.l.b16 %v271
    %v937 = vunpack.c.h.b16 %v271
    %v938 = vunpack.c.l.b16 %v272
    %v939 = vunpack.c.h.b16 %v272
    %v940 = vunpack.c.l.b16 %v273
    %v941 = vunpack.c.h.b16 %v273
    %v942 = vunpack.c.l.b16 %v274
    %v943 = vunpack.c.h.b16 %v274
    %v944 = vunpack.c.l.b16 %v275
    %v945 = vunpack.c.h.b16 %v275
    %v946 = vunpack.c.l.b16 %v276
    %v947 = vunpack.c.h.b16 %v276
    %v948 = vunpack.c.l.b16 %v277
    %v949 = vunpack.c.h.b16 %v277
    %v950 = vunpack.c.l.b16 %v278
    %v951 = vunpack.c.h.b16 %v278
    %v952 = vunpack.c.l.b16 %v279
    %v953 = vunpack.c.h.b16 %v279
    %v954 = vunpack.c.l.b16 %v280
    %v955 = vunpack.c.h.b16 %v280
    %v956 = vunpack.c.l.b16 %v281
    %v957 = vunpack.c.h.b16 %v281
    %v958 = vunpack.c.l.b16 %v282
    %v959 = vunpack.c.h.b16 %v282
    %v960 = vunpack.c.l.b16 %v283
    %v961 = vunpack.c.h.b16 %v283
    %v962 = vunpack.c.l.b16 %v284
    %v963 = vunpack.c.h.b16 %v284
    %v964 = vunpack.c.l.b16 %v285
    %v965 = vunpack.c.h.b16 %v285
    %v966 = vunpack.c.l.b16 %v286
    %v967 = vunpack.c.h.b16 %v286
    %v968 = vunpack.c.l.b16 %v287
    %v969 = vunpack.c.h.b16 %v287
    %v970 = vunpack.c.l.b16 %v288
    %v971 = vunpack.c.h.b16 %v288
    %v972 = vunpack.c.l.b16 %v289
    %v973 = vunpack.c.h.b16 %v289
    %v974 = vunpack.c.l.b16 %v290
    %v975 = vunpack.c.h.b16 %v290
    %v976 = vunpack.c.l.b16 %v291
    %v977 = vunpack.c.h.b16 %v291
    %v978 = vunpack.c.l.b16 %v292
    %v979 = vunpack.c.h.b16 %v292
    %v980 = vunpack.c.l.b16 %v293
    %v981 = vunpack.c.h.b16 %v293
    %v982 = vunpack.c.l.b16 %v294
    %v983 = vunpack.c.h.b16 %v294
    %v984 = vunpack.c.l.b16 %v295
    %v985 = vunpack.c.h.b16 %v295
    %v986 = vunpack.c.l.b16 %v296
    %v987 = vunpack.c.h.b16 %v296
    %v988 = vunpack.c.l.b16 %v297
    %v989 = vunpack.c.h.b16 %v297
    %v990 = vunpack.c.l.b16 %v298
    %v991 = vunpack.c.h.b16 %v298
    %v992 = vunpack.c.l.b16 %v299
    %v993 = vunpack.c.h.b16 %v299
    %v994 = vunpack.c.l.b16 %v300
    %v995 = vunpack.c.h.b16 %v300
    %v996 = vunpack.c.l.b16 %v301
    %v997 = vunpack.c.h.b16 %v301
    %v998 = vunpack.c.l.b16 %v302
    %v999 = vunpack.c.h.b16 %v302
    %v1000 = vunpack.c.l.b16 %v303
    %v1001 = vunpack.c.h.b16 %v303
    %v1002 = vunpack.c.l.b16 %v304
    %v1003 = vunpack.c.h.b16 %v304
    %v1004 = vunpack.c.l.b16 %v305
    %v1005 = vunpack.c.h.b16 %v305
    %v1006 = vunpack.c.l.b16 %v306
    %v1007 = vunpack.c.h.b16 %v306
    %v1008 = vunpack.c.l.b16 %v307
    %v1009 = vunpack.c.h.b16 %v307
    %v1010 = vunpack.c.l.b16 %v308
    %v1011 = vunpack.c.h.b16 %v308
    %v1012 = vunpack.c.l.b16 %v309
    %v1013 = vunpack.c.h.b16 %v309
    %v1014 = vunpack.c.l.b16 %v310
    %v1015 = vunpack.c.h.b16 %v310
    %v1016 = vunpack.c.l.b16 %v311
    %v1017 = vunpack.c.h.b16 %v311
    %v1018 = vunpack.c.l.b16 %v312
    %v1019 = vunpack.c.h.b16 %v312
    %v1020 = vunpack.c.l.b16 %v313
    %v1021 = vunpack.c.h.b16 %v313
    %v1022 = vunpack.c.l.b16 %v314
    %v1023 = vunpack.c.h.b16 %v314
    %v1024 = vunpack.c.l.b16 %v315
    %v1025 = vunpack.c.h.b16 %v315
    %v1026 = vunpack.c.l.b16 %v316
    %v1027 = vunpack.c.h.b16 %v316
    %v1028 = vunpack.c.l.b16 %v317
    %v1029 = vunpack.c.h.b16 %v317
    %v1030 = vunpack.c.l.b16 %v318
    %v1031 = vunpack.c.h.b16 %v318
    %v1032 = vunpack.c.l.b16 %v319
    %v1033 = vunpack.c.h.b16 %v319
    %v1034 = vunpack.c.l.b16 %v320
    %v1035 = vunpack.c.h.b16 %v320
    %v1036 = vunpack.c.l.b16 %v321
    %v1037 = vunpack.c.h.b16 %v321
    %v1038 = vunpack.c.l.b16 %v322
    %v1039 = vunpack.c.h.b16 %v322
    %v1040 = vunpack.c.l.b16 %v323
    %v1041 = vunpack.c.h.b16 %v323
    %v1042 = vunpack.c.l.b16 %v324
    %v1043 = vunpack.c.h.b16 %v324
    %v1044 = vunpack.c.l.b16 %v325
    %v1045 = vunpack.c.h.b16 %v325
    %v1046 = vunpack.c.l.b16 %v326
    %v1047 = vunpack.c.h.b16 %v326
    %v1048 = vunpack.c.l.b16 %v327
    %v1049 = vunpack.c.h.b16 %v327
    %v1050 = vunpack.c.l.b16 %v328
    %v1051 = vunpack.c.h.b16 %v328
    %v1052 = vunpack.c.l.b16 %v329
    %v1053 = vunpack.c.h.b16 %v329
    %v1054 = vunpack.c.l.b16 %v330
    %v1055 = vunpack.c.h.b16 %v330
    %v1056 = vunpack.c.l.b16 %v331
    %v1057 = vunpack.c.h.b16 %v331
    %v1058 = vunpack.c.l.b16 %v332
    %v1059 = vunpack.c.h.b16 %v332
    %v1060 = vunpack.c.l.b16 %v333
    %v1061 = vunpack.c.h.b16 %v333
    %v1062 = vunpack.c.l.b16 %v334
    %v1063 = vunpack.c.h.b16 %v334
    %v1064 = vunpack.c.l.b16 %v335
    %v1065 = vunpack.c.h.b16 %v335
    %v1066 = vunpack.c.l.b16 %v336
    %v1067 = vunpack.c.h.b16 %v336
    %v1068 = vunpack.c.l.b16 %v337
    %v1069 = vunpack.c.h.b16 %v337
    %v1070 = vunpack.c.l.b16 %v338
    %v1071 = vunpack.c.h.b16 %v338
    %v1072 = vunpack.c.l.b16 %v339
    %v1073 = vunpack.c.h.b16 %v339
    %v1074 = vunpack.c.l.b16 %v340
    %v1075 = vunpack.c.h.b16 %v340
    %v1076 = vunpack.c.l.b16 %v341
    %v1077 = vunpack.c.h.b16 %v341
    %v1078 = vunpack.c.l.b16 %v342
    %v1079 = vunpack.c.h.b16 %v342
    %v1080 = vunpack.c.l.b16 %v343
    %v1081 = vunpack.c.h.b16 %v343
    %v1082 = vunpack.c.l.b16 %v344
    %v1083 = vunpack.c.h.b16 %v344
    %v1084 = vunpack.c.l.b16 %v345
    %v1085 = vunpack.c.h.b16 %v345
    %v1086 = vunpack.c.l.b16 %v346
    %v1087 = vunpack.c.h.b16 %v346
    %v1088 = vunpack.c.l.b16 %v347
    %v1089 = vunpack.c.h.b16 %v347
    %v1090 = vunpack.c.l.b16 %v348
    %v1091 = vunpack.c.h.b16 %v348
    %v1092 = vunpack.c.l.b16 %v349
    %v1093 = vunpack.c.h.b16 %v349
    %v1094 = vunpack.c.l.b16 %v350
    %v1095 = vunpack.c.h.b16 %v350
    %v1096 = vunpack.c.l.b16 %v351
    %v1097 = vunpack.c.h.b16 %v351
    %v1098 = vunpack.c.l.b16 %v352
    %v1099 = vunpack.c.h.b16 %v352
    %v1100 = vunpack.c.l.b16 %v353
    %v1101 = vunpack.c.h.b16 %v353
    %v1102 = vunpack.c.l.b16 %v354
    %v1103 = vunpack.c.h.b16 %v354
    %v1104 = vunpack.c.l.b16 %v355
    %v1105 = vunpack.c.h.b16 %v355
    %v1106 = vunpack.c.l.b16 %v356
    %v1107 = vunpack.c.h.b16 %v356
    %v1108 = vunpack.c.l.b16 %v357
    %v1109 = vunpack.c.h.b16 %v357
    %v1110 = vunpack.c.l.b16 %v358
    %v1111 = vunpack.c.h.b16 %v358
    %v1112 = vunpack.c.l.b16 %v359
    %v1113 = vunpack.c.h.b16 %v359
    %v1114 = vunpack.c.l.b16 %v360
    %v1115 = vunpack.c.h.b16 %v360
    %v1116 = vunpack.c.l.b16 %v361
    %v1117 = vunpack.c.h.b16 %v361
    %v1118 = vunpack.c.l.b16 %v362
    %v1119 = vunpack.c.h.b16 %v362
    %v1120 = vunpack.c.l.b16 %v363
    %v1121 = vunpack.c.h.b16 %v363
    %v1122 = vunpack.c.l.b16 %v364
    %v1123 = vunpack.c.h.b16 %v364
    %v1124 = vunpack.c.l.b16 %v365
    %v1125 = vunpack.c.h.b16 %v365
    %v1126 = vunpack.c.l.b16 %v366
    %v1127 = vunpack.c.h.b16 %v366
    %v1128 = vunpack.c.l.b16 %v367
    %v1129 = vunpack.c.h.b16 %v367
    %v1130 = vunpack.c.l.b16 %v368
    %v1131 = vunpack.c.h.b16 %v368
    %v1132 = vunpack.c.l.b16 %v369
    %v1133 = vunpack.c.h.b16 %v369
    %v1134 = vunpack.c.l.b16 %v370
    %v1135 = vunpack.c.h.b16 %v370
    %v1136 = vunpack.c.l.b16 %v371
    %v1137 = vunpack.c.h.b16 %v371
    %v1138 = vunpack.c.l.b16 %v372
    %v1139 = vunpack.c.h.b16 %v372
    %v1140 = vunpack.c.l.b16 %v373
    %v1141 = vunpack.c.h.b16 %v373
    %v1142 = vunpack.c.l.b16 %v374
    %v1143 = vunpack.c.h.b16 %v374
    %v1144 = vunpack.c.l.b16 %v375
    %v1145 = vunpack.c.h.b16 %v375
    %v1146 = vunpack.c.l.b16 %v376
    %v1147 = vunpack.c.h.b16 %v376
    %v1148 = vunpack.c.l.b16 %v377
    %v1149 = vunpack.c.h.b16 %v377
    %v1150 = vunpack.c.l.b16 %v378
    %v1151 = vunpack.c.h.b16 %v378
    %v1152 = vunpack.c.l.b16 %v379
    %v1153 = vunpack.c.h.b16 %v379
    %v1154 = vunpack.c.l.b16 %v380
    %v1155 = vunpack.c.h.b16 %v380
    %v1156 = vunpack.c.l.b16 %v381
    %v1157 = vunpack.c.h.b16 %v381
    %v1158 = vunpack.c.l.b16 %v382
    %v1159 = vunpack.c.h.b16 %v382
    %v1160 = vunpack.c.l.b16 %v383
    %v1161 = vunpack.c.h.b16 %v383
    %v1162 = vunpack.c.l.b16 %v384
    %v1163 = vunpack.c.h.b16 %v384
    %v1164 = vunpack.c.l.b16 %v385
    %v1165 = vunpack.c.h.b16 %v385
    %v1166 = vunpack.c.l.b16 %v386
    %v1167 = vunpack.c.h.b16 %v386
    %v1168 = vunpack.c.l.b16 %v387
    %v1169 = vunpack.c.h.b16 %v387
    %v1170 = vunpack.c.l.b16 %v388
    %v1171 = vunpack.c.h.b16 %v388
    %v1172 = vunpack.c.l.b16 %v389
    %v1173 = vunpack.c.h.b16 %v389
    %v1174 = vunpack.c.l.b16 %v390
    %v1175 = vunpack.c.h.b16 %v390
    %v1176 = vunpack.c.l.b16 %v391
    %v1177 = vunpack.c.h.b16 %v391
    %v1178 = vunpack.c.l.b16 %v392
    %v1179 = vunpack.c.h.b16 %v392
    %v1180 = vunpack.c.l.b16 %v393
    %v1181 = vunpack.c.h.b16 %v393
    %v1182 = vunpack.c.l.b16 %v394
    %v1183 = vunpack.c.h.b16 %v394
    %v1184 = vunpack.c.l.b16 %v395
    %v1185 = vunpack.c.h.b16 %v395
    %v1186 = vunpack.c.l.b16 %v396
    %v1187 = vunpack.c.h.b16 %v396
    %v1188 = vunpack.c.l.b16 %v397
    %v1189 = vunpack.c.h.b16 %v397
    %v1190 = vunpack.c.l.b16 %v398
    %v1191 = vunpack.c.h.b16 %v398
    %v1192 = vunpack.c.l.b16 %v399
    %v1193 = vunpack.c.h.b16 %v399
    %v1194 = vunpack.c.l.b16 %v400
    %v1195 = vunpack.c.h.b16 %v400
    %v1196 = vunpack.c.l.b16 %v401
    %v1197 = vunpack.c.h.b16 %v401
    %v1198 = vunpack.c.l.b16 %v402
    %v1199 = vunpack.c.h.b16 %v402
    %v1200 = vunpack.c.l.b16 %v403
    %v1201 = vunpack.c.h.b16 %v403
    %v1202 = vunpack.c.l.b16 %v404
    %v1203 = vunpack.c.h.b16 %v404
    %v1204 = vunpack.c.l.b16 %v405
    %v1205 = vunpack.c.h.b16 %v405
    %v1206 = vunpack.c.l.b16 %v406
    %v1207 = vunpack.c.h.b16 %v406
    %v1208 = vunpack.c.l.b16 %v407
    %v1209 = vunpack.c.h.b16 %v407
    %v1210 = vunpack.c.l.b16 %v408
    %v1211 = vunpack.c.h.b16 %v408
    %v1212 = vunpack.c.l.b16 %v409
    %v1213 = vunpack.c.h.b16 %v409
    %v1214 = vunpack.c.l.b16 %v410
    %v1215 = vunpack.c.h.b16 %v410
    %v1216 = vunpack.c.l.b16 %v411
    %v1217 = vunpack.c.h.b16 %v411
    %v1218 = vunpack.c.l.b16 %v412
    %v1219 = vunpack.c.h.b16 %v412
    %v1220 = vunpack.c.l.b16 %v413
    %v1221 = vunpack.c.h.b16 %v413
    %v1222 = vunpack.c.l.b16 %v414
    %v1223 = vunpack.c.h.b16 %v414
    %v1224 = vunpack.c.l.b16 %v415
    %v1225 = vunpack.c.h.b16 %v415
    %v1226 = vunpack.c.l.b16 %v416
    %v1227 = vunpack.c.h.b16 %v416
    %v1228 = vunpack.c.l.b16 %v417
    %v1229 = vunpack.c.h.b16 %v417
    %v1230 = vunpack.c.l.b16 %v418
    %v1231 = vunpack.c.h.b16 %v418
    %v1232 = vunpack.c.l.b16 %v419
    %v1233 = vunpack.c.h.b16 %v419
    %v1234 = vunpack.c.l.b16 %v420
    %v1235 = vunpack.c.h.b16 %v420
    %v1236 = vunpack.c.l.b16 %v421
    %v1237 = vunpack.c.h.b16 %v421
    %v1238 = vunpack.c.l.b16 %v422
    %v1239 = vunpack.c.h.b16 %v422
    %v1240 = vunpack.c.l.b16 %v423
    %v1241 = vunpack.c.h.b16 %v423
    %v1242 = vpack.c.b16 %v734, %v730
    %v1243 = vpack.c.b16 %v735, %v731
    %v1244 = vpack.c.b16 %v736, %v732
    %v1245 = vpack.c.b16 %v737, %v733
    %v1246 = vpack.c.b16 %v742, %v738
    %v1247 = vpack.c.b16 %v743, %v739
    %v1248 = vpack.c.b16 %v744, %v740
    %v1249 = vpack.c.b16 %v745, %v741
    %v1250 = vpack.c.b16 %v750, %v746
    %v1251 = vpack.c.b16 %v751, %v747
    %v1252 = vpack.c.b16 %v752, %v748
    %v1253 = vpack.c.b16 %v753, %v749
    %v1254 = vpack.c.b16 %v758, %v754
    %v1255 = vpack.c.b16 %v759, %v755
    %v1256 = vpack.c.b16 %v760, %v756
    %v1257 = vpack.c.b16 %v761, %v757
    %v1258 = vpack.c.b16 %v766, %v762
    %v1259 = vpack.c.b16 %v767, %v763
    %v1260 = vpack.c.b16 %v768, %v764
    %v1261 = vpack.c.b16 %v769, %v765
    %v1262 = vpack.c.b16 %v774, %v770
    %v1263 = vpack.c.b16 %v775, %v771
    %v1264 = vpack.c.b16 %v776, %v772
    %v1265 = vpack.c.b16 %v777, %v773
    %v1266 = vpack.c.b16 %v782, %v778
    %v1267 = vpack.c.b16 %v783, %v779
    %v1268 = vpack.c.b16 %v784, %v780
    %v1269 = vpack.c.b16 %v785, %v781
    %v1270 = vpack.c.b16 %v790, %v786
    %v1271 = vpack.c.b16 %v791, %v787
    %v1272 = vpack.c.b16 %v792, %v788
    %v1273 = vpack.c.b16 %v793, %v789
    %v1274 = vpack.c.b16 %v798, %v794
    %v1275 = vpack.c.b16 %v799, %v795
    %v1276 = vpack.c.b16 %v800, %v796
    %v1277 = vpack.c.b16 %v801, %v797
    %v1278 = vpack.c.b16 %v806, %v802
    %v1279 = vpack.c.b16 %v807, %v803
    %v1280 = vpack.c.b16 %v808, %v804
    %v1281 = vpack.c.b16 %v809, %v805
    %v1282 = vpack.c.b16 %v814, %v810
    %v1283 = vpack.c.b16 %v815, %v811
    %v1284 = vpack.c.b16 %v816, %v812
    %v1285 = vpack.c.b16 %v817, %v813
    %v1286 = vpack.c.b16 %v822, %v818
    %v1287 = vpack.c.b16 %v823, %v819
    %v1288 = vpack.c.b16 %v824, %v820
    %v1289 = vpack.c.b16 %v825, %v821
    %v1290 = vpack.c.b16 %v830, %v826
    %v1291 = vpack.c.b16 %v831, %v827
    %v1292 = vpack.c.b16 %v832, %v828
    %v1293 = vpack.c.b16 %v833, %v829
    %v1294 = vpack.c.b16 %v838, %v834
    %v1295 = vpack.c.b16 %v839, %v835
    %v1296 = vpack.c.b16 %v840, %v836
    %v1297 = vpack.c.b16 %v841, %v837
    %v1298 = vpack.c.b16 %v846, %v842
    %v1299 = vpack.c.b16 %v847, %v843
    %v1300 = vpack.c.b16 %v848, %v844
    %v1301 = vpack.c.b16 %v849, %v845
    %v1302 = vpack.c.b16 %v854, %v850
    %v1303 = vpack.c.b16 %v855, %v851
    %v1304 = vpack.c.b16 %v856, %v852
    %v1305 = vpack.c.b16 %v857, %v853
    %v1306 = vpack.c.b16 %v862, %v858
    %v1307 = vpack.c.b16 %v863, %v859
    %v1308 = vpack.c.b16 %v864, %v860
    %v1309 = vpack.c.b16 %v865, %v861
    %v1310 = vpack.c.b16 %v870, %v866
    %v1311 = vpack.c.b16 %v871, %v867
    %v1312 = vpack.c.b16 %v872, %v868
    %v1313 = vpack.c.b16 %v873, %v869
    %v1314 = vpack.c.b16 %v878, %v874
    %v1315 = vpack.c.b16 %v879, %v875
    %v1316 = vpack.c.b16 %v880, %v876
    %v1317 = vpack.c.b16 %v881, %v877
    %v1318 = vpack.c.b16 %v886, %v882
    %v1319 = vpack.c.b16 %v887, %v883
    %v1320 = vpack.c.b16 %v888, %v884
    %v1321 = vpack.c.b16 %v889, %v885
    %v1322 = vpack.c.b16 %v894, %v890
    %v1323 = vpack.c.b16 %v895, %v891
    %v1324 = vpack.c.b16 %v896, %v892
    %v1325 = vpack.c.b16 %v897, %v893
    %v1326 = vpack.c.b16 %v902, %v898
    %v1327 = vpack.c.b16 %v903, %v899
    %v1328 = vpack.c.b16 %v904, %v900
    %v1329 = vpack.c.b16 %v905, %v901
    %v1330 = vpack.c.b16 %v910, %v906
    %v1331 = vpack.c.b16 %v911, %v907
    %v1332 = vpack.c.b16 %v912, %v908
    %v1333 = vpack.c.b16 %v913, %v909
    %v1334 = vpack.c.b16 %v918, %v914
    %v1335 = vpack.c.b16 %v919, %v915
    %v1336 = vpack.c.b16 %v920, %v916
    %v1337 = vpack.c.b16 %v921, %v917
    %v1338 = vpack.c.b16 %v926, %v922
    %v1339 = vpack.c.b16 %v927, %v923
    %v1340 = vpack.c.b16 %v928, %v924
    %v1341 = vpack.c.b16 %v929, %v925
    %v1342 = vpack.c.b16 %v934, %v930
    %v1343 = vpack.c.b16 %v935, %v931
    %v1344 = vpack.c.b16 %v936, %v932
    %v1345 = vpack.c.b16 %v937, %v933
    %v1346 = vpack.c.b16 %v942, %v938
    %v1347 = vpack.c.b16 %v943, %v939
    %v1348 = vpack.c.b16 %v944, %v940
    %v1349 = vpack.c.b16 %v945, %v941
    %v1350 = vpack.c.b16 %v950, %v946
    %v1351 = vpack.c.b16 %v951, %v947
    %v1352 = vpack.c.b16 %v952, %v948
    %v1353 = vpack.c.b16 %v953, %v949
    %v1354 = vpack.c.b16 %v958, %v954
    %v1355 = vpack.c.b16 %v959, %v955
    %v1356 = vpack.c.b16 %v960, %v956
    %v1357 = vpack.c.b16 %v961, %v957
    %v1358 = vpack.c.b16 %v966, %v962
    %v1359 = vpack.c.b16 %v967, %v963
    %v1360 = vpack.c.b16 %v968, %v964
    %v1361 = vpack.c.b16 %v969, %v965
    %v1362 = vpack.c.b16 %v974, %v970
    %v1363 = vpack.c.b16 %v975, %v971
    %v1364 = vpack.c.b16 %v976, %v972
    %v1365 = vpack.c.b16 %v977, %v973
    %v1366 = vpack.c.b16 %v982, %v978
    %v1367 = vpack.c.b16 %v983, %v979
    %v1368 = vpack.c.b16 %v984, %v980
    %v1369 = vpack.c.b16 %v985, %v981
    %v1370 = vpack.c.b16 %v990, %v986
    %v1371 = vpack.c.b16 %v991, %v987
    %v1372 = vpack.c.b16 %v992, %v988
    %v1373 = vpack.c.b16 %v993, %v989
    %v1374 = vpack.c.b16 %v998, %v994
    %v1375 = vpack.c.b16 %v999, %v995
    %v1376 = vpack.c.b16 %v1000, %v996
    %v1377 = vpack.c.b16 %v1001, %v997
    %v1378 = vpack.c.b16 %v1006, %v1002
    %v1379 = vpack.c.b16 %v1007, %v1003
    %v1380 = vpack.c.b16 %v1008, %v1004
    %v1381 = vpack.c.b16 %v1009, %v1005
    %v1382 = vpack.c.b16 %v1014, %v1010
    %v1383 = vpack.c.b16 %v1015, %v1011
    %v1384 = vpack.c.b16 %v1016, %v1012
    %v1385 = vpack.c.b16 %v1017, %v1013
    %v1386 = vpack.c.b16 %v1022, %v1018
    %v1387 = vpack.c.b16 %v1023, %v1019
    %v1388 = vpack.c.b16 %v1024, %v1020
    %v1389 = vpack.c.b16 %v1025, %v1021
    %v1390 = vpack.c.b16 %v1030, %v1026
    %v1391 = vpack.c.b16 %v1031, %v1027
    %v1392 = vpack.c.b16 %v1032, %v1028
    %v1393 = vpack.c.b16 %v1033, %v1029
    %v1394 = vpack.c.b16 %v1038, %v1034
    %v1395 = vpack.c.b16 %v1039, %v1035
    %v1396 = vpack.c.b16 %v1040, %v1036
    %v1397 = vpack.c.b16 %v1041, %v1037
    %v1398 = vpack.c.b16 %v1046, %v1042
    %v1399 = vpack.c.b16 %v1047, %v1043
    %v1400 = vpack.c.b16 %v1048, %v1044
    %v1401 = vpack.c.b16 %v1049, %v1045
    %v1402 = vpack.c.b16 %v1054, %v1050
    %v1403 = vpack.c.b16 %v1055, %v1051
    %v1404 = vpack.c.b16 %v1056, %v1052
    %v1405 = vpack.c.b16 %v1057, %v1053
    %v1406 = vpack.c.b16 %v1062, %v1058
    %v1407 = vpack.c.b16 %v1063, %v1059
    %v1408 = vpack.c.b16 %v1064, %v1060
    %v1409 = vpack.c.b16 %v1065, %v1061
    %v1410 = vpack.c.b16 %v1070, %v1066
    %v1411 = vpack.c.b16 %v1071, %v1067
    %v1412 = vpack.c.b16 %v1072, %v1068
    %v1413 = vpack.c.b16 %v1073, %v1069
    %v1414 = vpack.c.b16 %v1078, %v1074
    %v1415 = vpack.c.b16 %v1079, %v1075
    %v1416 = vpack.c.b16 %v1080, %v1076
    %v1417 = vpack.c.b16 %v1081, %v1077
    %v1418 = vpack.c.b16 %v1086, %v1082
    %v1419 = vpack.c.b16 %v1087, %v1083
    %v1420 = vpack.c.b16 %v1088, %v1084
    %v1421 = vpack.c.b16 %v1089, %v1085
    %v1422 = vpack.c.b16 %v1094, %v1090
    %v1423 = vpack.c.b16 %v1095, %v1091
    %v1424 = vpack.c.b16 %v1096, %v1092
    %v1425 = vpack.c.b16 %v1097, %v1093
    %v1426 = vpack.c.b16 %v1102, %v1098
    %v1427 = vpack.c.b16 %v1103, %v1099
    %v1428 = vpack.c.b16 %v1104, %v1100
    %v1429 = vpack.c.b16 %v1105, %v1101
    %v1430 = vpack.c.b16 %v1110, %v1106
    %v1431 = vpack.c.b16 %v1111, %v1107
    %v1432 = vpack.c.b16 %v1112, %v1108
    %v1433 = vpack.c.b16 %v1113, %v1109
    %v1434 = vpack.c.b16 %v1118, %v1114
    %v1435 = vpack.c.b16 %v1119, %v1115
    %v1436 = vpack.c.b16 %v1120, %v1116
    %v1437 = vpack.c.b16 %v1121, %v1117
    %v1438 = vpack.c.b16 %v1126, %v1122
    %v1439 = vpack.c.b16 %v1127, %v1123
    %v1440 = vpack.c.b16 %v1128, %v1124
    %v1441 = vpack.c.b16 %v1129, %v1125
    %v1442 = vpack.c.b16 %v1134, %v1130
    %v1443 = vpack.c.b16 %v1135, %v1131
    %v1444 = vpack.c.b16 %v1136, %v1132
    %v1445 = vpack.c.b16 %v1137, %v1133
    %v1446 = vpack.c.b16 %v1142, %v1138
    %v1447 = vpack.c.b16 %v1143, %v1139
    %v1448 = vpack.c.b16 %v1144, %v1140
    %v1449 = vpack.c.b16 %v1145, %v1141
    %v1450 = vpack.c.b16 %v1150, %v1146
    %v1451 = vpack.c.b16 %v1151, %v1147
    %v1452 = vpack.c.b16 %v1152, %v1148
    %v1453 = vpack.c.b16 %v1153, %v1149
    %v1454 = vpack.c.b16 %v1158, %v1154
    %v1455 = vpack.c.b16 %v1159, %v1155
    %v1456 = vpack.c.b16 %v1160, %v1156
    %v1457 = vpack.c.b16 %v1161, %v1157
    %v1458 = vpack.c.b16 %v1166, %v1162
    %v1459 = vpack.c.b16 %v1167, %v1163
    %v1460 = vpack.c.b16 %v1168, %v1164
    %v1461 = vpack.c.b16 %v1169, %v1165
    %v1462 = vpack.c.b16 %v1174, %v1170
    %v1463 = vpack.c.b16 %v1175, %v1171
    %v1464 = vpack.c.b16 %v1176, %v1172
    %v1465 = vpack.c.b16 %v1177, %v1173
    %v1466 = vpack.c.b16 %v1182, %v1178
    %v1467 = vpack.c.b16 %v1183, %v1179
    %v1468 = vpack.c.b16 %v1184, %v1180
    %v1469 = vpack.c.b16 %v1185, %v1181
    %v1470 = vpack.c.b16 %v1190, %v1186
    %v1471 = vpack.c.b16 %v1191, %v1187
    %v1472 = vpack.c.b16 %v1192, %v1188
    %v1473 = vpack.c.b16 %v1193, %v1189
    %v1474 = vpack.c.b16 %v1198, %v1194
    %v1475 = vpack.c.b16 %v1199, %v1195
    %v1476 = vpack.c.b16 %v1200, %v1196
    %v1477 = vpack.c.b16 %v1201, %v1197
    %v1478 = vpack.c.b16 %v1206, %v1202
    %v1479 = vpack.c.b16 %v1207, %v1203
    %v1480 = vpack.c.b16 %v1208, %v1204
    %v1481 = vpack.c.b16 %v1209, %v1205
    %v1482 = vpack.c.b16 %v1214, %v1210
    %v1483 = vpack.c.b16 %v1215, %v1211
    %v1484 = vpack.c.b16 %v1216, %v1212
    %v1485 = vpack.c.b16 %v1217, %v1213
    %v1486 = vpack.c.b16 %v1222, %v1218
    %v1487 = vpack.c.b16 %v1223, %v1219
    %v1488 = vpack.c.b16 %v1224, %v1220
    %v1489 = vpack.c.b16 %v1225, %v1221
    %v1490 = vpack.c.b16 %v1230, %v1226
    %v1491 = vpack.c.b16 %v1231, %v1227
    %v1492 = vpack.c.b16 %v1232, %v1228
    %v1493 = vpack.c.b16 %v1233, %v1229
    %v1494 = vpack.c.b16 %v1238, %v1234
    %v1495 = vpack.c.b16 %v1239, %v1235
    %v1496 = vpack.c.b16 %v1240, %v1236
    %v1497 = vpack.c.b16 %v1241, %v1237
    %1754 = vmatpush.bf16.msra.mxu0 %v1270
    %1755 = vmatpush.bf16.msra.mxu0 %v1266
    %1756 = vmatpush.bf16.msra.mxu0 %v1262
    %1757 = vmatpush.bf16.msra.mxu0 %v1258
    %1758 = vmatpush.bf16.msra.mxu0 %v1254
    %1759 = vmatpush.bf16.msra.mxu0 %v1250
    %1760 = vmatpush.bf16.msra.mxu0 %v1246
    %1761 = vmatpush.bf16.msra.mxu0 %v1242
    %1762 = vmatmul.bf16.gmra.mxu0 %v458
    %v1763 = vpop.f32.mrf.mxu0
    %v1764 = vadd.f32 %v426, %v1763
    %v1765 = vpop.f32.mrf.mxu0
    %v1766 = vadd.f32 %v426, %v1765
    %1767 = vdwg.mxu0
    %1768 = vmatpush.bf16.msra.mxu0 %v1302
    %1769 = vmatpush.bf16.msra.mxu0 %v1298
    %1770 = vmatpush.bf16.msra.mxu0 %v1294
    %1771 = vmatpush.bf16.msra.mxu0 %v1290
    %1772 = vmatpush.bf16.msra.mxu0 %v1286
    %1773 = vmatpush.bf16.msra.mxu0 %v1282
    %1774 = vmatpush.bf16.msra.mxu0 %v1278
    %1775 = vmatpush.bf16.msra.mxu0 %v1274
    %1776 = vmatmul.bf16.gmra.mxu0 %v459
    %v1777 = vpop.f32.mrf.mxu0
    %v1778 = vadd.f32 %v1764, %v1777
    %v1779 = vpop.f32.mrf.mxu0
    %v1780 = vadd.f32 %v1766, %v1779
    %1781 = vdwg.mxu0
    %1782 = vmatpush.bf16.msra.mxu0 %v1334
    %1783 = vmatpush.bf16.msra.mxu0 %v1330
    %1784 = vmatpush.bf16.msra.mxu0 %v1326
    %1785 = vmatpush.bf16.msra.mxu0 %v1322
    %1786 = vmatpush.bf16.msra.mxu0 %v1318
    %1787 = vmatpush.bf16.msra.mxu0 %v1314
    %1788 = vmatpush.bf16.msra.mxu0 %v1310
    %1789 = vmatpush.bf16.msra.mxu0 %v1306
    %1790 = vmatmul.bf16.gmra.mxu0 %v460
    %v1791 = vpop.f32.mrf.mxu0
    %v1792 = vadd.f32 %v1778, %v1791
    %v1793 = vpop.f32.mrf.mxu0
    %v1794 = vadd.f32 %v1780, %v1793
    %1795 = vdwg.mxu0
    %1796 = vmatpush.bf16.msra.mxu0 %v1366
    %1797 = vmatpush.bf16.msra.mxu0 %v1362
    %1798 = vmatpush.bf16.msra.mxu0 %v1358
    %1799 = vmatpush.bf16.msra.mxu0 %v1354
    %1800 = vmatpush.bf16.msra.mxu0 %v1350
    %1801 = vmatpush.bf16.msra.mxu0 %v1346
    %1802 = vmatpush.bf16.msra.mxu0 %v1342
    %1803 = vmatpush.bf16.msra.mxu0 %v1338
    %1804 = vmatmul.bf16.gmra.mxu0 %v461
    %v1805 = vpop.f32.mrf.mxu0
    %v1806 = vadd.f32 %v1792, %v1805
    %v1807 = vpop.f32.mrf.mxu0
    %v1808 = vadd.f32 %v1794, %v1807
    %1809 = vdwg.mxu0
    %1810 = vmatpush.bf16.msra.mxu0 %v1398
    %1811 = vmatpush.bf16.msra.mxu0 %v1394
    %1812 = vmatpush.bf16.msra.mxu0 %v1390
    %1813 = vmatpush.bf16.msra.mxu0 %v1386
    %1814 = vmatpush.bf16.msra.mxu0 %v1382
    %1815 = vmatpush.bf16.msra.mxu0 %v1378
    %1816 = vmatpush.bf16.msra.mxu0 %v1374
    %1817 = vmatpush.bf16.msra.mxu0 %v1370
    %1818 = vmatmul.bf16.gmra.mxu0 %v462
    %v1819 = vpop.f32.mrf.mxu0
    %v1820 = vadd.f32 %v1806, %v1819
    %v1821 = vpop.f32.mrf.mxu0
    %v1822 = vadd.f32 %v1808, %v1821
    %1823 = vdwg.mxu0
    %1824 = vmatpush.bf16.msra.mxu0 %v1430
    %1825 = vmatpush.bf16.msra.mxu0 %v1426
    %1826 = vmatpush.bf16.msra.mxu0 %v1422
    %1827 = vmatpush.bf16.msra.mxu0 %v1418
    %1828 = vmatpush.bf16.msra.mxu0 %v1414
    %1829 = vmatpush.bf16.msra.mxu0 %v1410
    %1830 = vmatpush.bf16.msra.mxu0 %v1406
    %1831 = vmatpush.bf16.msra.mxu0 %v1402
    %1832 = vmatmul.bf16.gmra.mxu0 %v463
    %v1833 = vpop.f32.mrf.mxu0
    %v1834 = vadd.f32 %v1820, %v1833
    %v1835 = vpop.f32.mrf.mxu0
    %v1836 = vadd.f32 %v1822, %v1835
    %1837 = vdwg.mxu0
    %1838 = vmatpush.bf16.msra.mxu0 %v1462
    %1839 = vmatpush.bf16.msra.mxu0 %v1458
    %1840 = vmatpush.bf16.msra.mxu0 %v1454
    %1841 = vmatpush.bf16.msra.mxu0 %v1450
    %1842 = vmatpush.bf16.msra.mxu0 %v1446
    %1843 = vmatpush.bf16.msra.mxu0 %v1442
    %1844 = vmatpush.bf16.msra.mxu0 %v1438
    %1845 = vmatpush.bf16.msra.mxu0 %v1434
    %1846 = vmatmul.bf16.gmra.mxu0 %v464
    %v1847 = vpop.f32.mrf.mxu0
    %v1848 = vadd.f32 %v1834, %v1847
    %v1849 = vpop.f32.mrf.mxu0
    %v1850 = vadd.f32 %v1836, %v1849
    %1851 = vdwg.mxu0
    %1852 = vmatpush.bf16.msra.mxu0 %v1494
    %1853 = vmatpush.bf16.msra.mxu0 %v1490
    %1854 = vmatpush.bf16.msra.mxu0 %v1486
    %1855 = vmatpush.bf16.msra.mxu0 %v1482
    %1856 = vmatpush.bf16.msra.mxu0 %v1478
    %1857 = vmatpush.bf16.msra.mxu0 %v1474
    %1858 = vmatpush.bf16.msra.mxu0 %v1470
    %1859 = vmatpush.bf16.msra.mxu0 %v1466
    %1860 = vmatmul.bf16.gmra.mxu0 %v465
    %v1861 = vpop.f32.mrf.mxu0
    %v1862 = vadd.f32 %v1848, %v1861
    %v1863 = vpop.f32.mrf.mxu0
    %v1864 = vadd.f32 %v1850, %v1863
    %1865 = vdwg.mxu0
    %1866 = vmatpush.bf16.msra.mxu0 %v1271
    %1867 = vmatpush.bf16.msra.mxu0 %v1267
    %1868 = vmatpush.bf16.msra.mxu0 %v1263
    %1869 = vmatpush.bf16.msra.mxu0 %v1259
    %1870 = vmatpush.bf16.msra.mxu0 %v1255
    %1871 = vmatpush.bf16.msra.mxu0 %v1251
    %1872 = vmatpush.bf16.msra.mxu0 %v1247
    %1873 = vmatpush.bf16.msra.mxu0 %v1243
    %1874 = vmatmul.bf16.gmra.mxu0 %v458
    %v1875 = vpop.f32.mrf.mxu0
    %v1876 = vadd.f32 %v427, %v1875
    %v1877 = vpop.f32.mrf.mxu0
    %v1878 = vadd.f32 %v427, %v1877
    %1879 = vdwg.mxu0
    %1880 = vmatpush.bf16.msra.mxu0 %v1303
    %1881 = vmatpush.bf16.msra.mxu0 %v1299
    %1882 = vmatpush.bf16.msra.mxu0 %v1295
    %1883 = vmatpush.bf16.msra.mxu0 %v1291
    %1884 = vmatpush.bf16.msra.mxu0 %v1287
    %1885 = vmatpush.bf16.msra.mxu0 %v1283
    %1886 = vmatpush.bf16.msra.mxu0 %v1279
    %1887 = vmatpush.bf16.msra.mxu0 %v1275
    %1888 = vmatmul.bf16.gmra.mxu0 %v459
    %v1889 = vpop.f32.mrf.mxu0
    %v1890 = vadd.f32 %v1876, %v1889
    %v1891 = vpop.f32.mrf.mxu0
    %v1892 = vadd.f32 %v1878, %v1891
    %1893 = vdwg.mxu0
    %1894 = vmatpush.bf16.msra.mxu0 %v1335
    %1895 = vmatpush.bf16.msra.mxu0 %v1331
    %1896 = vmatpush.bf16.msra.mxu0 %v1327
    %1897 = vmatpush.bf16.msra.mxu0 %v1323
    %1898 = vmatpush.bf16.msra.mxu0 %v1319
    %1899 = vmatpush.bf16.msra.mxu0 %v1315
    %1900 = vmatpush.bf16.msra.mxu0 %v1311
    %1901 = vmatpush.bf16.msra.mxu0 %v1307
    %1902 = vmatmul.bf16.gmra.mxu0 %v460
    %v1903 = vpop.f32.mrf.mxu0
    %v1904 = vadd.f32 %v1890, %v1903
    %v1905 = vpop.f32.mrf.mxu0
    %v1906 = vadd.f32 %v1892, %v1905
    %1907 = vdwg.mxu0
    %1908 = vmatpush.bf16.msra.mxu0 %v1367
    %1909 = vmatpush.bf16.msra.mxu0 %v1363
    %1910 = vmatpush.bf16.msra.mxu0 %v1359
    %1911 = vmatpush.bf16.msra.mxu0 %v1355
    %1912 = vmatpush.bf16.msra.mxu0 %v1351
    %1913 = vmatpush.bf16.msra.mxu0 %v1347
    %1914 = vmatpush.bf16.msra.mxu0 %v1343
    %1915 = vmatpush.bf16.msra.mxu0 %v1339
    %1916 = vmatmul.bf16.gmra.mxu0 %v461
    %v1917 = vpop.f32.mrf.mxu0
    %v1918 = vadd.f32 %v1904, %v1917
    %v1919 = vpop.f32.mrf.mxu0
    %v1920 = vadd.f32 %v1906, %v1919
    %1921 = vdwg.mxu0
    %1922 = vmatpush.bf16.msra.mxu0 %v1399
    %1923 = vmatpush.bf16.msra.mxu0 %v1395
    %1924 = vmatpush.bf16.msra.mxu0 %v1391
    %1925 = vmatpush.bf16.msra.mxu0 %v1387
    %1926 = vmatpush.bf16.msra.mxu0 %v1383
    %1927 = vmatpush.bf16.msra.mxu0 %v1379
    %1928 = vmatpush.bf16.msra.mxu0 %v1375
    %1929 = vmatpush.bf16.msra.mxu0 %v1371
    %1930 = vmatmul.bf16.gmra.mxu0 %v462
    %v1931 = vpop.f32.mrf.mxu0
    %v1932 = vadd.f32 %v1918, %v1931
    %v1933 = vpop.f32.mrf.mxu0
    %v1934 = vadd.f32 %v1920, %v1933
    %1935 = vdwg.mxu0
    %1936 = vmatpush.bf16.msra.mxu0 %v1431
    %1937 = vmatpush.bf16.msra.mxu0 %v1427
    %1938 = vmatpush.bf16.msra.mxu0 %v1423
    %1939 = vmatpush.bf16.msra.mxu0 %v1419
    %1940 = vmatpush.bf16.msra.mxu0 %v1415
    %1941 = vmatpush.bf16.msra.mxu0 %v1411
    %1942 = vmatpush.bf16.msra.mxu0 %v1407
    %1943 = vmatpush.bf16.msra.mxu0 %v1403
    %1944 = vmatmul.bf16.gmra.mxu0 %v463
    %v1945 = vpop.f32.mrf.mxu0
    %v1946 = vadd.f32 %v1932, %v1945
    %v1947 = vpop.f32.mrf.mxu0
    %v1948 = vadd.f32 %v1934, %v1947
    %1949 = vdwg.mxu0
    %1950 = vmatpush.bf16.msra.mxu0 %v1463
    %1951 = vmatpush.bf16.msra.mxu0 %v1459
    %1952 = vmatpush.bf16.msra.mxu0 %v1455
    %1953 = vmatpush.bf16.msra.mxu0 %v1451
    %1954 = vmatpush.bf16.msra.mxu0 %v1447
    %1955 = vmatpush.bf16.msra.mxu0 %v1443
    %1956 = vmatpush.bf16.msra.mxu0 %v1439
    %1957 = vmatpush.bf16.msra.mxu0 %v1435
    %1958 = vmatmul.bf16.gmra.mxu0 %v464
    %v1959 = vpop.f32.mrf.mxu0
    %v1960 = vadd.f32 %v1946, %v1959
    %v1961 = vpop.f32.mrf.mxu0
    %v1962 = vadd.f32 %v1948, %v1961
    %1963 = vdwg.mxu0
    %1964 = vmatpush.bf16.msra.mxu0 %v1495
    %1965 = vmatpush.bf16.msra.mxu0 %v1491
    %1966 = vmatpush.bf16.msra.mxu0 %v1487
    %1967 = vmatpush.bf16.msra.mxu0 %v1483
    %1968 = vmatpush.bf16.msra.mxu0 %v1479
    %1969 = vmatpush.bf16.msra.mxu0 %v1475
    %1970 = vmatpush.bf16.msra.mxu0 %v1471
    %1971 = vmatpush.bf16.msra.mxu0 %v1467
    %1972 = vmatmul.bf16.gmra.mxu0 %v465
    %v1973 = vpop.f32.mrf.mxu0
    %v1974 = vadd.f32 %v1960, %v1973
    %v1975 = vpop.f32.mrf.mxu0
    %v1976 = vadd.f32 %v1962, %v1975
    %1977 = vdwg.mxu0
    %1978 = vmatpush.bf16.msra.mxu0 %v1272
    %1979 = vmatpush.bf16.msra.mxu0 %v1268
    %1980 = vmatpush.bf16.msra.mxu0 %v1264
    %1981 = vmatpush.bf16.msra.mxu0 %v1260
    %1982 = vmatpush.bf16.msra.mxu0 %v1256
    %1983 = vmatpush.bf16.msra.mxu0 %v1252
    %1984 = vmatpush.bf16.msra.mxu0 %v1248
    %1985 = vmatpush.bf16.msra.mxu0 %v1244
    %1986 = vmatmul.bf16.gmra.mxu0 %v458
    %v1987 = vpop.f32.mrf.mxu0
    %v1988 = vadd.f32 %v428, %v1987
    %v1989 = vpop.f32.mrf.mxu0
    %v1990 = vadd.f32 %v428, %v1989
    %1991 = vdwg.mxu0
    %1992 = vmatpush.bf16.msra.mxu0 %v1304
    %1993 = vmatpush.bf16.msra.mxu0 %v1300
    %1994 = vmatpush.bf16.msra.mxu0 %v1296
    %1995 = vmatpush.bf16.msra.mxu0 %v1292
    %1996 = vmatpush.bf16.msra.mxu0 %v1288
    %1997 = vmatpush.bf16.msra.mxu0 %v1284
    %1998 = vmatpush.bf16.msra.mxu0 %v1280
    %1999 = vmatpush.bf16.msra.mxu0 %v1276
    %2000 = vmatmul.bf16.gmra.mxu0 %v459
    %v2001 = vpop.f32.mrf.mxu0
    %v2002 = vadd.f32 %v1988, %v2001
    %v2003 = vpop.f32.mrf.mxu0
    %v2004 = vadd.f32 %v1990, %v2003
    %2005 = vdwg.mxu0
    %2006 = vmatpush.bf16.msra.mxu0 %v1336
    %2007 = vmatpush.bf16.msra.mxu0 %v1332
    %2008 = vmatpush.bf16.msra.mxu0 %v1328
    %2009 = vmatpush.bf16.msra.mxu0 %v1324
    %2010 = vmatpush.bf16.msra.mxu0 %v1320
    %2011 = vmatpush.bf16.msra.mxu0 %v1316
    %2012 = vmatpush.bf16.msra.mxu0 %v1312
    %2013 = vmatpush.bf16.msra.mxu0 %v1308
    %2014 = vmatmul.bf16.gmra.mxu0 %v460
    %v2015 = vpop.f32.mrf.mxu0
    %v2016 = vadd.f32 %v2002, %v2015
    %v2017 = vpop.f32.mrf.mxu0
    %v2018 = vadd.f32 %v2004, %v2017
    %2019 = vdwg.mxu0
    %2020 = vmatpush.bf16.msra.mxu0 %v1368
    %2021 = vmatpush.bf16.msra.mxu0 %v1364
    %2022 = vmatpush.bf16.msra.mxu0 %v1360
    %2023 = vmatpush.bf16.msra.mxu0 %v1356
    %2024 = vmatpush.bf16.msra.mxu0 %v1352
    %2025 = vmatpush.bf16.msra.mxu0 %v1348
    %2026 = vmatpush.bf16.msra.mxu0 %v1344
    %2027 = vmatpush.bf16.msra.mxu0 %v1340
    %2028 = vmatmul.bf16.gmra.mxu0 %v461
    %v2029 = vpop.f32.mrf.mxu0
    %v2030 = vadd.f32 %v2016, %v2029
    %v2031 = vpop.f32.mrf.mxu0
    %v2032 = vadd.f32 %v2018, %v2031
    %2033 = vdwg.mxu0
    %2034 = vmatpush.bf16.msra.mxu0 %v1400
    %2035 = vmatpush.bf16.msra.mxu0 %v1396
    %2036 = vmatpush.bf16.msra.mxu0 %v1392
    %2037 = vmatpush.bf16.msra.mxu0 %v1388
    %2038 = vmatpush.bf16.msra.mxu0 %v1384
    %2039 = vmatpush.bf16.msra.mxu0 %v1380
    %2040 = vmatpush.bf16.msra.mxu0 %v1376
    %2041 = vmatpush.bf16.msra.mxu0 %v1372
    %2042 = vmatmul.bf16.gmra.mxu0 %v462
    %v2043 = vpop.f32.mrf.mxu0
    %v2044 = vadd.f32 %v2030, %v2043
    %v2045 = vpop.f32.mrf.mxu0
    %v2046 = vadd.f32 %v2032, %v2045
    %2047 = vdwg.mxu0
    %2048 = vmatpush.bf16.msra.mxu0 %v1432
    %2049 = vmatpush.bf16.msra.mxu0 %v1428
    %2050 = vmatpush.bf16.msra.mxu0 %v1424
    %2051 = vmatpush.bf16.msra.mxu0 %v1420
    %2052 = vmatpush.bf16.msra.mxu0 %v1416
    %2053 = vmatpush.bf16.msra.mxu0 %v1412
    %2054 = vmatpush.bf16.msra.mxu0 %v1408
    %2055 = vmatpush.bf16.msra.mxu0 %v1404
    %2056 = vmatmul.bf16.gmra.mxu0 %v463
    %v2057 = vpop.f32.mrf.mxu0
    %v2058 = vadd.f32 %v2044, %v2057
    %v2059 = vpop.f32.mrf.mxu0
    %v2060 = vadd.f32 %v2046, %v2059
    %2061 = vdwg.mxu0
    %2062 = vmatpush.bf16.msra.mxu0 %v1464
    %2063 = vmatpush.bf16.msra.mxu0 %v1460
    %2064 = vmatpush.bf16.msra.mxu0 %v1456
    %2065 = vmatpush.bf16.msra.mxu0 %v1452
    %2066 = vmatpush.bf16.msra.mxu0 %v1448
    %2067 = vmatpush.bf16.msra.mxu0 %v1444
    %2068 = vmatpush.bf16.msra.mxu0 %v1440
    %2069 = vmatpush.bf16.msra.mxu0 %v1436
    %2070 = vmatmul.bf16.gmra.mxu0 %v464
    %v2071 = vpop.f32.mrf.mxu0
    %v2072 = vadd.f32 %v2058, %v2071
    %v2073 = vpop.f32.mrf.mxu0
    %v2074 = vadd.f32 %v2060, %v2073
    %2075 = vdwg.mxu0
    %2076 = vmatpush.bf16.msra.mxu0 %v1496
    %2077 = vmatpush.bf16.msra.mxu0 %v1492
    %2078 = vmatpush.bf16.msra.mxu0 %v1488
    %2079 = vmatpush.bf16.msra.mxu0 %v1484
    %2080 = vmatpush.bf16.msra.mxu0 %v1480
    %2081 = vmatpush.bf16.msra.mxu0 %v1476
    %2082 = vmatpush.bf16.msra.mxu0 %v1472
    %2083 = vmatpush.bf16.msra.mxu0 %v1468
    %2084 = vmatmul.bf16.gmra.mxu0 %v465
    %v2085 = vpop.f32.mrf.mxu0
    %v2086 = vadd.f32 %v2072, %v2085
    %v2087 = vpop.f32.mrf.mxu0
    %v2088 = vadd.f32 %v2074, %v2087
    %2089 = vdwg.mxu0
    %2090 = vmatpush.bf16.msra.mxu0 %v1273
    %2091 = vmatpush.bf16.msra.mxu0 %v1269
    %2092 = vmatpush.bf16.msra.mxu0 %v1265
    %2093 = vmatpush.bf16.msra.mxu0 %v1261
    %2094 = vmatpush.bf16.msra.mxu0 %v1257
    %2095 = vmatpush.bf16.msra.mxu0 %v1253
    %2096 = vmatpush.bf16.msra.mxu0 %v1249
    %2097 = vmatpush.bf16.msra.mxu0 %v1245
    %2098 = vmatmul.bf16.gmra.mxu0 %v458
    %v2099 = vpop.f32.mrf.mxu0
    %v2100 = vadd.f32 %v429, %v2099
    %v2101 = vpop.f32.mrf.mxu0
    %v2102 = vadd.f32 %v429, %v2101
    %2103 = vdwg.mxu0
    %2104 = vmatpush.bf16.msra.mxu0 %v1305
    %2105 = vmatpush.bf16.msra.mxu0 %v1301
    %2106 = vmatpush.bf16.msra.mxu0 %v1297
    %2107 = vmatpush.bf16.msra.mxu0 %v1293
    %2108 = vmatpush.bf16.msra.mxu0 %v1289
    %2109 = vmatpush.bf16.msra.mxu0 %v1285
    %2110 = vmatpush.bf16.msra.mxu0 %v1281
    %2111 = vmatpush.bf16.msra.mxu0 %v1277
    %2112 = vmatmul.bf16.gmra.mxu0 %v459
    %v2113 = vpop.f32.mrf.mxu0
    %v2114 = vadd.f32 %v2100, %v2113
    %v2115 = vpop.f32.mrf.mxu0
    %v2116 = vadd.f32 %v2102, %v2115
    %2117 = vdwg.mxu0
    %2118 = vmatpush.bf16.msra.mxu0 %v1337
    %2119 = vmatpush.bf16.msra.mxu0 %v1333
    %2120 = vmatpush.bf16.msra.mxu0 %v1329
    %2121 = vmatpush.bf16.msra.mxu0 %v1325
    %2122 = vmatpush.bf16.msra.mxu0 %v1321
    %2123 = vmatpush.bf16.msra.mxu0 %v1317
    %2124 = vmatpush.bf16.msra.mxu0 %v1313
    %2125 = vmatpush.bf16.msra.mxu0 %v1309
    %2126 = vmatmul.bf16.gmra.mxu0 %v460
    %v2127 = vpop.f32.mrf.mxu0
    %v2128 = vadd.f32 %v2114, %v2127
    %v2129 = vpop.f32.mrf.mxu0
    %v2130 = vadd.f32 %v2116, %v2129
    %2131 = vdwg.mxu0
    %2132 = vmatpush.bf16.msra.mxu0 %v1369
    %2133 = vmatpush.bf16.msra.mxu0 %v1365
    %2134 = vmatpush.bf16.msra.mxu0 %v1361
    %2135 = vmatpush.bf16.msra.mxu0 %v1357
    %2136 = vmatpush.bf16.msra.mxu0 %v1353
    %2137 = vmatpush.bf16.msra.mxu0 %v1349
    %2138 = vmatpush.bf16.msra.mxu0 %v1345
    %2139 = vmatpush.bf16.msra.mxu0 %v1341
    %2140 = vmatmul.bf16.gmra.mxu0 %v461
    %v2141 = vpop.f32.mrf.mxu0
    %v2142 = vadd.f32 %v2128, %v2141
    %v2143 = vpop.f32.mrf.mxu0
    %v2144 = vadd.f32 %v2130, %v2143
    %2145 = vdwg.mxu0
    %2146 = vmatpush.bf16.msra.mxu0 %v1401
    %2147 = vmatpush.bf16.msra.mxu0 %v1397
    %2148 = vmatpush.bf16.msra.mxu0 %v1393
    %2149 = vmatpush.bf16.msra.mxu0 %v1389
    %2150 = vmatpush.bf16.msra.mxu0 %v1385
    %2151 = vmatpush.bf16.msra.mxu0 %v1381
    %2152 = vmatpush.bf16.msra.mxu0 %v1377
    %2153 = vmatpush.bf16.msra.mxu0 %v1373
    %2154 = vmatmul.bf16.gmra.mxu0 %v462
    %v2155 = vpop.f32.mrf.mxu0
    %v2156 = vadd.f32 %v2142, %v2155
    %v2157 = vpop.f32.mrf.mxu0
    %v2158 = vadd.f32 %v2144, %v2157
    %2159 = vdwg.mxu0
    %2160 = vmatpush.bf16.msra.mxu0 %v1433
    %2161 = vmatpush.bf16.msra.mxu0 %v1429
    %2162 = vmatpush.bf16.msra.mxu0 %v1425
    %2163 = vmatpush.bf16.msra.mxu0 %v1421
    %2164 = vmatpush.bf16.msra.mxu0 %v1417
    %2165 = vmatpush.bf16.msra.mxu0 %v1413
    %2166 = vmatpush.bf16.msra.mxu0 %v1409
    %2167 = vmatpush.bf16.msra.mxu0 %v1405
    %2168 = vmatmul.bf16.gmra.mxu0 %v463
    %v2169 = vpop.f32.mrf.mxu0
    %v2170 = vadd.f32 %v2156, %v2169
    %v2171 = vpop.f32.mrf.mxu0
    %v2172 = vadd.f32 %v2158, %v2171
    %2173 = vdwg.mxu0
    %2174 = vmatpush.bf16.msra.mxu0 %v1465
    %2175 = vmatpush.bf16.msra.mxu0 %v1461
    %2176 = vmatpush.bf16.msra.mxu0 %v1457
    %2177 = vmatpush.bf16.msra.mxu0 %v1453
    %2178 = vmatpush.bf16.msra.mxu0 %v1449
    %2179 = vmatpush.bf16.msra.mxu0 %v1445
    %2180 = vmatpush.bf16.msra.mxu0 %v1441
    %2181 = vmatpush.bf16.msra.mxu0 %v1437
    %2182 = vmatmul.bf16.gmra.mxu0 %v464
    %v2183 = vpop.f32.mrf.mxu0
    %v2184 = vadd.f32 %v2170, %v2183
    %v2185 = vpop.f32.mrf.mxu0
    %v2186 = vadd.f32 %v2172, %v2185
    %2187 = vdwg.mxu0
    %2188 = vmatpush.bf16.msra.mxu0 %v1497
    %2189 = vmatpush.bf16.msra.mxu0 %v1493
    %2190 = vmatpush.bf16.msra.mxu0 %v1489
    %2191 = vmatpush.bf16.msra.mxu0 %v1485
    %2192 = vmatpush.bf16.msra.mxu0 %v1481
    %2193 = vmatpush.bf16.msra.mxu0 %v1477
    %2194 = vmatpush.bf16.msra.mxu0 %v1473
    %2195 = vmatpush.bf16.msra.mxu0 %v1469
    %2196 = vmatmul.bf16.gmra.mxu0 %v465
    %v2197 = vpop.f32.mrf.mxu0
    %v2198 = vadd.f32 %v2184, %v2197
    %v2199 = vpop.f32.mrf.mxu0
    %v2200 = vadd.f32 %v2186, %v2199
    %2201 = vdwg.mxu0
    %v2202 = vpack.c.bf16 %v1974, %v1862
    %v2203 = vpack.c.bf16 %v2198, %v2086
    %v2204 = vpack.c.bf16 %v1976, %v1864
    %v2205 = vpack.c.bf16 %v2200, %v2088
    %v2206 = vunpack.c.l.bf16 %v2202
    %v2207 = vunpack.c.h.bf16 %v2202
    %v2208 = vunpack.c.l.bf16 %v2203
    %v2209 = vunpack.c.h.bf16 %v2203
    %v2210 = vunpack.c.l.bf16 %v2204
    %v2211 = vunpack.c.h.bf16 %v2204
    %v2212 = vunpack.c.l.bf16 %v2205
    %v2213 = vunpack.c.h.bf16 %v2205
    %v2214 = vmax.f32 %v2206, 0.0
    %v2215 = vmax.f32 %v2207, 0.0
    %v2216 = vmax.f32 %v2208, 0.0
    %v2217 = vmax.f32 %v2209, 0.0
    %v2218 = vmax.f32 %v2210, 0.0
    %v2219 = vmax.f32 %v2211, 0.0
    %v2220 = vmax.f32 %v2212, 0.0
    %v2221 = vmax.f32 %v2213, 0.0
    %v2222 = vpack.c.bf16 %v2218, %v2214
    %v2223 = vpack.c.bf16 %v2219, %v2215
    %v2224 = vpack.c.bf16 %v2220, %v2216
    %v2225 = vpack.c.bf16 %v2221, %v2217
    %v2226 = vld [vmem:[#allocation8] sm:$0xff]
    %v2227 = vld [vmem:[#allocation8 + $0x8] sm:$0xff]
    %v2228 = vld [vmem:[#allocation8 + $0x10] sm:$0xff]
    %v2229 = vld [vmem:[#allocation8 + $0x18] sm:$0xff]
    %v2230 = vld [vmem:[#allocation8 + $0x20] sm:$0xff]
    %v2231 = vld [vmem:[#allocation8 + $0x28] sm:$0xff]
    %v2232 = vld [vmem:[#allocation8 + $0x30] sm:$0xff]
    %v2233 = vld [vmem:[#allocation8 + $0x38] sm:$0xff]
    %v2234 = vld [vmem:[#allocation8 + $0x40] sm:$0xff]
    %v2235 = vld [vmem:[#allocation8 + $0x48] sm:$0xff]
    %v2236 = vld [vmem:[#allocation8 + $0x50] sm:$0xff]
    %v2237 = vld [vmem:[#allocation8 + $0x58] sm:$0xff]
    %v2238 = vld [vmem:[#allocation8 + $0x60] sm:$0xff]
    %v2239 = vld [vmem:[#allocation8 + $0x68] sm:$0xff]
    %v2240 = vld [vmem:[#allocation8 + $0x70] sm:$0xff]
    %v2241 = vld [vmem:[#allocation8 + $0x78] sm:$0xff]
    %v2242 = vld [vmem:[#allocation8 + $0x80] sm:$0xff]
    %v2243 = vld [vmem:[#allocation8 + $0x88] sm:$0xff]
    %v2244 = vld [vmem:[#allocation8 + $0x90] sm:$0xff]
    %v2245 = vld [vmem:[#allocation8 + $0x98] sm:$0xff]
    %v2246 = vld [vmem:[#allocation8 + $0xa0] sm:$0xff]
    %v2247 = vld [vmem:[#allocation8 + $0xa8] sm:$0xff]
    %v2248 = vld [vmem:[#allocation8 + $0xb0] sm:$0xff]
    %v2249 = vld [vmem:[#allocation8 + $0xb8] sm:$0xff]
    %v2250 = vld [vmem:[#allocation8 + $0xc0] sm:$0xff]
    %v2251 = vld [vmem:[#allocation8 + $0xc8] sm:$0xff]
    %v2252 = vld [vmem:[#allocation8 + $0xd0] sm:$0xff]
    %v2253 = vld [vmem:[#allocation8 + $0xd8] sm:$0xff]
    %v2254 = vld [vmem:[#allocation8 + $0xe0] sm:$0xff]
    %v2255 = vld [vmem:[#allocation8 + $0xe8] sm:$0xff]
    %v2256 = vld [vmem:[#allocation8 + $0xf0] sm:$0xff]
    %v2257 = vld [vmem:[#allocation8 + $0xf8] sm:$0xff]
    %v2258 = vld [vmem:[#allocation8 + $0x100] sm:$0xff]
    %v2259 = vld [vmem:[#allocation8 + $0x108] sm:$0xff]
    %v2260 = vld [vmem:[#allocation8 + $0x110] sm:$0xff]
    %v2261 = vld [vmem:[#allocation8 + $0x118] sm:$0xff]
    %v2262 = vld [vmem:[#allocation8 + $0x120] sm:$0xff]
    %v2263 = vld [vmem:[#allocation8 + $0x128] sm:$0xff]
    %v2264 = vld [vmem:[#allocation8 + $0x130] sm:$0xff]
    %v2265 = vld [vmem:[#allocation8 + $0x138] sm:$0xff]
    %v2266 = vld [vmem:[#allocation8 + $0x140] sm:$0xff]
    %v2267 = vld [vmem:[#allocation8 + $0x148] sm:$0xff]
    %v2268 = vld [vmem:[#allocation8 + $0x150] sm:$0xff]
    %v2269 = vld [vmem:[#allocation8 + $0x158] sm:$0xff]
    %v2270 = vld [vmem:[#allocation8 + $0x160] sm:$0xff]
    %v2271 = vld [vmem:[#allocation8 + $0x168] sm:$0xff]
    %v2272 = vld [vmem:[#allocation8 + $0x170] sm:$0xff]
    %v2273 = vld [vmem:[#allocation8 + $0x178] sm:$0xff]
    %v2274 = vld [vmem:[#allocation8 + $0x180] sm:$0xff]
    %v2275 = vld [vmem:[#allocation8 + $0x188] sm:$0xff]
    %v2276 = vld [vmem:[#allocation8 + $0x190] sm:$0xff]
    %v2277 = vld [vmem:[#allocation8 + $0x198] sm:$0xff]
    %v2278 = vld [vmem:[#allocation8 + $0x1a0] sm:$0xff]
    %v2279 = vld [vmem:[#allocation8 + $0x1a8] sm:$0xff]
    %v2280 = vld [vmem:[#allocation8 + $0x1b0] sm:$0xff]
    %v2281 = vld [vmem:[#allocation8 + $0x1b8] sm:$0xff]
    %v2282 = vld [vmem:[#allocation8 + $0x1c0] sm:$0xff]
    %v2283 = vld [vmem:[#allocation8 + $0x1c8] sm:$0xff]
    %v2284 = vld [vmem:[#allocation8 + $0x1d0] sm:$0xff]
    %v2285 = vld [vmem:[#allocation8 + $0x1d8] sm:$0xff]
    %v2286 = vld [vmem:[#allocation8 + $0x1e0] sm:$0xff]
    %v2287 = vld [vmem:[#allocation8 + $0x1e8] sm:$0xff]
    %v2288 = vld [vmem:[#allocation8 + $0x1f0] sm:$0xff]
    %v2289 = vld [vmem:[#allocation8 + $0x1f8] sm:$0xff]
    %v2290 = vld [vmem:[#allocation8 + $0x200] sm:$0xff]
    %v2291 = vld [vmem:[#allocation8 + $0x208] sm:$0xff]
    %v2292 = vld [vmem:[#allocation8 + $0x210] sm:$0xff]
    %v2293 = vld [vmem:[#allocation8 + $0x218] sm:$0xff]
    %v2294 = vld [vmem:[#allocation8 + $0x220] sm:$0xff]
    %v2295 = vld [vmem:[#allocation8 + $0x228] sm:$0xff]
    %v2296 = vld [vmem:[#allocation8 + $0x230] sm:$0xff]
    %v2297 = vld [vmem:[#allocation8 + $0x238] sm:$0xff]
    %v2298 = vld [vmem:[#allocation8 + $0x240] sm:$0xff]
    %v2299 = vld [vmem:[#allocation8 + $0x248] sm:$0xff]
    %v2300 = vld [vmem:[#allocation8 + $0x250] sm:$0xff]
    %v2301 = vld [vmem:[#allocation8 + $0x258] sm:$0xff]
    %v2302 = vld [vmem:[#allocation8 + $0x260] sm:$0xff]
    %v2303 = vld [vmem:[#allocation8 + $0x268] sm:$0xff]
    %v2304 = vld [vmem:[#allocation8 + $0x270] sm:$0xff]
    %v2305 = vld [vmem:[#allocation8 + $0x278] sm:$0xff]
    %v2306 = vld [vmem:[#allocation8 + $0x280] sm:$0xff]
    %v2307 = vld [vmem:[#allocation8 + $0x288] sm:$0xff]
    %v2308 = vld [vmem:[#allocation8 + $0x290] sm:$0xff]
    %v2309 = vld [vmem:[#allocation8 + $0x298] sm:$0xff]
    %v2310 = vld [vmem:[#allocation8 + $0x2a0] sm:$0xff]
    %v2311 = vld [vmem:[#allocation8 + $0x2a8] sm:$0xff]
    %v2312 = vld [vmem:[#allocation8 + $0x2b0] sm:$0xff]
    %v2313 = vld [vmem:[#allocation8 + $0x2b8] sm:$0xff]
    %v2314 = vld [vmem:[#allocation8 + $0x2c0] sm:$0xff]
    %v2315 = vld [vmem:[#allocation8 + $0x2c8] sm:$0xff]
    %v2316 = vld [vmem:[#allocation8 + $0x2d0] sm:$0xff]
    %v2317 = vld [vmem:[#allocation8 + $0x2d8] sm:$0xff]
    %v2318 = vld [vmem:[#allocation8 + $0x2e0] sm:$0xff]
    %v2319 = vld [vmem:[#allocation8 + $0x2e8] sm:$0xff]
    %v2320 = vld [vmem:[#allocation8 + $0x2f0] sm:$0xff]
    %v2321 = vld [vmem:[#allocation8 + $0x2f8] sm:$0xff]
    %v2322 = vld [vmem:[#allocation8 + $0x300] sm:$0xff]
    %v2323 = vld [vmem:[#allocation8 + $0x308] sm:$0xff]
    %v2324 = vld [vmem:[#allocation8 + $0x310] sm:$0xff]
    %v2325 = vld [vmem:[#allocation8 + $0x318] sm:$0xff]
    %v2326 = vld [vmem:[#allocation8 + $0x320] sm:$0xff]
    %v2327 = vld [vmem:[#allocation8 + $0x328] sm:$0xff]
    %v2328 = vld [vmem:[#allocation8 + $0x330] sm:$0xff]
    %v2329 = vld [vmem:[#allocation8 + $0x338] sm:$0xff]
    %v2330 = vld [vmem:[#allocation8 + $0x340] sm:$0xff]
    %v2331 = vld [vmem:[#allocation8 + $0x348] sm:$0xff]
    %v2332 = vld [vmem:[#allocation8 + $0x350] sm:$0xff]
    %v2333 = vld [vmem:[#allocation8 + $0x358] sm:$0xff]
    %v2334 = vld [vmem:[#allocation8 + $0x360] sm:$0xff]
    %v2335 = vld [vmem:[#allocation8 + $0x368] sm:$0xff]
    %v2336 = vld [vmem:[#allocation8 + $0x370] sm:$0xff]
    %v2337 = vld [vmem:[#allocation8 + $0x378] sm:$0xff]
    %v2338 = vld [vmem:[#allocation8 + $0x380] sm:$0xff]
    %v2339 = vld [vmem:[#allocation8 + $0x388] sm:$0xff]
    %v2340 = vld [vmem:[#allocation8 + $0x390] sm:$0xff]
    %v2341 = vld [vmem:[#allocation8 + $0x398] sm:$0xff]
    %v2342 = vld [vmem:[#allocation8 + $0x3a0] sm:$0xff]
    %v2343 = vld [vmem:[#allocation8 + $0x3a8] sm:$0xff]
    %v2344 = vld [vmem:[#allocation8 + $0x3b0] sm:$0xff]
    %v2345 = vld [vmem:[#allocation8 + $0x3b8] sm:$0xff]
    %v2346 = vld [vmem:[#allocation8 + $0x3c0] sm:$0xff]
    %v2347 = vld [vmem:[#allocation8 + $0x3c8] sm:$0xff]
    %v2348 = vld [vmem:[#allocation8 + $0x3d0] sm:$0xff]
    %v2349 = vld [vmem:[#allocation8 + $0x3d8] sm:$0xff]
    %v2350 = vld [vmem:[#allocation8 + $0x3e0] sm:$0xff]
    %v2351 = vld [vmem:[#allocation8 + $0x3e8] sm:$0xff]
    %v2352 = vld [vmem:[#allocation8 + $0x3f0] sm:$0xff]
    %v2353 = vld [vmem:[#allocation8 + $0x3f8] sm:$0xff]
    %v2354 = vld [vmem:[#allocation10] sm:$0xf]
    %v2356 = vperm.slane %v2354, 0
    %v2357 = vperm.slane %v2354, 1
    %v2358 = vperm.slane %v2354, 2
    %v2359 = vperm.slane %v2354, 3
    %v2492 = vunpack.c.l.b16 %v2226
    %v2493 = vunpack.c.h.b16 %v2226
    %v2494 = vunpack.c.l.b16 %v2227
    %v2495 = vunpack.c.h.b16 %v2227
    %v2496 = vunpack.c.l.b16 %v2228
    %v2497 = vunpack.c.h.b16 %v2228
    %v2498 = vunpack.c.l.b16 %v2229
    %v2499 = vunpack.c.h.b16 %v2229
    %v2500 = vunpack.c.l.b16 %v2230
    %v2501 = vunpack.c.h.b16 %v2230
    %v2502 = vunpack.c.l.b16 %v2231
    %v2503 = vunpack.c.h.b16 %v2231
    %v2504 = vunpack.c.l.b16 %v2232
    %v2505 = vunpack.c.h.b16 %v2232
    %v2506 = vunpack.c.l.b16 %v2233
    %v2507 = vunpack.c.h.b16 %v2233
    %v2508 = vunpack.c.l.b16 %v2234
    %v2509 = vunpack.c.h.b16 %v2234
    %v2510 = vunpack.c.l.b16 %v2235
    %v2511 = vunpack.c.h.b16 %v2235
    %v2512 = vunpack.c.l.b16 %v2236
    %v2513 = vunpack.c.h.b16 %v2236
    %v2514 = vunpack.c.l.b16 %v2237
    %v2515 = vunpack.c.h.b16 %v2237
    %v2516 = vunpack.c.l.b16 %v2238
    %v2517 = vunpack.c.h.b16 %v2238
    %v2518 = vunpack.c.l.b16 %v2239
    %v2519 = vunpack.c.h.b16 %v2239
    %v2520 = vunpack.c.l.b16 %v2240
    %v2521 = vunpack.c.h.b16 %v2240
    %v2522 = vunpack.c.l.b16 %v2241
    %v2523 = vunpack.c.h.b16 %v2241
    %v2524 = vunpack.c.l.b16 %v2242
    %v2525 = vunpack.c.h.b16 %v2242
    %v2526 = vunpack.c.l.b16 %v2243
    %v2527 = vunpack.c.h.b16 %v2243
    %v2528 = vunpack.c.l.b16 %v2244
    %v2529 = vunpack.c.h.b16 %v2244
    %v2530 = vunpack.c.l.b16 %v2245
    %v2531 = vunpack.c.h.b16 %v2245
    %v2532 = vunpack.c.l.b16 %v2246
    %v2533 = vunpack.c.h.b16 %v2246
    %v2534 = vunpack.c.l.b16 %v2247
    %v2535 = vunpack.c.h.b16 %v2247
    %v2536 = vunpack.c.l.b16 %v2248
    %v2537 = vunpack.c.h.b16 %v2248
    %v2538 = vunpack.c.l.b16 %v2249
    %v2539 = vunpack.c.h.b16 %v2249
    %v2540 = vunpack.c.l.b16 %v2250
    %v2541 = vunpack.c.h.b16 %v2250
    %v2542 = vunpack.c.l.b16 %v2251
    %v2543 = vunpack.c.h.b16 %v2251
    %v2544 = vunpack.c.l.b16 %v2252
    %v2545 = vunpack.c.h.b16 %v2252
    %v2546 = vunpack.c.l.b16 %v2253
    %v2547 = vunpack.c.h.b16 %v2253
    %v2548 = vunpack.c.l.b16 %v2254
    %v2549 = vunpack.c.h.b16 %v2254
    %v2550 = vunpack.c.l.b16 %v2255
    %v2551 = vunpack.c.h.b16 %v2255
    %v2552 = vunpack.c.l.b16 %v2256
    %v2553 = vunpack.c.h.b16 %v2256
    %v2554 = vunpack.c.l.b16 %v2257
    %v2555 = vunpack.c.h.b16 %v2257
    %v2556 = vunpack.c.l.b16 %v2258
    %v2557 = vunpack.c.h.b16 %v2258
    %v2558 = vunpack.c.l.b16 %v2259
    %v2559 = vunpack.c.h.b16 %v2259
    %v2560 = vunpack.c.l.b16 %v2260
    %v2561 = vunpack.c.h.b16 %v2260
    %v2562 = vunpack.c.l.b16 %v2261
    %v2563 = vunpack.c.h.b16 %v2261
    %v2564 = vunpack.c.l.b16 %v2262
    %v2565 = vunpack.c.h.b16 %v2262
    %v2566 = vunpack.c.l.b16 %v2263
    %v2567 = vunpack.c.h.b16 %v2263
    %v2568 = vunpack.c.l.b16 %v2264
    %v2569 = vunpack.c.h.b16 %v2264
    %v2570 = vunpack.c.l.b16 %v2265
    %v2571 = vunpack.c.h.b16 %v2265
    %v2572 = vunpack.c.l.b16 %v2266
    %v2573 = vunpack.c.h.b16 %v2266
    %v2574 = vunpack.c.l.b16 %v2267
    %v2575 = vunpack.c.h.b16 %v2267
    %v2576 = vunpack.c.l.b16 %v2268
    %v2577 = vunpack.c.h.b16 %v2268
    %v2578 = vunpack.c.l.b16 %v2269
    %v2579 = vunpack.c.h.b16 %v2269
    %v2580 = vunpack.c.l.b16 %v2270
    %v2581 = vunpack.c.h.b16 %v2270
    %v2582 = vunpack.c.l.b16 %v2271
    %v2583 = vunpack.c.h.b16 %v2271
    %v2584 = vunpack.c.l.b16 %v2272
    %v2585 = vunpack.c.h.b16 %v2272
    %v2586 = vunpack.c.l.b16 %v2273
    %v2587 = vunpack.c.h.b16 %v2273
    %v2588 = vunpack.c.l.b16 %v2274
    %v2589 = vunpack.c.h.b16 %v2274
    %v2590 = vunpack.c.l.b16 %v2275
    %v2591 = vunpack.c.h.b16 %v2275
    %v2592 = vunpack.c.l.b16 %v2276
    %v2593 = vunpack.c.h.b16 %v2276
    %v2594 = vunpack.c.l.b16 %v2277
    %v2595 = vunpack.c.h.b16 %v2277
    %v2596 = vunpack.c.l.b16 %v2278
    %v2597 = vunpack.c.h.b16 %v2278
    %v2598 = vunpack.c.l.b16 %v2279
    %v2599 = vunpack.c.h.b16 %v2279
    %v2600 = vunpack.c.l.b16 %v2280
    %v2601 = vunpack.c.h.b16 %v2280
    %v2602 = vunpack.c.l.b16 %v2281
    %v2603 = vunpack.c.h.b16 %v2281
    %v2604 = vunpack.c.l.b16 %v2282
    %v2605 = vunpack.c.h.b16 %v2282
    %v2606 = vunpack.c.l.b16 %v2283
    %v2607 = vunpack.c.h.b16 %v2283
    %v2608 = vunpack.c.l.b16 %v2284
    %v2609 = vunpack.c.h.b16 %v2284
    %v2610 = vunpack.c.l.b16 %v2285
    %v2611 = vunpack.c.h.b16 %v2285
    %v2612 = vunpack.c.l.b16 %v2286
    %v2613 = vunpack.c.h.b16 %v2286
    %v2614 = vunpack.c.l.b16 %v2287
    %v2615 = vunpack.c.h.b16 %v2287
    %v2616 = vunpack.c.l.b16 %v2288
    %v2617 = vunpack.c.h.b16 %v2288
    %v2618 = vunpack.c.l.b16 %v2289
    %v2619 = vunpack.c.h.b16 %v2289
    %v2620 = vunpack.c.l.b16 %v2290
    %v2621 = vunpack.c.h.b16 %v2290
    %v2622 = vunpack.c.l.b16 %v2291
    %v2623 = vunpack.c.h.b16 %v2291
    %v2624 = vunpack.c.l.b16 %v2292
    %v2625 = vunpack.c.h.b16 %v2292
    %v2626 = vunpack.c.l.b16 %v2293
    %v2627 = vunpack.c.h.b16 %v2293
    %v2628 = vunpack.c.l.b16 %v2294
    %v2629 = vunpack.c.h.b16 %v2294
    %v2630 = vunpack.c.l.b16 %v2295
    %v2631 = vunpack.c.h.b16 %v2295
    %v2632 = vunpack.c.l.b16 %v2296
    %v2633 = vunpack.c.h.b16 %v2296
    %v2634 = vunpack.c.l.b16 %v2297
    %v2635 = vunpack.c.h.b16 %v2297
    %v2636 = vunpack.c.l.b16 %v2298
    %v2637 = vunpack.c.h.b16 %v2298
    %v2638 = vunpack.c.l.b16 %v2299
    %v2639 = vunpack.c.h.b16 %v2299
    %v2640 = vunpack.c.l.b16 %v2300
    %v2641 = vunpack.c.h.b16 %v2300
    %v2642 = vunpack.c.l.b16 %v2301
    %v2643 = vunpack.c.h.b16 %v2301
    %v2644 = vunpack.c.l.b16 %v2302
    %v2645 = vunpack.c.h.b16 %v2302
    %v2646 = vunpack.c.l.b16 %v2303
    %v2647 = vunpack.c.h.b16 %v2303
    %v2648 = vunpack.c.l.b16 %v2304
    %v2649 = vunpack.c.h.b16 %v2304
    %v2650 = vunpack.c.l.b16 %v2305
    %v2651 = vunpack.c.h.b16 %v2305
    %v2652 = vunpack.c.l.b16 %v2306
    %v2653 = vunpack.c.h.b16 %v2306
    %v2654 = vunpack.c.l.b16 %v2307
    %v2655 = vunpack.c.h.b16 %v2307
    %v2656 = vunpack.c.l.b16 %v2308
    %v2657 = vunpack.c.h.b16 %v2308
    %v2658 = vunpack.c.l.b16 %v2309
    %v2659 = vunpack.c.h.b16 %v2309
    %v2660 = vunpack.c.l.b16 %v2310
    %v2661 = vunpack.c.h.b16 %v2310
    %v2662 = vunpack.c.l.b16 %v2311
    %v2663 = vunpack.c.h.b16 %v2311
    %v2664 = vunpack.c.l.b16 %v2312
    %v2665 = vunpack.c.h.b16 %v2312
    %v2666 = vunpack.c.l.b16 %v2313
    %v2667 = vunpack.c.h.b16 %v2313
    %v2668 = vunpack.c.l.b16 %v2314
    %v2669 = vunpack.c.h.b16 %v2314
    %v2670 = vunpack.c.l.b16 %v2315
    %v2671 = vunpack.c.h.b16 %v2315
    %v2672 = vunpack.c.l.b16 %v2316
    %v2673 = vunpack.c.h.b16 %v2316
    %v2674 = vunpack.c.l.b16 %v2317
    %v2675 = vunpack.c.h.b16 %v2317
    %v2676 = vunpack.c.l.b16 %v2318
    %v2677 = vunpack.c.h.b16 %v2318
    %v2678 = vunpack.c.l.b16 %v2319
    %v2679 = vunpack.c.h.b16 %v2319
    %v2680 = vunpack.c.l.b16 %v2320
    %v2681 = vunpack.c.h.b16 %v2320
    %v2682 = vunpack.c.l.b16 %v2321
    %v2683 = vunpack.c.h.b16 %v2321
    %v2684 = vunpack.c.l.b16 %v2322
    %v2685 = vunpack.c.h.b16 %v2322
    %v2686 = vunpack.c.l.b16 %v2323
    %v2687 = vunpack.c.h.b16 %v2323
    %v2688 = vunpack.c.l.b16 %v2324
    %v2689 = vunpack.c.h.b16 %v2324
    %v2690 = vunpack.c.l.b16 %v2325
    %v2691 = vunpack.c.h.b16 %v2325
    %v2692 = vunpack.c.l.b16 %v2326
    %v2693 = vunpack.c.h.b16 %v2326
    %v2694 = vunpack.c.l.b16 %v2327
    %v2695 = vunpack.c.h.b16 %v2327
    %v2696 = vunpack.c.l.b16 %v2328
    %v2697 = vunpack.c.h.b16 %v2328
    %v2698 = vunpack.c.l.b16 %v2329
    %v2699 = vunpack.c.h.b16 %v2329
    %v2700 = vunpack.c.l.b16 %v2330
    %v2701 = vunpack.c.h.b16 %v2330
    %v2702 = vunpack.c.l.b16 %v2331
    %v2703 = vunpack.c.h.b16 %v2331
    %v2704 = vunpack.c.l.b16 %v2332
    %v2705 = vunpack.c.h.b16 %v2332
    %v2706 = vunpack.c.l.b16 %v2333
    %v2707 = vunpack.c.h.b16 %v2333
    %v2708 = vunpack.c.l.b16 %v2334
    %v2709 = vunpack.c.h.b16 %v2334
    %v2710 = vunpack.c.l.b16 %v2335
    %v2711 = vunpack.c.h.b16 %v2335
    %v2712 = vunpack.c.l.b16 %v2336
    %v2713 = vunpack.c.h.b16 %v2336
    %v2714 = vunpack.c.l.b16 %v2337
    %v2715 = vunpack.c.h.b16 %v2337
    %v2716 = vunpack.c.l.b16 %v2338
    %v2717 = vunpack.c.h.b16 %v2338
    %v2718 = vunpack.c.l.b16 %v2339
    %v2719 = vunpack.c.h.b16 %v2339
    %v2720 = vunpack.c.l.b16 %v2340
    %v2721 = vunpack.c.h.b16 %v2340
    %v2722 = vunpack.c.l.b16 %v2341
    %v2723 = vunpack.c.h.b16 %v2341
    %v2724 = vunpack.c.l.b16 %v2342
    %v2725 = vunpack.c.h.b16 %v2342
    %v2726 = vunpack.c.l.b16 %v2343
    %v2727 = vunpack.c.h.b16 %v2343
    %v2728 = vunpack.c.l.b16 %v2344
    %v2729 = vunpack.c.h.b16 %v2344
    %v2730 = vunpack.c.l.b16 %v2345
    %v2731 = vunpack.c.h.b16 %v2345
    %v2732 = vunpack.c.l.b16 %v2346
    %v2733 = vunpack.c.h.b16 %v2346
    %v2734 = vunpack.c.l.b16 %v2347
    %v2735 = vunpack.c.h.b16 %v2347
    %v2736 = vunpack.c.l.b16 %v2348
    %v2737 = vunpack.c.h.b16 %v2348
    %v2738 = vunpack.c.l.b16 %v2349
    %v2739 = vunpack.c.h.b16 %v2349
    %v2740 = vunpack.c.l.b16 %v2350
    %v2741 = vunpack.c.h.b16 %v2350
    %v2742 = vunpack.c.l.b16 %v2351
    %v2743 = vunpack.c.h.b16 %v2351
    %v2744 = vunpack.c.l.b16 %v2352
    %v2745 = vunpack.c.h.b16 %v2352
    %v2746 = vunpack.c.l.b16 %v2353
    %v2747 = vunpack.c.h.b16 %v2353
    %v2748 = vpack.c.b16 %v2496, %v2492
    %v2749 = vpack.c.b16 %v2497, %v2493
    %v2750 = vpack.c.b16 %v2498, %v2494
    %v2751 = vpack.c.b16 %v2499, %v2495
    %v2752 = vpack.c.b16 %v2504, %v2500
    %v2753 = vpack.c.b16 %v2505, %v2501
    %v2754 = vpack.c.b16 %v2506, %v2502
    %v2755 = vpack.c.b16 %v2507, %v2503
    %v2756 = vpack.c.b16 %v2512, %v2508
    %v2757 = vpack.c.b16 %v2513, %v2509
    %v2758 = vpack.c.b16 %v2514, %v2510
    %v2759 = vpack.c.b16 %v2515, %v2511
    %v2760 = vpack.c.b16 %v2520, %v2516
    %v2761 = vpack.c.b16 %v2521, %v2517
    %v2762 = vpack.c.b16 %v2522, %v2518
    %v2763 = vpack.c.b16 %v2523, %v2519
    %v2764 = vpack.c.b16 %v2528, %v2524
    %v2765 = vpack.c.b16 %v2529, %v2525
    %v2766 = vpack.c.b16 %v2530, %v2526
    %v2767 = vpack.c.b16 %v2531, %v2527
    %v2768 = vpack.c.b16 %v2536, %v2532
    %v2769 = vpack.c.b16 %v2537, %v2533
    %v2770 = vpack.c.b16 %v2538, %v2534
    %v2771 = vpack.c.b16 %v2539, %v2535
    %v2772 = vpack.c.b16 %v2544, %v2540
    %v2773 = vpack.c.b16 %v2545, %v2541
    %v2774 = vpack.c.b16 %v2546, %v2542
    %v2775 = vpack.c.b16 %v2547, %v2543
    %v2776 = vpack.c.b16 %v2552, %v2548
    %v2777 = vpack.c.b16 %v2553, %v2549
    %v2778 = vpack.c.b16 %v2554, %v2550
    %v2779 = vpack.c.b16 %v2555, %v2551
    %v2780 = vpack.c.b16 %v2560, %v2556
    %v2781 = vpack.c.b16 %v2561, %v2557
    %v2782 = vpack.c.b16 %v2562, %v2558
    %v2783 = vpack.c.b16 %v2563, %v2559
    %v2784 = vpack.c.b16 %v2568, %v2564
    %v2785 = vpack.c.b16 %v2569, %v2565
    %v2786 = vpack.c.b16 %v2570, %v2566
    %v2787 = vpack.c.b16 %v2571, %v2567
    %v2788 = vpack.c.b16 %v2576, %v2572
    %v2789 = vpack.c.b16 %v2577, %v2573
    %v2790 = vpack.c.b16 %v2578, %v2574
    %v2791 = vpack.c.b16 %v2579, %v2575
    %v2792 = vpack.c.b16 %v2584, %v2580
    %v2793 = vpack.c.b16 %v2585, %v2581
    %v2794 = vpack.c.b16 %v2586, %v2582
    %v2795 = vpack.c.b16 %v2587, %v2583
    %v2796 = vpack.c.b16 %v2592, %v2588
    %v2797 = vpack.c.b16 %v2593, %v2589
    %v2798 = vpack.c.b16 %v2594, %v2590
    %v2799 = vpack.c.b16 %v2595, %v2591
    %v2800 = vpack.c.b16 %v2600, %v2596
    %v2801 = vpack.c.b16 %v2601, %v2597
    %v2802 = vpack.c.b16 %v2602, %v2598
    %v2803 = vpack.c.b16 %v2603, %v2599
    %v2804 = vpack.c.b16 %v2608, %v2604
    %v2805 = vpack.c.b16 %v2609, %v2605
    %v2806 = vpack.c.b16 %v2610, %v2606
    %v2807 = vpack.c.b16 %v2611, %v2607
    %v2808 = vpack.c.b16 %v2616, %v2612
    %v2809 = vpack.c.b16 %v2617, %v2613
    %v2810 = vpack.c.b16 %v2618, %v2614
    %v2811 = vpack.c.b16 %v2619, %v2615
    %v2812 = vpack.c.b16 %v2624, %v2620
    %v2813 = vpack.c.b16 %v2625, %v2621
    %v2814 = vpack.c.b16 %v2626, %v2622
    %v2815 = vpack.c.b16 %v2627, %v2623
    %v2816 = vpack.c.b16 %v2632, %v2628
    %v2817 = vpack.c.b16 %v2633, %v2629
    %v2818 = vpack.c.b16 %v2634, %v2630
    %v2819 = vpack.c.b16 %v2635, %v2631
    %v2820 = vpack.c.b16 %v2640, %v2636
    %v2821 = vpack.c.b16 %v2641, %v2637
    %v2822 = vpack.c.b16 %v2642, %v2638
    %v2823 = vpack.c.b16 %v2643, %v2639
    %v2824 = vpack.c.b16 %v2648, %v2644
    %v2825 = vpack.c.b16 %v2649, %v2645
    %v2826 = vpack.c.b16 %v2650, %v2646
    %v2827 = vpack.c.b16 %v2651, %v2647
    %v2828 = vpack.c.b16 %v2656, %v2652
    %v2829 = vpack.c.b16 %v2657, %v2653
    %v2830 = vpack.c.b16 %v2658, %v2654
    %v2831 = vpack.c.b16 %v2659, %v2655
    %v2832 = vpack.c.b16 %v2664, %v2660
    %v2833 = vpack.c.b16 %v2665, %v2661
    %v2834 = vpack.c.b16 %v2666, %v2662
    %v2835 = vpack.c.b16 %v2667, %v2663
    %v2836 = vpack.c.b16 %v2672, %v2668
    %v2837 = vpack.c.b16 %v2673, %v2669
    %v2838 = vpack.c.b16 %v2674, %v2670
    %v2839 = vpack.c.b16 %v2675, %v2671
    %v2840 = vpack.c.b16 %v2680, %v2676
    %v2841 = vpack.c.b16 %v2681, %v2677
    %v2842 = vpack.c.b16 %v2682, %v2678
    %v2843 = vpack.c.b16 %v2683, %v2679
    %v2844 = vpack.c.b16 %v2688, %v2684
    %v2845 = vpack.c.b16 %v2689, %v2685
    %v2846 = vpack.c.b16 %v2690, %v2686
    %v2847 = vpack.c.b16 %v2691, %v2687
    %v2848 = vpack.c.b16 %v2696, %v2692
    %v2849 = vpack.c.b16 %v2697, %v2693
    %v2850 = vpack.c.b16 %v2698, %v2694
    %v2851 = vpack.c.b16 %v2699, %v2695
    %v2852 = vpack.c.b16 %v2704, %v2700
    %v2853 = vpack.c.b16 %v2705, %v2701
    %v2854 = vpack.c.b16 %v2706, %v2702
    %v2855 = vpack.c.b16 %v2707, %v2703
    %v2856 = vpack.c.b16 %v2712, %v2708
    %v2857 = vpack.c.b16 %v2713, %v2709
    %v2858 = vpack.c.b16 %v2714, %v2710
    %v2859 = vpack.c.b16 %v2715, %v2711
    %v2860 = vpack.c.b16 %v2720, %v2716
    %v2861 = vpack.c.b16 %v2721, %v2717
    %v2862 = vpack.c.b16 %v2722, %v2718
    %v2863 = vpack.c.b16 %v2723, %v2719
    %v2864 = vpack.c.b16 %v2728, %v2724
    %v2865 = vpack.c.b16 %v2729, %v2725
    %v2866 = vpack.c.b16 %v2730, %v2726
    %v2867 = vpack.c.b16 %v2731, %v2727
    %v2868 = vpack.c.b16 %v2736, %v2732
    %v2869 = vpack.c.b16 %v2737, %v2733
    %v2870 = vpack.c.b16 %v2738, %v2734
    %v2871 = vpack.c.b16 %v2739, %v2735
    %v2872 = vpack.c.b16 %v2744, %v2740
    %v2873 = vpack.c.b16 %v2745, %v2741
    %v2874 = vpack.c.b16 %v2746, %v2742
    %v2875 = vpack.c.b16 %v2747, %v2743
    %3004 = vmatpush.bf16.msra.mxu0 %v2776
    %3005 = vmatpush.bf16.msra.mxu0 %v2772
    %3006 = vmatpush.bf16.msra.mxu0 %v2768
    %3007 = vmatpush.bf16.msra.mxu0 %v2764
    %3008 = vmatpush.bf16.msra.mxu0 %v2760
    %3009 = vmatpush.bf16.msra.mxu0 %v2756
    %3010 = vmatpush.bf16.msra.mxu0 %v2752
    %3011 = vmatpush.bf16.msra.mxu0 %v2748
    %3012 = vmatmul.bf16.gmra.mxu0 %v2222
    %v3013 = vpop.f32.mrf.mxu0
    %v3014 = vadd.f32 %v2356, %v3013
    %v3015 = vpop.f32.mrf.mxu0
    %v3016 = vadd.f32 %v2356, %v3015
    %3017 = vdwg.mxu0
    %3018 = vmatpush.bf16.msra.mxu0 %v2808
    %3019 = vmatpush.bf16.msra.mxu0 %v2804
    %3020 = vmatpush.bf16.msra.mxu0 %v2800
    %3021 = vmatpush.bf16.msra.mxu0 %v2796
    %3022 = vmatpush.bf16.msra.mxu0 %v2792
    %3023 = vmatpush.bf16.msra.mxu0 %v2788
    %3024 = vmatpush.bf16.msra.mxu0 %v2784
    %3025 = vmatpush.bf16.msra.mxu0 %v2780
    %3026 = vmatmul.bf16.gmra.mxu0 %v2223
    %v3027 = vpop.f32.mrf.mxu0
    %v3028 = vadd.f32 %v3014, %v3027
    %v3029 = vpop.f32.mrf.mxu0
    %v3030 = vadd.f32 %v3016, %v3029
    %3031 = vdwg.mxu0
    %3032 = vmatpush.bf16.msra.mxu0 %v2840
    %3033 = vmatpush.bf16.msra.mxu0 %v2836
    %3034 = vmatpush.bf16.msra.mxu0 %v2832
    %3035 = vmatpush.bf16.msra.mxu0 %v2828
    %3036 = vmatpush.bf16.msra.mxu0 %v2824
    %3037 = vmatpush.bf16.msra.mxu0 %v2820
    %3038 = vmatpush.bf16.msra.mxu0 %v2816
    %3039 = vmatpush.bf16.msra.mxu0 %v2812
    %3040 = vmatmul.bf16.gmra.mxu0 %v2224
    %v3041 = vpop.f32.mrf.mxu0
    %v3042 = vadd.f32 %v3028, %v3041
    %v3043 = vpop.f32.mrf.mxu0
    %v3044 = vadd.f32 %v3030, %v3043
    %3045 = vdwg.mxu0
    %3046 = vmatpush.bf16.msra.mxu0 %v2872
    %3047 = vmatpush.bf16.msra.mxu0 %v2868
    %3048 = vmatpush.bf16.msra.mxu0 %v2864
    %3049 = vmatpush.bf16.msra.mxu0 %v2860
    %3050 = vmatpush.bf16.msra.mxu0 %v2856
    %3051 = vmatpush.bf16.msra.mxu0 %v2852
    %3052 = vmatpush.bf16.msra.mxu0 %v2848
    %3053 = vmatpush.bf16.msra.mxu0 %v2844
    %3054 = vmatmul.bf16.gmra.mxu0 %v2225
    %v3055 = vpop.f32.mrf.mxu0
    %v3056 = vadd.f32 %v3042, %v3055
    %v3057 = vpop.f32.mrf.mxu0
    %v3058 = vadd.f32 %v3044, %v3057
    %3059 = vdwg.mxu0
    %3060 = vmatpush.bf16.msra.mxu0 %v2777
    %3061 = vmatpush.bf16.msra.mxu0 %v2773
    %3062 = vmatpush.bf16.msra.mxu0 %v2769
    %3063 = vmatpush.bf16.msra.mxu0 %v2765
    %3064 = vmatpush.bf16.msra.mxu0 %v2761
    %3065 = vmatpush.bf16.msra.mxu0 %v2757
    %3066 = vmatpush.bf16.msra.mxu0 %v2753
    %3067 = vmatpush.bf16.msra.mxu0 %v2749
    %3068 = vmatmul.bf16.gmra.mxu0 %v2222
    %v3069 = vpop.f32.mrf.mxu0
    %v3070 = vadd.f32 %v2357, %v3069
    %v3071 = vpop.f32.mrf.mxu0
    %v3072 = vadd.f32 %v2357, %v3071
    %3073 = vdwg.mxu0
    %3074 = vmatpush.bf16.msra.mxu0 %v2809
    %3075 = vmatpush.bf16.msra.mxu0 %v2805
    %3076 = vmatpush.bf16.msra.mxu0 %v2801
    %3077 = vmatpush.bf16.msra.mxu0 %v2797
    %3078 = vmatpush.bf16.msra.mxu0 %v2793
    %3079 = vmatpush.bf16.msra.mxu0 %v2789
    %3080 = vmatpush.bf16.msra.mxu0 %v2785
    %3081 = vmatpush.bf16.msra.mxu0 %v2781
    %3082 = vmatmul.bf16.gmra.mxu0 %v2223
    %v3083 = vpop.f32.mrf.mxu0
    %v3084 = vadd.f32 %v3070, %v3083
    %v3085 = vpop.f32.mrf.mxu0
    %v3086 = vadd.f32 %v3072, %v3085
    %3087 = vdwg.mxu0
    %3088 = vmatpush.bf16.msra.mxu0 %v2841
    %3089 = vmatpush.bf16.msra.mxu0 %v2837
    %3090 = vmatpush.bf16.msra.mxu0 %v2833
    %3091 = vmatpush.bf16.msra.mxu0 %v2829
    %3092 = vmatpush.bf16.msra.mxu0 %v2825
    %3093 = vmatpush.bf16.msra.mxu0 %v2821
    %3094 = vmatpush.bf16.msra.mxu0 %v2817
    %3095 = vmatpush.bf16.msra.mxu0 %v2813
    %3096 = vmatmul.bf16.gmra.mxu0 %v2224
    %v3097 = vpop.f32.mrf.mxu0
    %v3098 = vadd.f32 %v3084, %v3097
    %v3099 = vpop.f32.mrf.mxu0
    %v3100 = vadd.f32 %v3086, %v3099
    %3101 = vdwg.mxu0
    %3102 = vmatpush.bf16.msra.mxu0 %v2873
    %3103 = vmatpush.bf16.msra.mxu0 %v2869
    %3104 = vmatpush.bf16.msra.mxu0 %v2865
    %3105 = vmatpush.bf16.msra.mxu0 %v2861
    %3106 = vmatpush.bf16.msra.mxu0 %v2857
    %3107 = vmatpush.bf16.msra.mxu0 %v2853
    %3108 = vmatpush.bf16.msra.mxu0 %v2849
    %3109 = vmatpush.bf16.msra.mxu0 %v2845
    %3110 = vmatmul.bf16.gmra.mxu0 %v2225
    %v3111 = vpop.f32.mrf.mxu0
    %v3112 = vadd.f32 %v3098, %v3111
    %v3113 = vpop.f32.mrf.mxu0
    %v3114 = vadd.f32 %v3100, %v3113
    %3115 = vdwg.mxu0
    %3116 = vmatpush.bf16.msra.mxu0 %v2778
    %3117 = vmatpush.bf16.msra.mxu0 %v2774
    %3118 = vmatpush.bf16.msra.mxu0 %v2770
    %3119 = vmatpush.bf16.msra.mxu0 %v2766
    %3120 = vmatpush.bf16.msra.mxu0 %v2762
    %3121 = vmatpush.bf16.msra.mxu0 %v2758
    %3122 = vmatpush.bf16.msra.mxu0 %v2754
    %3123 = vmatpush.bf16.msra.mxu0 %v2750
    %3124 = vmatmul.bf16.gmra.mxu0 %v2222
    %v3125 = vpop.f32.mrf.mxu0
    %v3126 = vadd.f32 %v2358, %v3125
    %v3127 = vpop.f32.mrf.mxu0
    %v3128 = vadd.f32 %v2358, %v3127
    %3129 = vdwg.mxu0
    %3130 = vmatpush.bf16.msra.mxu0 %v2810
    %3131 = vmatpush.bf16.msra.mxu0 %v2806
    %3132 = vmatpush.bf16.msra.mxu0 %v2802
    %3133 = vmatpush.bf16.msra.mxu0 %v2798
    %3134 = vmatpush.bf16.msra.mxu0 %v2794
    %3135 = vmatpush.bf16.msra.mxu0 %v2790
    %3136 = vmatpush.bf16.msra.mxu0 %v2786
    %3137 = vmatpush.bf16.msra.mxu0 %v2782
    %3138 = vmatmul.bf16.gmra.mxu0 %v2223
    %v3139 = vpop.f32.mrf.mxu0
    %v3140 = vadd.f32 %v3126, %v3139
    %v3141 = vpop.f32.mrf.mxu0
    %v3142 = vadd.f32 %v3128, %v3141
    %3143 = vdwg.mxu0
    %3144 = vmatpush.bf16.msra.mxu0 %v2842
    %3145 = vmatpush.bf16.msra.mxu0 %v2838
    %3146 = vmatpush.bf16.msra.mxu0 %v2834
    %3147 = vmatpush.bf16.msra.mxu0 %v2830
    %3148 = vmatpush.bf16.msra.mxu0 %v2826
    %3149 = vmatpush.bf16.msra.mxu0 %v2822
    %3150 = vmatpush.bf16.msra.mxu0 %v2818
    %3151 = vmatpush.bf16.msra.mxu0 %v2814
    %3152 = vmatmul.bf16.gmra.mxu0 %v2224
    %v3153 = vpop.f32.mrf.mxu0
    %v3154 = vadd.f32 %v3140, %v3153
    %v3155 = vpop.f32.mrf.mxu0
    %v3156 = vadd.f32 %v3142, %v3155
    %3157 = vdwg.mxu0
    %3158 = vmatpush.bf16.msra.mxu0 %v2874
    %3159 = vmatpush.bf16.msra.mxu0 %v2870
    %3160 = vmatpush.bf16.msra.mxu0 %v2866
    %3161 = vmatpush.bf16.msra.mxu0 %v2862
    %3162 = vmatpush.bf16.msra.mxu0 %v2858
    %3163 = vmatpush.bf16.msra.mxu0 %v2854
    %3164 = vmatpush.bf16.msra.mxu0 %v2850
    %3165 = vmatpush.bf16.msra.mxu0 %v2846
    %3166 = vmatmul.bf16.gmra.mxu0 %v2225
    %v3167 = vpop.f32.mrf.mxu0
    %v3168 = vadd.f32 %v3154, %v3167
    %v3169 = vpop.f32.mrf.mxu0
    %v3170 = vadd.f32 %v3156, %v3169
    %3171 = vdwg.mxu0
    %3172 = vmatpush.bf16.msra.mxu0 %v2779
    %3173 = vmatpush.bf16.msra.mxu0 %v2775
    %3174 = vmatpush.bf16.msra.mxu0 %v2771
    %3175 = vmatpush.bf16.msra.mxu0 %v2767
    %3176 = vmatpush.bf16.msra.mxu0 %v2763
    %3177 = vmatpush.bf16.msra.mxu0 %v2759
    %3178 = vmatpush.bf16.msra.mxu0 %v2755
    %3179 = vmatpush.bf16.msra.mxu0 %v2751
    %3180 = vmatmul.bf16.gmra.mxu0 %v2222
    %v3181 = vpop.f32.mrf.mxu0
    %v3182 = vadd.f32 %v2359, %v3181
    %v3183 = vpop.f32.mrf.mxu0
    %v3184 = vadd.f32 %v2359, %v3183
    %3185 = vdwg.mxu0
    %3186 = vmatpush.bf16.msra.mxu0 %v2811
    %3187 = vmatpush.bf16.msra.mxu0 %v2807
    %3188 = vmatpush.bf16.msra.mxu0 %v2803
    %3189 = vmatpush.bf16.msra.mxu0 %v2799
    %3190 = vmatpush.bf16.msra.mxu0 %v2795
    %3191 = vmatpush.bf16.msra.mxu0 %v2791
    %3192 = vmatpush.bf16.msra.mxu0 %v2787
    %3193 = vmatpush.bf16.msra.mxu0 %v2783
    %3194 = vmatmul.bf16.gmra.mxu0 %v2223
    %v3195 = vpop.f32.mrf.mxu0
    %v3196 = vadd.f32 %v3182, %v3195
    %v3197 = vpop.f32.mrf.mxu0
    %v3198 = vadd.f32 %v3184, %v3197
    %3199 = vdwg.mxu0
    %3200 = vmatpush.bf16.msra.mxu0 %v2843
    %3201 = vmatpush.bf16.msra.mxu0 %v2839
    %3202 = vmatpush.bf16.msra.mxu0 %v2835
    %3203 = vmatpush.bf16.msra.mxu0 %v2831
    %3204 = vmatpush.bf16.msra.mxu0 %v2827
    %3205 = vmatpush.bf16.msra.mxu0 %v2823
    %3206 = vmatpush.bf16.msra.mxu0 %v2819
    %3207 = vmatpush.bf16.msra.mxu0 %v2815
    %3208 = vmatmul.bf16.gmra.mxu0 %v2224
    %v3209 = vpop.f32.mrf.mxu0
    %v3210 = vadd.f32 %v3196, %v3209
    %v3211 = vpop.f32.mrf.mxu0
    %v3212 = vadd.f32 %v3198, %v3211
    %3213 = vdwg.mxu0
    %3214 = vmatpush.bf16.msra.mxu0 %v2875
    %3215 = vmatpush.bf16.msra.mxu0 %v2871
    %3216 = vmatpush.bf16.msra.mxu0 %v2867
    %3217 = vmatpush.bf16.msra.mxu0 %v2863
    %3218 = vmatpush.bf16.msra.mxu0 %v2859
    %3219 = vmatpush.bf16.msra.mxu0 %v2855
    %3220 = vmatpush.bf16.msra.mxu0 %v2851
    %3221 = vmatpush.bf16.msra.mxu0 %v2847
    %3222 = vmatmul.bf16.gmra.mxu0 %v2225
    %v3223 = vpop.f32.mrf.mxu0
    %v3224 = vadd.f32 %v3210, %v3223
    %v3225 = vpop.f32.mrf.mxu0
    %v3226 = vadd.f32 %v3212, %v3225
    %3227 = vdwg.mxu0
    %v3228 = vpack.c.bf16 %v3112, %v3056
    %v3229 = vpack.c.bf16 %v3224, %v3168
    %v3230 = vpack.c.bf16 %v3114, %v3058
    %v3231 = vpack.c.bf16 %v3226, %v3170
    %v3232 = vunpack.c.l.bf16 %v3228
    %v3233 = vunpack.c.h.bf16 %v3228
    %v3234 = vunpack.c.l.bf16 %v3229
    %v3235 = vunpack.c.h.bf16 %v3229
    %v3236 = vunpack.c.l.bf16 %v3230
    %v3237 = vunpack.c.h.bf16 %v3230
    %v3238 = vunpack.c.l.bf16 %v3231
    %v3239 = vunpack.c.h.bf16 %v3231
    %v3240 = vmax.f32 %v3232, 0.0
    %v3241 = vmax.f32 %v3233, 0.0
    %v3242 = vmax.f32 %v3234, 0.0
    %v3243 = vmax.f32 %v3235, 0.0
    %v3244 = vmax.f32 %v3236, 0.0
    %v3245 = vmax.f32 %v3237, 0.0
    %v3246 = vmax.f32 %v3238, 0.0
    %v3247 = vmax.f32 %v3239, 0.0
    %v3248 = vpack.c.bf16 %v3244, %v3240
    %v3249 = vpack.c.bf16 %v3245, %v3241
    %v3250 = vpack.c.bf16 %v3246, %v3242
    %v3251 = vpack.c.bf16 %v3247, %v3243
    %v3252 = vld [vmem:[#allocation11] sm:$0xff]
    %v3253 = vld [vmem:[#allocation11 + $0x8] sm:$0xff]
    %v3254 = vld [vmem:[#allocation11 + $0x10] sm:$0xff]
    %v3255 = vld [vmem:[#allocation11 + $0x18] sm:$0xff]
    %v3256 = vld [vmem:[#allocation11 + $0x20] sm:$0xff]
    %v3257 = vld [vmem:[#allocation11 + $0x28] sm:$0xff]
    %v3258 = vld [vmem:[#allocation11 + $0x30] sm:$0xff]
    %v3259 = vld [vmem:[#allocation11 + $0x38] sm:$0xff]
    %v3260 = vld [vmem:[#allocation11 + $0x40] sm:$0xff]
    %v3261 = vld [vmem:[#allocation11 + $0x48] sm:$0xff]
    %v3262 = vld [vmem:[#allocation11 + $0x50] sm:$0xff]
    %v3263 = vld [vmem:[#allocation11 + $0x58] sm:$0xff]
    %v3264 = vld [vmem:[#allocation11 + $0x60] sm:$0xff]
    %v3265 = vld [vmem:[#allocation11 + $0x68] sm:$0xff]
    %v3266 = vld [vmem:[#allocation11 + $0x70] sm:$0xff]
    %v3267 = vld [vmem:[#allocation11 + $0x78] sm:$0xff]
    %v3268 = vld [vmem:[#allocation11 + $0x80] sm:$0xff]
    %v3269 = vld [vmem:[#allocation11 + $0x88] sm:$0xff]
    %v3270 = vld [vmem:[#allocation11 + $0x90] sm:$0xff]
    %v3271 = vld [vmem:[#allocation11 + $0x98] sm:$0xff]
    %v3272 = vld [vmem:[#allocation11 + $0xa0] sm:$0xff]
    %v3273 = vld [vmem:[#allocation11 + $0xa8] sm:$0xff]
    %v3274 = vld [vmem:[#allocation11 + $0xb0] sm:$0xff]
    %v3275 = vld [vmem:[#allocation11 + $0xb8] sm:$0xff]
    %v3276 = vld [vmem:[#allocation11 + $0xc0] sm:$0xff]
    %v3277 = vld [vmem:[#allocation11 + $0xc8] sm:$0xff]
    %v3278 = vld [vmem:[#allocation11 + $0xd0] sm:$0xff]
    %v3279 = vld [vmem:[#allocation11 + $0xd8] sm:$0xff]
    %v3280 = vld [vmem:[#allocation11 + $0xe0] sm:$0xff]
    %v3281 = vld [vmem:[#allocation11 + $0xe8] sm:$0xff]
    %v3282 = vld [vmem:[#allocation11 + $0xf0] sm:$0xff]
    %v3283 = vld [vmem:[#allocation11 + $0xf8] sm:$0xff]
    %v3284 = vld [vmem:[#allocation11 + $0x100] sm:$0xff]
    %v3285 = vld [vmem:[#allocation11 + $0x108] sm:$0xff]
    %v3286 = vld [vmem:[#allocation11 + $0x110] sm:$0xff]
    %v3287 = vld [vmem:[#allocation11 + $0x118] sm:$0xff]
    %v3288 = vld [vmem:[#allocation11 + $0x120] sm:$0xff]
    %v3289 = vld [vmem:[#allocation11 + $0x128] sm:$0xff]
    %v3290 = vld [vmem:[#allocation11 + $0x130] sm:$0xff]
    %v3291 = vld [vmem:[#allocation11 + $0x138] sm:$0xff]
    %v3292 = vld [vmem:[#allocation11 + $0x140] sm:$0xff]
    %v3293 = vld [vmem:[#allocation11 + $0x148] sm:$0xff]
    %v3294 = vld [vmem:[#allocation11 + $0x150] sm:$0xff]
    %v3295 = vld [vmem:[#allocation11 + $0x158] sm:$0xff]
    %v3296 = vld [vmem:[#allocation11 + $0x160] sm:$0xff]
    %v3297 = vld [vmem:[#allocation11 + $0x168] sm:$0xff]
    %v3298 = vld [vmem:[#allocation11 + $0x170] sm:$0xff]
    %v3299 = vld [vmem:[#allocation11 + $0x178] sm:$0xff]
    %v3300 = vld [vmem:[#allocation11 + $0x180] sm:$0xff]
    %v3301 = vld [vmem:[#allocation11 + $0x188] sm:$0xff]
    %v3302 = vld [vmem:[#allocation11 + $0x190] sm:$0xff]
    %v3303 = vld [vmem:[#allocation11 + $0x198] sm:$0xff]
    %v3304 = vld [vmem:[#allocation11 + $0x1a0] sm:$0xff]
    %v3305 = vld [vmem:[#allocation11 + $0x1a8] sm:$0xff]
    %v3306 = vld [vmem:[#allocation11 + $0x1b0] sm:$0xff]
    %v3307 = vld [vmem:[#allocation11 + $0x1b8] sm:$0xff]
    %v3308 = vld [vmem:[#allocation11 + $0x1c0] sm:$0xff]
    %v3309 = vld [vmem:[#allocation11 + $0x1c8] sm:$0xff]
    %v3310 = vld [vmem:[#allocation11 + $0x1d0] sm:$0xff]
    %v3311 = vld [vmem:[#allocation11 + $0x1d8] sm:$0xff]
    %v3312 = vld [vmem:[#allocation11 + $0x1e0] sm:$0xff]
    %v3313 = vld [vmem:[#allocation11 + $0x1e8] sm:$0xff]
    %v3314 = vld [vmem:[#allocation11 + $0x1f0] sm:$0xff]
    %v3315 = vld [vmem:[#allocation11 + $0x1f8] sm:$0xff]
    %v3316 = vld [vmem:[%s6] sm:$0x3]
    %v3318 = vperm.slane %v3316, 0
    %v3319 = vperm.slane %v3316, 1
    %v3386 = vunpack.c.l.b16 %v3252
    %v3387 = vunpack.c.h.b16 %v3252
    %v3388 = vunpack.c.l.b16 %v3253
    %v3389 = vunpack.c.h.b16 %v3253
    %v3390 = vunpack.c.l.b16 %v3254
    %v3391 = vunpack.c.h.b16 %v3254
    %v3392 = vunpack.c.l.b16 %v3255
    %v3393 = vunpack.c.h.b16 %v3255
    %v3394 = vunpack.c.l.b16 %v3256
    %v3395 = vunpack.c.h.b16 %v3256
    %v3396 = vunpack.c.l.b16 %v3257
    %v3397 = vunpack.c.h.b16 %v3257
    %v3398 = vunpack.c.l.b16 %v3258
    %v3399 = vunpack.c.h.b16 %v3258
    %v3400 = vunpack.c.l.b16 %v3259
    %v3401 = vunpack.c.h.b16 %v3259
    %v3402 = vunpack.c.l.b16 %v3260
    %v3403 = vunpack.c.h.b16 %v3260
    %v3404 = vunpack.c.l.b16 %v3261
    %v3405 = vunpack.c.h.b16 %v3261
    %v3406 = vunpack.c.l.b16 %v3262
    %v3407 = vunpack.c.h.b16 %v3262
    %v3408 = vunpack.c.l.b16 %v3263
    %v3409 = vunpack.c.h.b16 %v3263
    %v3410 = vunpack.c.l.b16 %v3264
    %v3411 = vunpack.c.h.b16 %v3264
    %v3412 = vunpack.c.l.b16 %v3265
    %v3413 = vunpack.c.h.b16 %v3265
    %v3414 = vunpack.c.l.b16 %v3266
    %v3415 = vunpack.c.h.b16 %v3266
    %v3416 = vunpack.c.l.b16 %v3267
    %v3417 = vunpack.c.h.b16 %v3267
    %v3418 = vunpack.c.l.b16 %v3268
    %v3419 = vunpack.c.h.b16 %v3268
    %v3420 = vunpack.c.l.b16 %v3269
    %v3421 = vunpack.c.h.b16 %v3269
    %v3422 = vunpack.c.l.b16 %v3270
    %v3423 = vunpack.c.h.b16 %v3270
    %v3424 = vunpack.c.l.b16 %v3271
    %v3425 = vunpack.c.h.b16 %v3271
    %v3426 = vunpack.c.l.b16 %v3272
    %v3427 = vunpack.c.h.b16 %v3272
    %v3428 = vunpack.c.l.b16 %v3273
    %v3429 = vunpack.c.h.b16 %v3273
    %v3430 = vunpack.c.l.b16 %v3274
    %v3431 = vunpack.c.h.b16 %v3274
    %v3432 = vunpack.c.l.b16 %v3275
    %v3433 = vunpack.c.h.b16 %v3275
    %v3434 = vunpack.c.l.b16 %v3276
    %v3435 = vunpack.c.h.b16 %v3276
    %v3436 = vunpack.c.l.b16 %v3277
    %v3437 = vunpack.c.h.b16 %v3277
    %v3438 = vunpack.c.l.b16 %v3278
    %v3439 = vunpack.c.h.b16 %v3278
    %v3440 = vunpack.c.l.b16 %v3279
    %v3441 = vunpack.c.h.b16 %v3279
    %v3442 = vunpack.c.l.b16 %v3280
    %v3443 = vunpack.c.h.b16 %v3280
    %v3444 = vunpack.c.l.b16 %v3281
    %v3445 = vunpack.c.h.b16 %v3281
    %v3446 = vunpack.c.l.b16 %v3282
    %v3447 = vunpack.c.h.b16 %v3282
    %v3448 = vunpack.c.l.b16 %v3283
    %v3449 = vunpack.c.h.b16 %v3283
    %v3450 = vunpack.c.l.b16 %v3284
    %v3451 = vunpack.c.h.b16 %v3284
    %v3452 = vunpack.c.l.b16 %v3285
    %v3453 = vunpack.c.h.b16 %v3285
    %v3454 = vunpack.c.l.b16 %v3286
    %v3455 = vunpack.c.h.b16 %v3286
    %v3456 = vunpack.c.l.b16 %v3287
    %v3457 = vunpack.c.h.b16 %v3287
    %v3458 = vunpack.c.l.b16 %v3288
    %v3459 = vunpack.c.h.b16 %v3288
    %v3460 = vunpack.c.l.b16 %v3289
    %v3461 = vunpack.c.h.b16 %v3289
    %v3462 = vunpack.c.l.b16 %v3290
    %v3463 = vunpack.c.h.b16 %v3290
    %v3464 = vunpack.c.l.b16 %v3291
    %v3465 = vunpack.c.h.b16 %v3291
    %v3466 = vunpack.c.l.b16 %v3292
    %v3467 = vunpack.c.h.b16 %v3292
    %v3468 = vunpack.c.l.b16 %v3293
    %v3469 = vunpack.c.h.b16 %v3293
    %v3470 = vunpack.c.l.b16 %v3294
    %v3471 = vunpack.c.h.b16 %v3294
    %v3472 = vunpack.c.l.b16 %v3295
    %v3473 = vunpack.c.h.b16 %v3295
    %v3474 = vunpack.c.l.b16 %v3296
    %v3475 = vunpack.c.h.b16 %v3296
    %v3476 = vunpack.c.l.b16 %v3297
    %v3477 = vunpack.c.h.b16 %v3297
    %v3478 = vunpack.c.l.b16 %v3298
    %v3479 = vunpack.c.h.b16 %v3298
    %v3480 = vunpack.c.l.b16 %v3299
    %v3481 = vunpack.c.h.b16 %v3299
    %v3482 = vunpack.c.l.b16 %v3300
    %v3483 = vunpack.c.h.b16 %v3300
    %v3484 = vunpack.c.l.b16 %v3301
    %v3485 = vunpack.c.h.b16 %v3301
    %v3486 = vunpack.c.l.b16 %v3302
    %v3487 = vunpack.c.h.b16 %v3302
    %v3488 = vunpack.c.l.b16 %v3303
    %v3489 = vunpack.c.h.b16 %v3303
    %v3490 = vunpack.c.l.b16 %v3304
    %v3491 = vunpack.c.h.b16 %v3304
    %v3492 = vunpack.c.l.b16 %v3305
    %v3493 = vunpack.c.h.b16 %v3305
    %v3494 = vunpack.c.l.b16 %v3306
    %v3495 = vunpack.c.h.b16 %v3306
    %v3496 = vunpack.c.l.b16 %v3307
    %v3497 = vunpack.c.h.b16 %v3307
    %v3498 = vunpack.c.l.b16 %v3308
    %v3499 = vunpack.c.h.b16 %v3308
    %v3500 = vunpack.c.l.b16 %v3309
    %v3501 = vunpack.c.h.b16 %v3309
    %v3502 = vunpack.c.l.b16 %v3310
    %v3503 = vunpack.c.h.b16 %v3310
    %v3504 = vunpack.c.l.b16 %v3311
    %v3505 = vunpack.c.h.b16 %v3311
    %v3506 = vunpack.c.l.b16 %v3312
    %v3507 = vunpack.c.h.b16 %v3312
    %v3508 = vunpack.c.l.b16 %v3313
    %v3509 = vunpack.c.h.b16 %v3313
    %v3510 = vunpack.c.l.b16 %v3314
    %v3511 = vunpack.c.h.b16 %v3314
    %v3512 = vunpack.c.l.b16 %v3315
    %v3513 = vunpack.c.h.b16 %v3315
    %v3514 = vpack.c.b16 %v3388, %v3386
    %v3515 = vpack.c.b16 %v3389, %v3387
    %v3516 = vpack.c.b16 %v3392, %v3390
    %v3517 = vpack.c.b16 %v3393, %v3391
    %v3518 = vpack.c.b16 %v3396, %v3394
    %v3519 = vpack.c.b16 %v3397, %v3395
    %v3520 = vpack.c.b16 %v3400, %v3398
    %v3521 = vpack.c.b16 %v3401, %v3399
    %v3522 = vpack.c.b16 %v3404, %v3402
    %v3523 = vpack.c.b16 %v3405, %v3403
    %v3524 = vpack.c.b16 %v3408, %v3406
    %v3525 = vpack.c.b16 %v3409, %v3407
    %v3526 = vpack.c.b16 %v3412, %v3410
    %v3527 = vpack.c.b16 %v3413, %v3411
    %v3528 = vpack.c.b16 %v3416, %v3414
    %v3529 = vpack.c.b16 %v3417, %v3415
    %v3530 = vpack.c.b16 %v3420, %v3418
    %v3531 = vpack.c.b16 %v3421, %v3419
    %v3532 = vpack.c.b16 %v3424, %v3422
    %v3533 = vpack.c.b16 %v3425, %v3423
    %v3534 = vpack.c.b16 %v3428, %v3426
    %v3535 = vpack.c.b16 %v3429, %v3427
    %v3536 = vpack.c.b16 %v3432, %v3430
    %v3537 = vpack.c.b16 %v3433, %v3431
    %v3538 = vpack.c.b16 %v3436, %v3434
    %v3539 = vpack.c.b16 %v3437, %v3435
    %v3540 = vpack.c.b16 %v3440, %v3438
    %v3541 = vpack.c.b16 %v3441, %v3439
    %v3542 = vpack.c.b16 %v3444, %v3442
    %v3543 = vpack.c.b16 %v3445, %v3443
    %v3544 = vpack.c.b16 %v3448, %v3446
    %v3545 = vpack.c.b16 %v3449, %v3447
    %v3546 = vpack.c.b16 %v3452, %v3450
    %v3547 = vpack.c.b16 %v3453, %v3451
    %v3548 = vpack.c.b16 %v3456, %v3454
    %v3549 = vpack.c.b16 %v3457, %v3455
    %v3550 = vpack.c.b16 %v3460, %v3458
    %v3551 = vpack.c.b16 %v3461, %v3459
    %v3552 = vpack.c.b16 %v3464, %v3462
    %v3553 = vpack.c.b16 %v3465, %v3463
    %v3554 = vpack.c.b16 %v3468, %v3466
    %v3555 = vpack.c.b16 %v3469, %v3467
    %v3556 = vpack.c.b16 %v3472, %v3470
    %v3557 = vpack.c.b16 %v3473, %v3471
    %v3558 = vpack.c.b16 %v3476, %v3474
    %v3559 = vpack.c.b16 %v3477, %v3475
    %v3560 = vpack.c.b16 %v3480, %v3478
    %v3561 = vpack.c.b16 %v3481, %v3479
    %v3562 = vpack.c.b16 %v3484, %v3482
    %v3563 = vpack.c.b16 %v3485, %v3483
    %v3564 = vpack.c.b16 %v3488, %v3486
    %v3565 = vpack.c.b16 %v3489, %v3487
    %v3566 = vpack.c.b16 %v3492, %v3490
    %v3567 = vpack.c.b16 %v3493, %v3491
    %v3568 = vpack.c.b16 %v3496, %v3494
    %v3569 = vpack.c.b16 %v3497, %v3495
    %v3570 = vpack.c.b16 %v3500, %v3498
    %v3571 = vpack.c.b16 %v3501, %v3499
    %v3572 = vpack.c.b16 %v3504, %v3502
    %v3573 = vpack.c.b16 %v3505, %v3503
    %v3574 = vpack.c.b16 %v3508, %v3506
    %v3575 = vpack.c.b16 %v3509, %v3507
    %v3576 = vpack.c.b16 %v3512, %v3510
    %v3577 = vpack.c.b16 %v3513, %v3511
    %3642 = vmatpush.bf16.msra.mxu0 %v3528
    %3643 = vmatpush.bf16.msra.mxu0 %v3526
    %3644 = vmatpush.bf16.msra.mxu0 %v3524
    %3645 = vmatpush.bf16.msra.mxu0 %v3522
    %3646 = vmatpush.bf16.msra.mxu0 %v3520
    %3647 = vmatpush.bf16.msra.mxu0 %v3518
    %3648 = vmatpush.bf16.msra.mxu0 %v3516
    %3649 = vmatpush.bf16.msra.mxu0 %v3514
    %3650 = vmatmul.bf16.gmra.mxu0 %v3248
    %v3651 = vpop.f32.mrf.mxu0
    %v3652 = vadd.f32 %v3318, %v3651
    %v3653 = vpop.f32.mrf.mxu0
    %v3654 = vadd.f32 %v3318, %v3653
    %3655 = vdwg.mxu0
    %3656 = vmatpush.bf16.msra.mxu0 %v3544
    %3657 = vmatpush.bf16.msra.mxu0 %v3542
    %3658 = vmatpush.bf16.msra.mxu0 %v3540
    %3659 = vmatpush.bf16.msra.mxu0 %v3538
    %3660 = vmatpush.bf16.msra.mxu0 %v3536
    %3661 = vmatpush.bf16.msra.mxu0 %v3534
    %3662 = vmatpush.bf16.msra.mxu0 %v3532
    %3663 = vmatpush.bf16.msra.mxu0 %v3530
    %3664 = vmatmul.bf16.gmra.mxu0 %v3249
    %v3665 = vpop.f32.mrf.mxu0
    %v3666 = vadd.f32 %v3652, %v3665
    %v3667 = vpop.f32.mrf.mxu0
    %v3668 = vadd.f32 %v3654, %v3667
    %3669 = vdwg.mxu0
    %3670 = vmatpush.bf16.msra.mxu0 %v3560
    %3671 = vmatpush.bf16.msra.mxu0 %v3558
    %3672 = vmatpush.bf16.msra.mxu0 %v3556
    %3673 = vmatpush.bf16.msra.mxu0 %v3554
    %3674 = vmatpush.bf16.msra.mxu0 %v3552
    %3675 = vmatpush.bf16.msra.mxu0 %v3550
    %3676 = vmatpush.bf16.msra.mxu0 %v3548
    %3677 = vmatpush.bf16.msra.mxu0 %v3546
    %3678 = vmatmul.bf16.gmra.mxu0 %v3250
    %v3679 = vpop.f32.mrf.mxu0
    %v3680 = vadd.f32 %v3666, %v3679
    %v3681 = vpop.f32.mrf.mxu0
    %v3682 = vadd.f32 %v3668, %v3681
    %3683 = vdwg.mxu0
    %3684 = vmatpush.bf16.msra.mxu0 %v3576
    %3685 = vmatpush.bf16.msra.mxu0 %v3574
    %3686 = vmatpush.bf16.msra.mxu0 %v3572
    %3687 = vmatpush.bf16.msra.mxu0 %v3570
    %3688 = vmatpush.bf16.msra.mxu0 %v3568
    %3689 = vmatpush.bf16.msra.mxu0 %v3566
    %3690 = vmatpush.bf16.msra.mxu0 %v3564
    %3691 = vmatpush.bf16.msra.mxu0 %v3562
    %3692 = vmatmul.bf16.gmra.mxu0 %v3251
    %v3693 = vpop.f32.mrf.mxu0
    %v3694 = vadd.f32 %v3680, %v3693
    %v3695 = vpop.f32.mrf.mxu0
    %v3696 = vadd.f32 %v3682, %v3695
    %3697 = vdwg.mxu0
    %3698 = vmatpush.bf16.msra.mxu0 %v3529
    %3699 = vmatpush.bf16.msra.mxu0 %v3527
    %3700 = vmatpush.bf16.msra.mxu0 %v3525
    %3701 = vmatpush.bf16.msra.mxu0 %v3523
    %3702 = vmatpush.bf16.msra.mxu0 %v3521
    %3703 = vmatpush.bf16.msra.mxu0 %v3519
    %3704 = vmatpush.bf16.msra.mxu0 %v3517
    %3705 = vmatpush.bf16.msra.mxu0 %v3515
    %3706 = vmatmul.bf16.gmra.mxu0 %v3248
    %v3707 = vpop.f32.mrf.mxu0
    %v3708 = vadd.f32 %v3319, %v3707
    %v3709 = vpop.f32.mrf.mxu0
    %v3710 = vadd.f32 %v3319, %v3709
    %3711 = vdwg.mxu0
    %3712 = vmatpush.bf16.msra.mxu0 %v3545
    %3713 = vmatpush.bf16.msra.mxu0 %v3543
    %3714 = vmatpush.bf16.msra.mxu0 %v3541
    %3715 = vmatpush.bf16.msra.mxu0 %v3539
    %3716 = vmatpush.bf16.msra.mxu0 %v3537
    %3717 = vmatpush.bf16.msra.mxu0 %v3535
    %3718 = vmatpush.bf16.msra.mxu0 %v3533
    %3719 = vmatpush.bf16.msra.mxu0 %v3531
    %3720 = vmatmul.bf16.gmra.mxu0 %v3249
    %v3721 = vpop.f32.mrf.mxu0
    %v3722 = vadd.f32 %v3708, %v3721
    %v3723 = vpop.f32.mrf.mxu0
    %v3724 = vadd.f32 %v3710, %v3723
    %3725 = vdwg.mxu0
    %3726 = vmatpush.bf16.msra.mxu0 %v3561
    %3727 = vmatpush.bf16.msra.mxu0 %v3559
    %3728 = vmatpush.bf16.msra.mxu0 %v3557
    %3729 = vmatpush.bf16.msra.mxu0 %v3555
    %3730 = vmatpush.bf16.msra.mxu0 %v3553
    %3731 = vmatpush.bf16.msra.mxu0 %v3551
    %3732 = vmatpush.bf16.msra.mxu0 %v3549
    %3733 = vmatpush.bf16.msra.mxu0 %v3547
    %3734 = vmatmul.bf16.gmra.mxu0 %v3250
    %v3735 = vpop.f32.mrf.mxu0
    %v3736 = vadd.f32 %v3722, %v3735
    %v3737 = vpop.f32.mrf.mxu0
    %v3738 = vadd.f32 %v3724, %v3737
    %3739 = vdwg.mxu0
    %3740 = vmatpush.bf16.msra.mxu0 %v3577
    %3741 = vmatpush.bf16.msra.mxu0 %v3575
    %3742 = vmatpush.bf16.msra.mxu0 %v3573
    %3743 = vmatpush.bf16.msra.mxu0 %v3571
    %3744 = vmatpush.bf16.msra.mxu0 %v3569
    %3745 = vmatpush.bf16.msra.mxu0 %v3567
    %3746 = vmatpush.bf16.msra.mxu0 %v3565
    %3747 = vmatpush.bf16.msra.mxu0 %v3563
    %3748 = vmatmul.bf16.gmra.mxu0 %v3251
    %v3749 = vpop.f32.mrf.mxu0
    %v3750 = vadd.f32 %v3736, %v3749
    %v3751 = vpop.f32.mrf.mxu0
    %v3752 = vadd.f32 %v3738, %v3751
    %3753 = vdwg.mxu0
    %v3754 = vpack.c.bf16 %v3750, %v3694
    %v3755 = vpack.c.bf16 %v3752, %v3696
    %v3756 = vunpack.c.l.bf16 %v3754
    %v3757 = vunpack.c.h.bf16 %v3754
    %v3758 = vunpack.c.l.bf16 %v3755
    %v3759 = vunpack.c.h.bf16 %v3755
    %v3760 = vmax.f32 %v3756, 0.0
    %v3761 = vmax.f32 %v3757, 0.0
    %v3762 = vmax.f32 %v3758, 0.0
    %v3763 = vmax.f32 %v3759, 0.0
    %v3764 = vpack.c.bf16 %v3762, %v3760
    %v3765 = vpack.c.bf16 %v3763, %v3761
    %v3766 = vld [vmem:[#allocation13] sm:$0xf]
    %v3767 = vld [vmem:[#allocation13 + $0x4] sm:$0xf]
    %v3768 = vld [vmem:[#allocation13 + $0x8] sm:$0xf]
    %v3769 = vld [vmem:[#allocation13 + $0xc] sm:$0xf]
    %v3770 = vld [vmem:[#allocation13 + $0x10] sm:$0xf]
    %v3771 = vld [vmem:[#allocation13 + $0x14] sm:$0xf]
    %v3772 = vld [vmem:[#allocation13 + $0x18] sm:$0xf]
    %v3773 = vld [vmem:[#allocation13 + $0x1c] sm:$0xf]
    %v3774 = vld [vmem:[#allocation13 + $0x20] sm:$0xf]
    %v3775 = vld [vmem:[#allocation13 + $0x24] sm:$0xf]
    %v3776 = vld [vmem:[#allocation13 + $0x28] sm:$0xf]
    %v3777 = vld [vmem:[#allocation13 + $0x2c] sm:$0xf]
    %v3778 = vld [vmem:[#allocation13 + $0x30] sm:$0xf]
    %v3779 = vld [vmem:[#allocation13 + $0x34] sm:$0xf]
    %v3780 = vld [vmem:[#allocation13 + $0x38] sm:$0xf]
    %v3781 = vld [vmem:[#allocation13 + $0x3c] sm:$0xf]
    %v3782 = vld [vmem:[#allocation13 + $0x40] sm:$0xf]
    %v3783 = vld [vmem:[#allocation13 + $0x44] sm:$0xf]
    %v3784 = vld [vmem:[#allocation13 + $0x48] sm:$0xf]
    %v3785 = vld [vmem:[#allocation13 + $0x4c] sm:$0xf]
    %v3786 = vld [vmem:[#allocation13 + $0x50] sm:$0xf]
    %v3787 = vld [vmem:[#allocation13 + $0x54] sm:$0xf]
    %v3788 = vld [vmem:[#allocation13 + $0x58] sm:$0xf]
    %v3789 = vld [vmem:[#allocation13 + $0x5c] sm:$0xf]
    %v3790 = vld [vmem:[#allocation13 + $0x60] sm:$0xf]
    %v3791 = vld [vmem:[#allocation13 + $0x64] sm:$0xf]
    %v3792 = vld [vmem:[#allocation13 + $0x68] sm:$0xf]
    %v3793 = vld [vmem:[#allocation13 + $0x6c] sm:$0xf]
    %v3794 = vld [vmem:[#allocation13 + $0x70] sm:$0xf]
    %v3795 = vld [vmem:[#allocation13 + $0x74] sm:$0xf]
    %v3796 = vld [vmem:[#allocation13 + $0x78] sm:$0xf]
    %v3797 = vld [vmem:[#allocation13 + $0x7c] sm:$0xf]
    %v3798 = vld [vmem:[%s8] sm:$0x1]
    %v3800 = vperm.slane %v3798, 0
    %v3834 = vunpack.c.l.b16 %v3766
    %v3835 = vunpack.c.l.b16 %v3767
    %v3836 = vunpack.c.l.b16 %v3768
    %v3837 = vunpack.c.l.b16 %v3769
    %v3838 = vunpack.c.l.b16 %v3770
    %v3839 = vunpack.c.l.b16 %v3771
    %v3840 = vunpack.c.l.b16 %v3772
    %v3841 = vunpack.c.l.b16 %v3773
    %v3842 = vunpack.c.l.b16 %v3774
    %v3843 = vunpack.c.l.b16 %v3775
    %v3844 = vunpack.c.l.b16 %v3776
    %v3845 = vunpack.c.l.b16 %v3777
    %v3846 = vunpack.c.l.b16 %v3778
    %v3847 = vunpack.c.l.b16 %v3779
    %v3848 = vunpack.c.l.b16 %v3780
    %v3849 = vunpack.c.l.b16 %v3781
    %v3850 = vunpack.c.l.b16 %v3782
    %v3851 = vunpack.c.l.b16 %v3783
    %v3852 = vunpack.c.l.b16 %v3784
    %v3853 = vunpack.c.l.b16 %v3785
    %v3854 = vunpack.c.l.b16 %v3786
    %v3855 = vunpack.c.l.b16 %v3787
    %v3856 = vunpack.c.l.b16 %v3788
    %v3857 = vunpack.c.l.b16 %v3789
    %v3858 = vunpack.c.l.b16 %v3790
    %v3859 = vunpack.c.l.b16 %v3791
    %v3860 = vunpack.c.l.b16 %v3792
    %v3861 = vunpack.c.l.b16 %v3793
    %v3862 = vunpack.c.l.b16 %v3794
    %v3863 = vunpack.c.l.b16 %v3795
    %v3864 = vunpack.c.l.b16 %v3796
    %v3865 = vunpack.c.l.b16 %v3797
    %v3866 = vpack.c.b16 %v3835, %v3834
    %v3867 = vpack.c.b16 %v3837, %v3836
    %v3868 = vpack.c.b16 %v3839, %v3838
    %v3869 = vpack.c.b16 %v3841, %v3840
    %v3870 = vpack.c.b16 %v3843, %v3842
    %v3871 = vpack.c.b16 %v3845, %v3844
    %v3872 = vpack.c.b16 %v3847, %v3846
    %v3873 = vpack.c.b16 %v3849, %v3848
    %v3874 = vpack.c.b16 %v3851, %v3850
    %v3875 = vpack.c.b16 %v3853, %v3852
    %v3876 = vpack.c.b16 %v3855, %v3854
    %v3877 = vpack.c.b16 %v3857, %v3856
    %v3878 = vpack.c.b16 %v3859, %v3858
    %v3879 = vpack.c.b16 %v3861, %v3860
    %v3880 = vpack.c.b16 %v3863, %v3862
    %v3881 = vpack.c.b16 %v3865, %v3864
    %3898 = vmatpush.bf16.msra.mxu0 %v3873
    %3899 = vmatpush.bf16.msra.mxu0 %v3872
    %3900 = vmatpush.bf16.msra.mxu0 %v3871
    %3901 = vmatpush.bf16.msra.mxu0 %v3870
    %3902 = vmatpush.bf16.msra.mxu0 %v3869
    %3903 = vmatpush.bf16.msra.mxu0 %v3868
    %3904 = vmatpush.bf16.msra.mxu0 %v3867
    %3905 = vmatpush.bf16.msra.mxu0 %v3866
    %3906 = vmatmul.bf16.gmra.mxu0 %v3764
    %v3907 = vpop.f32.mrf.mxu0
    %v3908 = vadd.f32 %v3800, %v3907
    %v3909 = vpop.f32.mrf.mxu0
    %v3910 = vadd.f32 %v3800, %v3909
    %3911 = vdwg.mxu0
    %3912 = vmatpush.bf16.msra.mxu0 %v3881
    %3913 = vmatpush.bf16.msra.mxu0 %v3880
    %3914 = vmatpush.bf16.msra.mxu0 %v3879
    %3915 = vmatpush.bf16.msra.mxu0 %v3878
    %3916 = vmatpush.bf16.msra.mxu0 %v3877
    %3917 = vmatpush.bf16.msra.mxu0 %v3876
    %3918 = vmatpush.bf16.msra.mxu0 %v3875
    %3919 = vmatpush.bf16.msra.mxu0 %v3874
    %3920 = vmatmul.bf16.gmra.mxu0 %v3765
    %v3921 = vpop.f32.mrf.mxu0
    %v3922 = vadd.f32 %v3908, %v3921
    %v3923 = vpop.f32.mrf.mxu0
    %v3924 = vadd.f32 %v3910, %v3923
    %3925 = vdwg.mxu0
    %v3926 = vpack.c.bf16 %v3922, %v3922
    %v3927 = vpack.c.bf16 %v3924, %v3924
    %v3928 = vunpack.c.l.bf16 %v3926
    %v3929 = vunpack.c.l.bf16 %v3927
    %v3930 = vmax.f32 %v3928, 0.0
    %v3931 = vmax.f32 %v3929, 0.0
    %v3932 = vpack.c.bf16 %v3931, %v3930
    %v3933 = vld [vmem:[#allocation14] sm:$0xf]
    %v3934 = vld [vmem:[#allocation14 + $0x4] sm:$0xf]
    %v3935 = vld [vmem:[#allocation14 + $0x8] sm:$0xf]
    %v3936 = vld [vmem:[#allocation14 + $0xc] sm:$0xf]
    %v3937 = vld [vmem:[#allocation14 + $0x10] sm:$0xf]
    %v3938 = vld [vmem:[#allocation14 + $0x14] sm:$0xf]
    %v3939 = vld [vmem:[#allocation14 + $0x18] sm:$0xf]
    %v3940 = vld [vmem:[#allocation14 + $0x1c] sm:$0xf]
    %v3941 = vld [vmem:[#allocation14 + $0x20] sm:$0xf]
    %v3942 = vld [vmem:[#allocation14 + $0x24] sm:$0xf]
    %v3943 = vld [vmem:[#allocation14 + $0x28] sm:$0xf]
    %v3944 = vld [vmem:[#allocation14 + $0x2c] sm:$0xf]
    %v3945 = vld [vmem:[#allocation14 + $0x30] sm:$0xf]
    %v3946 = vld [vmem:[#allocation14 + $0x34] sm:$0xf]
    %v3947 = vld [vmem:[#allocation14 + $0x38] sm:$0xf]
    %v3948 = vld [vmem:[#allocation14 + $0x3c] sm:$0xf]
    %v3949 = vld [vmem:[%s10] sm:$0x1]
    %v3951 = vperm.slane %v3949, 0
    %v3969 = vunpack.c.l.b16 %v3933
    %v3970 = vunpack.c.l.b16 %v3934
    %v3971 = vunpack.c.l.b16 %v3935
    %v3972 = vunpack.c.l.b16 %v3936
    %v3973 = vunpack.c.l.b16 %v3937
    %v3974 = vunpack.c.l.b16 %v3938
    %v3975 = vunpack.c.l.b16 %v3939
    %v3976 = vunpack.c.l.b16 %v3940
    %v3977 = vunpack.c.l.b16 %v3941
    %v3978 = vunpack.c.l.b16 %v3942
    %v3979 = vunpack.c.l.b16 %v3943
    %v3980 = vunpack.c.l.b16 %v3944
    %v3981 = vunpack.c.l.b16 %v3945
    %v3982 = vunpack.c.l.b16 %v3946
    %v3983 = vunpack.c.l.b16 %v3947
    %v3984 = vunpack.c.l.b16 %v3948
    %v3985 = vpack.c.b16 %v3970, %v3969
    %v3986 = vpack.c.b16 %v3972, %v3971
    %v3987 = vpack.c.b16 %v3974, %v3973
    %v3988 = vpack.c.b16 %v3976, %v3975
    %v3989 = vpack.c.b16 %v3978, %v3977
    %v3990 = vpack.c.b16 %v3980, %v3979
    %v3991 = vpack.c.b16 %v3982, %v3981
    %v3992 = vpack.c.b16 %v3984, %v3983
    %4001 = vmatpush.bf16.msra.mxu0 %v3992
    %4002 = vmatpush.bf16.msra.mxu0 %v3991
    %4003 = vmatpush.bf16.msra.mxu0 %v3990
    %4004 = vmatpush.bf16.msra.mxu0 %v3989
    %4005 = vmatpush.bf16.msra.mxu0 %v3988
    %4006 = vmatpush.bf16.msra.mxu0 %v3987
    %4007 = vmatpush.bf16.msra.mxu0 %v3986
    %4008 = vmatpush.bf16.msra.mxu0 %v3985
    %4009 = vmatmul.bf16.gmra.mxu0 %v3932
    %v4010 = vpop.f32.mrf.mxu0
    %v4011 = vadd.f32 %v3951, %v4010
    %v4012 = vpop.f32.mrf.mxu0
    %v4013 = vadd.f32 %v3951, %v4012
    %4014 = vdwg.mxu0
    %4015 = vmax.xlane.f32.xlu0 %v4011
    %v4016 = vpop.xlane.xlu0 %4015
    %4017 = vmax.xlane.f32.xlu0 %v4013
    %v4018 = vpop.xlane.xlu0 %4017
    %v4019 = vsub.f32 %v4011, %v4016
    %v4020 = vsub.f32 %v4013, %v4018
    %v4021 = vmul.f32 %v4019, 1.442695
    %v4022 = vpow.pop %v4021
    %v4023 = vmul.f32 %v4020, 1.442695
    %v4024 = vpow.pop %v4023
    %4025 = vadd.xlane.f32.xlu0 %v4022
    %v4026 = vpop.xlane.xlu0 %4025
    %4027 = vadd.xlane.f32.xlu0 %v4024
    %v4028 = vpop.xlane.xlu0 %4027
    %v4029 = vrcp.pop %v4026
    %v4030 = vrcp.pop %v4028
    %v4031 = vmul.f32 %v4022, %v4029
    %v4032 = vmul.f32 %v4024, %v4030
    %v4033 = vpack.c.bf16 %v4031, %v4031
    %v4034 = vpack.c.bf16 %v4032, %v4032
    %4035 = vst [vmem:[#allocation16] sm:$0xf] %v4033
    %4036 = vst [vmem:[#allocation16 + $0x4] sm:$0xf] %v4034
    // Predicated region
    $region78: #{tpu_custom_call.1} parent=1 // pred_check
      _
    $region79: #{tpu_custom_call.1} parent=1 // pred_check_branch
      %4038 = sbr.rel (0) target = $region81
    $region80: #{tpu_custom_call.1} parent=1 // pred_region
      %4040 = vsyncadd [#allocation4], 0
      %s4041 = sshll.u32 [#allocation16], 4
      %s4042 = int_to_ptr.vmem [resolvable:$true] %s4041
      %s4043 = sshll.u32 %s11, 4
      %s4044 = int_to_ptr.hbm [resolvable:$true] %s4043
      %4049 = dma.vmem_to_hbm [thread:$0]  %s4042, 128, %s4044, [#allocation4], 64, 64, 4
    $region81: #{tpu_custom_call.1} parent=1 // pred_fallthru
      _
    // Predicated region
    $region82: #{tpu_custom_call.1} parent=1 // pred_check
      _
    $region83: #{tpu_custom_call.1} parent=1 // pred_check_branch
      %4051 = sbr.rel (0) target = $region85
    $region84: #{tpu_custom_call.1} parent=1 // pred_region
      %4053 = dma.done [#allocation4], 128
    $region85: #{tpu_custom_call.1} parent=1 // pred_fallthru
      _
    %4054 = vsyncpa [#allocation3], 1
    %4055 = vsyncpa [#allocation6], 1
    %4056 = vsyncpa [#allocation9], 1
    %4057 = vsyncpa [#allocation12], 1
    %4058 = vsyncpa [#allocation15], 1
    %4059 = vsyncpa [#allocation4], 1

</llo_original>
